<compile_context>
chip_gen: v6e
topology: v6e:2x2x1
jax: 0.10.0
libtpu: 0.0.40
codegen_flags: <defaults>
</compile_context>

<pallas_src>
import jax
import jax.numpy as jnp
from jax import lax
from jax.experimental import pallas as pl
from jax.experimental.pallas import tpu as pltpu
import numpy as np

_VMEM_LIMIT = 32 * 1024 * 1024      # explicit scoped-VMEM limit for all calls
_VMEM_BUDGET = 16 * 1024 * 1024     # tiling budget (kept below the limit)


# ----------------------------- tiling helpers --------------------------------
def _round_up(x, m):
    return ((x + m - 1) // m) * m


def _time_block(T, B, nIn, H, budget=_VMEM_BUDGET, target=64):
    """Largest timestep block <= target dividing T that fits the VMEM budget."""
    fixed = 2 * (2 * nIn * 4 * H + 2 * H * 4 * H + 2 * 4 * H) * 4   # weights+bias (2-buf)
    fixed += 4 * B * H * 4                                           # h/c scratch
    per_t = 2 * (2 * B * nIn + 2 * B * H) * 4                        # x blocks + outputs (2-buf)
    cap = max(1, (budget - fixed) // per_t)
    cap = min(cap, target, T)
    for tb in range(cap, 0, -1):
        if T % tb == 0:
            return tb
    return 1


def _row_block(M, H, nOut_pad, budget=_VMEM_BUDGET):
    """Row tile for the output projection, derived from a byte budget."""
    fixed = 2 * (2 * H * nOut_pad + nOut_pad) * 4                    # weights + bias (2-buf)
    per_row = 2 * (2 * H + nOut_pad) * 4                             # hf, hb, out (2-buf)
    cap = max(8, (budget - fixed) // per_row)
    if M <= cap:
        return M
    start = min(M, (cap // 8) * 8)
    for bm in range(start, 7, -8):                                   # multiple of 8 (sublane rule)
        if M % bm == 0:
            return bm
    # TODO(synk): pad M instead of falling back to the full extent for awkward sizes.
    return M


# ------------- kernel 1: fused input-projection + bidirectional recurrence ----
def _bilstm_fused_kernel(xf_ref, xb_ref,
                         wihf_ref, wihb_ref, bf_ref, bb_ref,
                         whhf_ref, whhb_ref,
                         of_ref, ob_ref,
                         hf, cf, hb, cb):
    t = pl.program_id(0)

    @pl.when(t == 0)
    def _():
        hf[...] = jnp.zeros_like(hf)
        cf[...] = jnp.zeros_like(cf)
        hb[...] = jnp.zeros_like(hb)
        cb[...] = jnp.zeros_like(cb)

    TB = xf_ref.shape[0]
    B = xf_ref.shape[1]
    H = hf.shape[-1]

    # Hoist loop-invariant weight / bias loads out of the per-timestep loop.
    wih_f = wihf_ref[...]
    wih_b = wihb_ref[...]
    whh_f = whhf_ref[...]
    whh_b = whhb_ref[...]
    b_f = bf_ref[...]
    b_b = bb_ref[...]

    def lstm_step(x_t, h, c, wih, whh, bias):
        # x_t @ W_ih is independent of h: under unrolling it is overlapped with
        # the previous step's elementwise gate math, keeping only h @ W_hh on
        # the serial critical path.
        gates = (jnp.dot(x_t, wih, preferred_element_type=jnp.float32) + bias
                 + jnp.dot(h, whh, preferred_element_type=jnp.float32))
        # Gate columns are pre-permuted offline to (i, f, o, g): one contiguous
        # sigmoid over 3H lanes, one tanh over H lanes.
        sig = jax.nn.sigmoid(gates[:, :3 * H])
        i_g = sig[:, 0 * H:1 * H]
        f_g = sig[:, 1 * H:2 * H]
        o_g = sig[:, 2 * H:3 * H]
        g_g = jnp.tanh(gates[:, 3 * H:])
        c_new = f_g * c + i_g * g_g
        h_new = o_g * jnp.tanh(c_new)
        return h_new, c_new

    def body(k, carry):
        # forward direction: local timestep k (block order is forward in time)
        h_new, c_new = lstm_step(xf_ref[k], hf[...], cf[...], wih_f, whh_f, b_f)
        hf[...] = h_new
        cf[...] = c_new
        of_ref[k] = h_new

        # backward direction: blocks arrive time-reversed via the BlockSpec
        # index_map; walk them reversed inside the block.
        j = TB - 1 - k
        h_new, c_new = lstm_step(xb_ref[j], hb[...], cb[...], wih_b, whh_b, b_b)
        hb[...] = h_new
        cb[...] = c_new
        ob_ref[j] = h_new
        return carry

    # Full unroll for small per-step live sets; cap it once B*4H gets large to
    # avoid turning the serial loop spill-bound.
    unroll = TB if (TB * B * 4 * H) <= 16384 else 4
    lax.fori_loop(0, TB, body, 0, unroll=unroll)


# ------------- kernel 2: fused output embedding (no concat, lane-dense) ------
def _output_proj_kernel(hf_ref, hb_ref, wf_ref, wb_ref, b_ref, o_ref):
    acc = jnp.dot(hf_ref[...], wf_ref[...], preferred_element_type=jnp.float32)
    acc = acc + jnp.dot(hb_ref[...], wb_ref[...],
                        preferred_element_type=jnp.float32)
    o_ref[...] = acc + b_ref[...]


# ----------------------------- wrapper ---------------------------------------
def bidirectional_lstm_forward(x, params, nHidden, nOut):
    T, B, nIn = x.shape
    H = nHidden
    M = T * B
    nOut_pad = params["w_emb_f"].shape[1]       # already padded to multiple of 128

    # ---- stage 1: recurrence with fused input projection ---------------------
    TB = _time_block(T, B, nIn, H)
    nb = T // TB
    out_f, out_b = pl.pallas_call(
        _bilstm_fused_kernel,
        out_shape=(jax.ShapeDtypeStruct((T, B, H), jnp.float32),
                   jax.ShapeDtypeStruct((T, B, H), jnp.float32)),
        grid_spec=pltpu.PrefetchScalarGridSpec(
            num_scalar_prefetch=0,
            grid=(nb,),
            in_specs=[
                pl.BlockSpec((TB, B, nIn), lambda t: (t, 0, 0)),           # x, fwd order
                pl.BlockSpec((TB, B, nIn), lambda t: (nb - 1 - t, 0, 0)),  # x, bwd order
                pl.BlockSpec((nIn, 4 * H), lambda t: (0, 0)),              # W_ih fwd
                pl.BlockSpec((nIn, 4 * H), lambda t: (0, 0)),              # W_ih bwd
                pl.BlockSpec((1, 4 * H), lambda t: (0, 0)),                # bias fwd
                pl.BlockSpec((1, 4 * H), lambda t: (0, 0)),                # bias bwd
                pl.BlockSpec((H, 4 * H), lambda t: (0, 0)),                # W_hh fwd
                pl.BlockSpec((H, 4 * H), lambda t: (0, 0)),                # W_hh bwd
            ],
            out_specs=[
                pl.BlockSpec((TB, B, H), lambda t: (t, 0, 0)),
                pl.BlockSpec((TB, B, H), lambda t: (nb - 1 - t, 0, 0)),
            ],
            scratch_shapes=[pltpu.VMEM((B, H), jnp.float32) for _ in range(4)]),
        compiler_params=pltpu.CompilerParams(
            dimension_semantics=("arbitrary",),       # h/c carried through scratch
            vmem_limit_bytes=_VMEM_LIMIT),
    )(x, x,
      params["wih_f_t"], params["wih_b_t"], params["b_f"], params["b_b"],
      params["whh_f_t"], params["whh_b_t"])

    # ---- stage 2: embedding, fused over both directions (no concat) ---------
    hf2d = out_f.reshape(M, H)
    hb2d = out_b.reshape(M, H)
    bm = _row_block(M, H, nOut_pad)
    out_pad = pl.pallas_call(
        _output_proj_kernel,
        out_shape=jax.ShapeDtypeStruct((M, nOut_pad), jnp.float32),
        grid_spec=pltpu.PrefetchScalarGridSpec(
            num_scalar_prefetch=0,
            grid=(M // bm,),
            in_specs=[
                pl.BlockSpec((bm, H), lambda i: (i, 0)),
                pl.BlockSpec((bm, H), lambda i: (i, 0)),
                pl.BlockSpec((H, nOut_pad), lambda i: (0, 0)),
                pl.BlockSpec((H, nOut_pad), lambda i: (0, 0)),
                pl.BlockSpec((1, nOut_pad), lambda i: (0, 0)),
            ],
            out_specs=pl.BlockSpec((bm, nOut_pad), lambda i: (i, 0))),
        compiler_params=pltpu.CompilerParams(
            dimension_semantics=("parallel",),
            vmem_limit_bytes=_VMEM_LIMIT),
    )(hf2d, hb2d, params["w_emb_f"], params["w_emb_b"], params["b_emb"])
    return out_pad[:, :nOut].reshape(T, B, nOut)


# --------------------------- parameter preparation ---------------------------
def _permute_gate_rows(a, H):
    """PyTorch gate-row order (i, f, g, o) -> kernel order (i, f, o, g)."""
    return jnp.concatenate([a[:2 * H], a[3 * H:4 * H], a[2 * H:3 * H]], axis=0)


def prepare_params(wih_f, whh_f, b_f, wih_b, whh_b, b_b, w_emb, b_emb, H, nOut):
    nOut_pad = max(128, _round_up(nOut, 128))
    pad = nOut_pad - nOut
    return dict(
        wih_f_t=_permute_gate_rows(wih_f, H).T,                    # (nIn, 4H)
        whh_f_t=_permute_gate_rows(whh_f, H).T,                    # (H, 4H)
        b_f=_permute_gate_rows(b_f, H).reshape(1, 4 * H),          # bias_ih + bias_hh
        wih_b_t=_permute_gate_rows(wih_b, H).T,
        whh_b_t=_permute_gate_rows(whh_b, H).T,
        b_b=_permute_gate_rows(b_b, H).reshape(1, 4 * H),
        w_emb_f=jnp.pad(w_emb[:, :H].T, ((0, 0), (0, pad))),       # (H, nOut_pad)
        w_emb_b=jnp.pad(w_emb[:, H:].T, ((0, 0), (0, pad))),       # (H, nOut_pad)
        b_emb=jnp.pad(b_emb.reshape(1, nOut), ((0, 0), (0, pad))), # (1, nOut_pad)
    )


# ----------------------------- pure-JAX reference ----------------------------
def ref_forward(x, wih_f, whh_f, b_f, wih_b, whh_b, b_b, w_emb, b_emb, nHidden):
    T, B, _ = x.shape

    def run_dir(xs, wih, whh, bias):
        def step(carry, xt):
            h, c = carry
            gates = xt @ wih.T + h @ whh.T + bias
            i, f, g, o = jnp.split(gates, 4, axis=-1)
            i, f, o = jax.nn.sigmoid(i), jax.nn.sigmoid(f), jax.nn.sigmoid(o)
            g = jnp.tanh(g)
            c = f * c + i * g
            h = o * jnp.tanh(c)
            return (h, c), h
        init = (jnp.zeros((B, nHidden), jnp.float32),
                jnp.zeros((B, nHidden), jnp.float32))
        _, hs = lax.scan(step, init, xs)
        return hs

    hs_f = run_dir(x, wih_f, whh_f, b_f)
    hs_b = run_dir(x[::-1], wih_b, whh_b, b_b)[::-1]
    rec = jnp.concatenate([hs_f, hs_b], axis=-1).reshape(T * B, 2 * nHidden)
    out = rec @ w_emb.T + b_emb
    return out.reshape(T, B, -1)


# ----------------------------- main -------------------------------------------
if __name__ == "__main__":
    T, B, nIn, nHidden, nOut = 8, 2, 16, 32, 8
    H = nHidden

    key = jax.random.PRNGKey(0)
    ks = jax.random.split(key, 12)
    k_lstm = 1.0 / np.sqrt(nHidden)
    k_lin = 1.0 / np.sqrt(2 * nHidden)
    u = lambda k, shape, s: jax.random.uniform(k, shape, jnp.float32, -s, s)

    # PyTorch LSTM params: weight_ih (4H,nIn), weight_hh (4H,H), bias_ih/bias_hh (4H,)
    wih_f = u(ks[0], (4 * H, nIn), k_lstm)
    whh_f = u(ks[1], (4 * H, H), k_lstm)
    b_f = u(ks[2], (4 * H,), k_lstm) + u(ks[3], (4 * H,), k_lstm)
    wih_b = u(ks[4], (4 * H, nIn), k_lstm)
    whh_b = u(ks[5], (4 * H, H), k_lstm)
    b_b = u(ks[6], (4 * H,), k_lstm) + u(ks[7], (4 * H,), k_lstm)
    w_emb = u(ks[8], (nOut, 2 * H), k_lin)       # Linear weight (nOut, 2H)
    b_emb = u(ks[9], (nOut,), k_lin)

    params = prepare_params(wih_f, whh_f, b_f, wih_b, whh_b, b_b,
                            w_emb, b_emb, H, nOut)

    x = jax.random.normal(ks[10], (T, B, nIn), jnp.float32)

    out = bidirectional_lstm_forward(x, params, nHidden, nOut)
    out = jax.block_until_ready(out)

    ref = jax.block_until_ready(
        ref_forward(x, wih_f, whh_f, b_f, wih_b, whh_b, b_b, w_emb, b_emb, nHidden))
    np.testing.assert_allclose(np.asarray(out), np.asarray(ref),
                               rtol=1e-4, atol=1e-4)

    assert out.shape == (T, B, nOut)
    print("KERNEL_OK")
</pallas_src>

<mosaic_0001>
module attributes {stable_mosaic.version = 11 : i64} {
  func.func @_bilstm_fused_kernel(%arg0: i32, %arg1: memref<8x2x16xf32, #tpu.memory_space<vmem>>, %arg2: memref<8x2x16xf32, #tpu.memory_space<vmem>>, %arg3: memref<16x128xf32, #tpu.memory_space<vmem>>, %arg4: memref<16x128xf32, #tpu.memory_space<vmem>>, %arg5: memref<1x128xf32, #tpu.memory_space<vmem>>, %arg6: memref<1x128xf32, #tpu.memory_space<vmem>>, %arg7: memref<32x128xf32, #tpu.memory_space<vmem>>, %arg8: memref<32x128xf32, #tpu.memory_space<vmem>>, %arg9: memref<8x2x32xf32, #tpu.memory_space<vmem>>, %arg10: memref<8x2x32xf32, #tpu.memory_space<vmem>>, %arg11: memref<2x32xf32, #tpu.memory_space<vmem>>, %arg12: memref<2x32xf32, #tpu.memory_space<vmem>>, %arg13: memref<2x32xf32, #tpu.memory_space<vmem>>, %arg14: memref<2x32xf32, #tpu.memory_space<vmem>>) attributes {dimension_semantics = [#tpu.dimension_semantics<arbitrary>], iteration_bounds = array<i64: 1>, scalar_prefetch = 0 : i64, scratch_operands = 4 : i64, tpu.core_type = #tpu.core_type<tc>, window_params = [{transform_indices = @transform_0, window_bounds = array<i64: 8, 2, 16>}, {transform_indices = @transform_1, window_bounds = array<i64: 8, 2, 16>}, {pipeline_mode = #tpu.pipeline_mode<synchronous>, transform_indices = @transform_2, window_bounds = array<i64: 16, 128>}, {pipeline_mode = #tpu.pipeline_mode<synchronous>, transform_indices = @transform_3, window_bounds = array<i64: 16, 128>}, {pipeline_mode = #tpu.pipeline_mode<synchronous>, transform_indices = @transform_4, window_bounds = array<i64: 1, 128>}, {pipeline_mode = #tpu.pipeline_mode<synchronous>, transform_indices = @transform_5, window_bounds = array<i64: 1, 128>}, {pipeline_mode = #tpu.pipeline_mode<synchronous>, transform_indices = @transform_6, window_bounds = array<i64: 32, 128>}, {pipeline_mode = #tpu.pipeline_mode<synchronous>, transform_indices = @transform_7, window_bounds = array<i64: 32, 128>}, {transform_indices = @transform_8, window_bounds = array<i64: 8, 2, 32>}, {transform_indices = @transform_9, window_bounds = array<i64: 8, 2, 32>}]} {
    %c0_i32 = arith.constant 0 : i32
    %0 = arith.cmpi eq, %arg0, %c0_i32 : i32
    %1 = arith.extui %0 : i1 to i32
    %c0_i32_0 = arith.constant 0 : i32
    %2 = arith.cmpi ne, %1, %c0_i32_0 : i32
    scf.if %2 {
      %cst_260 = arith.constant 0.000000e+00 : f32
      %529 = vector.broadcast %cst_260 : f32 to vector<2x32xf32>
      %c0_261 = arith.constant 0 : index
      %c0_262 = arith.constant 0 : index
      %530 = vector.load %arg11[%c0_261, %c0_262] : memref<2x32xf32, #tpu.memory_space<vmem>>, vector<2x32xf32>
      tpu.vector_store %arg11[%c0_261, %c0_262], %529 {strides = array<i32>} : memref<2x32xf32, #tpu.memory_space<vmem>>, vector<2x32xf32>,
      %cst_263 = arith.constant 0.000000e+00 : f32
      %531 = vector.broadcast %cst_263 : f32 to vector<2x32xf32>
      %c0_264 = arith.constant 0 : index
      %c0_265 = arith.constant 0 : index
      %532 = vector.load %arg12[%c0_264, %c0_265] : memref<2x32xf32, #tpu.memory_space<vmem>>, vector<2x32xf32>
      tpu.vector_store %arg12[%c0_264, %c0_265], %531 {strides = array<i32>} : memref<2x32xf32, #tpu.memory_space<vmem>>, vector<2x32xf32>,
      %cst_266 = arith.constant 0.000000e+00 : f32
      %533 = vector.broadcast %cst_266 : f32 to vector<2x32xf32>
      %c0_267 = arith.constant 0 : index
      %c0_268 = arith.constant 0 : index
      %534 = vector.load %arg13[%c0_267, %c0_268] : memref<2x32xf32, #tpu.memory_space<vmem>>, vector<2x32xf32>
      tpu.vector_store %arg13[%c0_267, %c0_268], %533 {strides = array<i32>} : memref<2x32xf32, #tpu.memory_space<vmem>>, vector<2x32xf32>,
      %cst_269 = arith.constant 0.000000e+00 : f32
      %535 = vector.broadcast %cst_269 : f32 to vector<2x32xf32>
      %c0_270 = arith.constant 0 : index
      %c0_271 = arith.constant 0 : index
      %536 = vector.load %arg14[%c0_270, %c0_271] : memref<2x32xf32, #tpu.memory_space<vmem>>, vector<2x32xf32>
      tpu.vector_store %arg14[%c0_270, %c0_271], %535 {strides = array<i32>} : memref<2x32xf32, #tpu.memory_space<vmem>>, vector<2x32xf32>,
    } else {
    }
    %c0 = arith.constant 0 : index
    %c0_1 = arith.constant 0 : index
    %3 = vector.load %arg3[%c0, %c0_1] : memref<16x128xf32, #tpu.memory_space<vmem>>, vector<16x128xf32>
    %c0_2 = arith.constant 0 : index
    %c0_3 = arith.constant 0 : index
    %4 = vector.load %arg4[%c0_2, %c0_3] : memref<16x128xf32, #tpu.memory_space<vmem>>, vector<16x128xf32>
    %c0_4 = arith.constant 0 : index
    %c0_5 = arith.constant 0 : index
    %5 = vector.load %arg7[%c0_4, %c0_5] : memref<32x128xf32, #tpu.memory_space<vmem>>, vector<32x128xf32>
    %c0_6 = arith.constant 0 : index
    %c0_7 = arith.constant 0 : index
    %6 = vector.load %arg8[%c0_6, %c0_7] : memref<32x128xf32, #tpu.memory_space<vmem>>, vector<32x128xf32>
    %c0_8 = arith.constant 0 : index
    %c0_9 = arith.constant 0 : index
    %7 = vector.load %arg5[%c0_8, %c0_9] : memref<1x128xf32, #tpu.memory_space<vmem>>, vector<1x128xf32>
    %c0_10 = arith.constant 0 : index
    %c0_11 = arith.constant 0 : index
    %8 = vector.load %arg6[%c0_10, %c0_11] : memref<1x128xf32, #tpu.memory_space<vmem>>, vector<1x128xf32>
    %c0_i32_12 = arith.constant 0 : i32
    %9 = arith.index_cast %c0_i32_12 : i32 to index
    %c0_13 = arith.constant 0 : index
    %c0_14 = arith.constant 0 : index
    %10 = vector.load %arg1[%9, %c0_13, %c0_14] : memref<8x2x16xf32, #tpu.memory_space<vmem>>, vector<1x2x16xf32>
    %11 = vector.shape_cast %10 : vector<1x2x16xf32> to vector<2x16xf32>
    %c0_15 = arith.constant 0 : index
    %c0_16 = arith.constant 0 : index
    %12 = vector.load %arg11[%c0_15, %c0_16] : memref<2x32xf32, #tpu.memory_space<vmem>>, vector<2x32xf32>
    %c0_17 = arith.constant 0 : index
    %c0_18 = arith.constant 0 : index
    %13 = vector.load %arg12[%c0_17, %c0_18] : memref<2x32xf32, #tpu.memory_space<vmem>>, vector<2x32xf32>
    %cst = arith.constant dense<0.000000e+00> : vector<2x128xf32>
    %14 = tpu.matmul %11, %3, %cst {dimension_numbers = #tpu.dot_dimension_numbers<[1], [0], [0], [1], [0, 0, 1, 1], [], []>} : vector<2x16xf32>, vector<16x128xf32>, vector<2x128xf32> -> vector<2x128xf32>
    %15 = vector.broadcast %7 : vector<1x128xf32> to vector<2x128xf32>
    %16 = arith.addf %14, %15 : vector<2x128xf32>
    %cst_19 = arith.constant dense<0.000000e+00> : vector<2x128xf32>
    %17 = tpu.matmul %12, %5, %cst_19 {dimension_numbers = #tpu.dot_dimension_numbers<[1], [0], [0], [1], [0, 0, 1, 1], [], []>} : vector<2x32xf32>, vector<32x128xf32>, vector<2x128xf32> -> vector<2x128xf32>
    %18 = arith.addf %16, %17 : vector<2x128xf32>
    %19 = vector.extract_strided_slice %18 {offsets = [0, 0], sizes = [2, 96], strides = [1, 1]} : vector<2x128xf32> to vector<2x96xf32>
    %20 = arith.negf %19 : vector<2x96xf32>
    %21 = math.exp %20 : vector<2x96xf32>
    %cst_20 = arith.constant 1.000000e+00 : f32
    %22 = vector.broadcast %cst_20 : f32 to vector<2x96xf32>
    %23 = arith.addf %22, %21 : vector<2x96xf32>
    %24 = arith.divf %22, %23 : vector<2x96xf32>
    %25 = vector.extract_strided_slice %24 {offsets = [0, 0], sizes = [2, 32], strides = [1, 1]} : vector<2x96xf32> to vector<2x32xf32>
    %26 = vector.extract_strided_slice %24 {offsets = [0, 32], sizes = [2, 32], strides = [1, 1]} : vector<2x96xf32> to vector<2x32xf32>
    %27 = vector.extract_strided_slice %24 {offsets = [0, 64], sizes = [2, 32], strides = [1, 1]} : vector<2x96xf32> to vector<2x32xf32>
    %28 = vector.extract_strided_slice %18 {offsets = [0, 96], sizes = [2, 32], strides = [1, 1]} : vector<2x128xf32> to vector<2x32xf32>
    %29 = math.tanh %28 : vector<2x32xf32>
    %30 = arith.mulf %26, %13 : vector<2x32xf32>
    %31 = arith.mulf %25, %29 : vector<2x32xf32>
    %32 = arith.addf %30, %31 : vector<2x32xf32>
    %33 = math.tanh %32 : vector<2x32xf32>
    %34 = arith.mulf %27, %33 : vector<2x32xf32>
    %c0_21 = arith.constant 0 : index
    %c0_22 = arith.constant 0 : index
    %35 = vector.load %arg11[%c0_21, %c0_22] : memref<2x32xf32, #tpu.memory_space<vmem>>, vector<2x32xf32>
    tpu.vector_store %arg11[%c0_21, %c0_22], %34 {strides = array<i32>} : memref<2x32xf32, #tpu.memory_space<vmem>>, vector<2x32xf32>,
    %c0_23 = arith.constant 0 : index
    %c0_24 = arith.constant 0 : index
    %36 = vector.load %arg12[%c0_23, %c0_24] : memref<2x32xf32, #tpu.memory_space<vmem>>, vector<2x32xf32>
    tpu.vector_store %arg12[%c0_23, %c0_24], %32 {strides = array<i32>} : memref<2x32xf32, #tpu.memory_space<vmem>>, vector<2x32xf32>,
    %37 = arith.index_cast %c0_i32_12 : i32 to index
    %c0_25 = arith.constant 0 : index
    %c0_26 = arith.constant 0 : index
    %38 = vector.load %arg9[%37, %c0_25, %c0_26] : memref<8x2x32xf32, #tpu.memory_space<vmem>>, vector<1x2x32xf32>
    %39 = vector.shape_cast %38 : vector<1x2x32xf32> to vector<2x32xf32>
    %40 = vector.shape_cast %34 : vector<2x32xf32> to vector<1x2x32xf32>
    tpu.vector_store %arg9[%37, %c0_25, %c0_26], %40 {strides = array<i32>} : memref<8x2x32xf32, #tpu.memory_space<vmem>>, vector<1x2x32xf32>,
    %c7_i32 = arith.constant 7 : i32
    %41 = arith.subi %c7_i32, %c0_i32_12 : i32
    %42 = arith.index_cast %41 : i32 to index
    %c0_27 = arith.constant 0 : index
    %c0_28 = arith.constant 0 : index
    %43 = vector.load %arg2[%42, %c0_27, %c0_28] : memref<8x2x16xf32, #tpu.memory_space<vmem>>, vector<1x2x16xf32>
    %44 = vector.shape_cast %43 : vector<1x2x16xf32> to vector<2x16xf32>
    %c0_29 = arith.constant 0 : index
    %c0_30 = arith.constant 0 : index
    %45 = vector.load %arg13[%c0_29, %c0_30] : memref<2x32xf32, #tpu.memory_space<vmem>>, vector<2x32xf32>
    %c0_31 = arith.constant 0 : index
    %c0_32 = arith.constant 0 : index
    %46 = vector.load %arg14[%c0_31, %c0_32] : memref<2x32xf32, #tpu.memory_space<vmem>>, vector<2x32xf32>
    %cst_33 = arith.constant dense<0.000000e+00> : vector<2x128xf32>
    %47 = tpu.matmul %44, %4, %cst_33 {dimension_numbers = #tpu.dot_dimension_numbers<[1], [0], [0], [1], [0, 0, 1, 1], [], []>} : vector<2x16xf32>, vector<16x128xf32>, vector<2x128xf32> -> vector<2x128xf32>
    %48 = vector.broadcast %8 : vector<1x128xf32> to vector<2x128xf32>
    %49 = arith.addf %47, %48 : vector<2x128xf32>
    %cst_34 = arith.constant dense<0.000000e+00> : vector<2x128xf32>
    %50 = tpu.matmul %45, %6, %cst_34 {dimension_numbers = #tpu.dot_dimension_numbers<[1], [0], [0], [1], [0, 0, 1, 1], [], []>} : vector<2x32xf32>, vector<32x128xf32>, vector<2x128xf32> -> vector<2x128xf32>
    %51 = arith.addf %49, %50 : vector<2x128xf32>
    %52 = vector.extract_strided_slice %51 {offsets = [0, 0], sizes = [2, 96], strides = [1, 1]} : vector<2x128xf32> to vector<2x96xf32>
    %53 = arith.negf %52 : vector<2x96xf32>
    %54 = math.exp %53 : vector<2x96xf32>
    %cst_35 = arith.constant 1.000000e+00 : f32
    %55 = vector.broadcast %cst_35 : f32 to vector<2x96xf32>
    %56 = arith.addf %55, %54 : vector<2x96xf32>
    %57 = arith.divf %55, %56 : vector<2x96xf32>
    %58 = vector.extract_strided_slice %57 {offsets = [0, 0], sizes = [2, 32], strides = [1, 1]} : vector<2x96xf32> to vector<2x32xf32>
    %59 = vector.extract_strided_slice %57 {offsets = [0, 32], sizes = [2, 32], strides = [1, 1]} : vector<2x96xf32> to vector<2x32xf32>
    %60 = vector.extract_strided_slice %57 {offsets = [0, 64], sizes = [2, 32], strides = [1, 1]} : vector<2x96xf32> to vector<2x32xf32>
    %61 = vector.extract_strided_slice %51 {offsets = [0, 96], sizes = [2, 32], strides = [1, 1]} : vector<2x128xf32> to vector<2x32xf32>
    %62 = math.tanh %61 : vector<2x32xf32>
    %63 = arith.mulf %59, %46 : vector<2x32xf32>
    %64 = arith.mulf %58, %62 : vector<2x32xf32>
    %65 = arith.addf %63, %64 : vector<2x32xf32>
    %66 = math.tanh %65 : vector<2x32xf32>
    %67 = arith.mulf %60, %66 : vector<2x32xf32>
    %c0_36 = arith.constant 0 : index
    %c0_37 = arith.constant 0 : index
    %68 = vector.load %arg13[%c0_36, %c0_37] : memref<2x32xf32, #tpu.memory_space<vmem>>, vector<2x32xf32>
    tpu.vector_store %arg13[%c0_36, %c0_37], %67 {strides = array<i32>} : memref<2x32xf32, #tpu.memory_space<vmem>>, vector<2x32xf32>,
    %c0_38 = arith.constant 0 : index
    %c0_39 = arith.constant 0 : index
    %69 = vector.load %arg14[%c0_38, %c0_39] : memref<2x32xf32, #tpu.memory_space<vmem>>, vector<2x32xf32>
    tpu.vector_store %arg14[%c0_38, %c0_39], %65 {strides = array<i32>} : memref<2x32xf32, #tpu.memory_space<vmem>>, vector<2x32xf32>,
    %70 = arith.index_cast %41 : i32 to index
    %c0_40 = arith.constant 0 : index
    %c0_41 = arith.constant 0 : index
    %71 = vector.load %arg10[%70, %c0_40, %c0_41] : memref<8x2x32xf32, #tpu.memory_space<vmem>>, vector<1x2x32xf32>
    %72 = vector.shape_cast %71 : vector<1x2x32xf32> to vector<2x32xf32>
    %73 = vector.shape_cast %67 : vector<2x32xf32> to vector<1x2x32xf32>
    tpu.vector_store %arg10[%70, %c0_40, %c0_41], %73 {strides = array<i32>} : memref<8x2x32xf32, #tpu.memory_space<vmem>>, vector<1x2x32xf32>,
    %c1_i32 = arith.constant 1 : i32
    %74 = arith.index_cast %c1_i32 : i32 to index
    %c0_42 = arith.constant 0 : index
    %c0_43 = arith.constant 0 : index
    %75 = vector.load %arg1[%74, %c0_42, %c0_43] : memref<8x2x16xf32, #tpu.memory_space<vmem>>, vector<1x2x16xf32>
    %76 = vector.shape_cast %75 : vector<1x2x16xf32> to vector<2x16xf32>
    %c0_44 = arith.constant 0 : index
    %c0_45 = arith.constant 0 : index
    %77 = vector.load %arg11[%c0_44, %c0_45] : memref<2x32xf32, #tpu.memory_space<vmem>>, vector<2x32xf32>
    %c0_46 = arith.constant 0 : index
    %c0_47 = arith.constant 0 : index
    %78 = vector.load %arg12[%c0_46, %c0_47] : memref<2x32xf32, #tpu.memory_space<vmem>>, vector<2x32xf32>
    %cst_48 = arith.constant dense<0.000000e+00> : vector<2x128xf32>
    %79 = tpu.matmul %76, %3, %cst_48 {dimension_numbers = #tpu.dot_dimension_numbers<[1], [0], [0], [1], [0, 0, 1, 1], [], []>} : vector<2x16xf32>, vector<16x128xf32>, vector<2x128xf32> -> vector<2x128xf32>
    %80 = vector.broadcast %7 : vector<1x128xf32> to vector<2x128xf32>
    %81 = arith.addf %79, %80 : vector<2x128xf32>
    %cst_49 = arith.constant dense<0.000000e+00> : vector<2x128xf32>
    %82 = tpu.matmul %77, %5, %cst_49 {dimension_numbers = #tpu.dot_dimension_numbers<[1], [0], [0], [1], [0, 0, 1, 1], [], []>} : vector<2x32xf32>, vector<32x128xf32>, vector<2x128xf32> -> vector<2x128xf32>
    %83 = arith.addf %81, %82 : vector<2x128xf32>
    %84 = vector.extract_strided_slice %83 {offsets = [0, 0], sizes = [2, 96], strides = [1, 1]} : vector<2x128xf32> to vector<2x96xf32>
    %85 = arith.negf %84 : vector<2x96xf32>
    %86 = math.exp %85 : vector<2x96xf32>
    %cst_50 = arith.constant 1.000000e+00 : f32
    %87 = vector.broadcast %cst_50 : f32 to vector<2x96xf32>
    %88 = arith.addf %87, %86 : vector<2x96xf32>
    %89 = arith.divf %87, %88 : vector<2x96xf32>
    %90 = vector.extract_strided_slice %89 {offsets = [0, 0], sizes = [2, 32], strides = [1, 1]} : vector<2x96xf32> to vector<2x32xf32>
    %91 = vector.extract_strided_slice %89 {offsets = [0, 32], sizes = [2, 32], strides = [1, 1]} : vector<2x96xf32> to vector<2x32xf32>
    %92 = vector.extract_strided_slice %89 {offsets = [0, 64], sizes = [2, 32], strides = [1, 1]} : vector<2x96xf32> to vector<2x32xf32>
    %93 = vector.extract_strided_slice %83 {offsets = [0, 96], sizes = [2, 32], strides = [1, 1]} : vector<2x128xf32> to vector<2x32xf32>
    %94 = math.tanh %93 : vector<2x32xf32>
    %95 = arith.mulf %91, %78 : vector<2x32xf32>
    %96 = arith.mulf %90, %94 : vector<2x32xf32>
    %97 = arith.addf %95, %96 : vector<2x32xf32>
    %98 = math.tanh %97 : vector<2x32xf32>
    %99 = arith.mulf %92, %98 : vector<2x32xf32>
    %c0_51 = arith.constant 0 : index
    %c0_52 = arith.constant 0 : index
    %100 = vector.load %arg11[%c0_51, %c0_52] : memref<2x32xf32, #tpu.memory_space<vmem>>, vector<2x32xf32>
    tpu.vector_store %arg11[%c0_51, %c0_52], %99 {strides = array<i32>} : memref<2x32xf32, #tpu.memory_space<vmem>>, vector<2x32xf32>,
    %c0_53 = arith.constant 0 : index
    %c0_54 = arith.constant 0 : index
    %101 = vector.load %arg12[%c0_53, %c0_54] : memref<2x32xf32, #tpu.memory_space<vmem>>, vector<2x32xf32>
    tpu.vector_store %arg12[%c0_53, %c0_54], %97 {strides = array<i32>} : memref<2x32xf32, #tpu.memory_space<vmem>>, vector<2x32xf32>,
    %102 = arith.index_cast %c1_i32 : i32 to index
    %c0_55 = arith.constant 0 : index
    %c0_56 = arith.constant 0 : index
    %103 = vector.load %arg9[%102, %c0_55, %c0_56] : memref<8x2x32xf32, #tpu.memory_space<vmem>>, vector<1x2x32xf32>
    %104 = vector.shape_cast %103 : vector<1x2x32xf32> to vector<2x32xf32>
    %105 = vector.shape_cast %99 : vector<2x32xf32> to vector<1x2x32xf32>
    tpu.vector_store %arg9[%102, %c0_55, %c0_56], %105 {strides = array<i32>} : memref<8x2x32xf32, #tpu.memory_space<vmem>>, vector<1x2x32xf32>,
    %c7_i32_57 = arith.constant 7 : i32
    %106 = arith.subi %c7_i32_57, %c1_i32 : i32
    %107 = arith.index_cast %106 : i32 to index
    %c0_58 = arith.constant 0 : index
    %c0_59 = arith.constant 0 : index
    %108 = vector.load %arg2[%107, %c0_58, %c0_59] : memref<8x2x16xf32, #tpu.memory_space<vmem>>, vector<1x2x16xf32>
    %109 = vector.shape_cast %108 : vector<1x2x16xf32> to vector<2x16xf32>
    %c0_60 = arith.constant 0 : index
    %c0_61 = arith.constant 0 : index
    %110 = vector.load %arg13[%c0_60, %c0_61] : memref<2x32xf32, #tpu.memory_space<vmem>>, vector<2x32xf32>
    %c0_62 = arith.constant 0 : index
    %c0_63 = arith.constant 0 : index
    %111 = vector.load %arg14[%c0_62, %c0_63] : memref<2x32xf32, #tpu.memory_space<vmem>>, vector<2x32xf32>
    %cst_64 = arith.constant dense<0.000000e+00> : vector<2x128xf32>
    %112 = tpu.matmul %109, %4, %cst_64 {dimension_numbers = #tpu.dot_dimension_numbers<[1], [0], [0], [1], [0, 0, 1, 1], [], []>} : vector<2x16xf32>, vector<16x128xf32>, vector<2x128xf32> -> vector<2x128xf32>
    %113 = vector.broadcast %8 : vector<1x128xf32> to vector<2x128xf32>
    %114 = arith.addf %112, %113 : vector<2x128xf32>
    %cst_65 = arith.constant dense<0.000000e+00> : vector<2x128xf32>
    %115 = tpu.matmul %110, %6, %cst_65 {dimension_numbers = #tpu.dot_dimension_numbers<[1], [0], [0], [1], [0, 0, 1, 1], [], []>} : vector<2x32xf32>, vector<32x128xf32>, vector<2x128xf32> -> vector<2x128xf32>
    %116 = arith.addf %114, %115 : vector<2x128xf32>
    %117 = vector.extract_strided_slice %116 {offsets = [0, 0], sizes = [2, 96], strides = [1, 1]} : vector<2x128xf32> to vector<2x96xf32>
    %118 = arith.negf %117 : vector<2x96xf32>
    %119 = math.exp %118 : vector<2x96xf32>
    %cst_66 = arith.constant 1.000000e+00 : f32
    %120 = vector.broadcast %cst_66 : f32 to vector<2x96xf32>
    %121 = arith.addf %120, %119 : vector<2x96xf32>
    %122 = arith.divf %120, %121 : vector<2x96xf32>
    %123 = vector.extract_strided_slice %122 {offsets = [0, 0], sizes = [2, 32], strides = [1, 1]} : vector<2x96xf32> to vector<2x32xf32>
    %124 = vector.extract_strided_slice %122 {offsets = [0, 32], sizes = [2, 32], strides = [1, 1]} : vector<2x96xf32> to vector<2x32xf32>
    %125 = vector.extract_strided_slice %122 {offsets = [0, 64], sizes = [2, 32], strides = [1, 1]} : vector<2x96xf32> to vector<2x32xf32>
    %126 = vector.extract_strided_slice %116 {offsets = [0, 96], sizes = [2, 32], strides = [1, 1]} : vector<2x128xf32> to vector<2x32xf32>
    %127 = math.tanh %126 : vector<2x32xf32>
    %128 = arith.mulf %124, %111 : vector<2x32xf32>
    %129 = arith.mulf %123, %127 : vector<2x32xf32>
    %130 = arith.addf %128, %129 : vector<2x32xf32>
    %131 = math.tanh %130 : vector<2x32xf32>
    %132 = arith.mulf %125, %131 : vector<2x32xf32>
    %c0_67 = arith.constant 0 : index
    %c0_68 = arith.constant 0 : index
    %133 = vector.load %arg13[%c0_67, %c0_68] : memref<2x32xf32, #tpu.memory_space<vmem>>, vector<2x32xf32>
    tpu.vector_store %arg13[%c0_67, %c0_68], %132 {strides = array<i32>} : memref<2x32xf32, #tpu.memory_space<vmem>>, vector<2x32xf32>,
    %c0_69 = arith.constant 0 : index
    %c0_70 = arith.constant 0 : index
    %134 = vector.load %arg14[%c0_69, %c0_70] : memref<2x32xf32, #tpu.memory_space<vmem>>, vector<2x32xf32>
    tpu.vector_store %arg14[%c0_69, %c0_70], %130 {strides = array<i32>} : memref<2x32xf32, #tpu.memory_space<vmem>>, vector<2x32xf32>,
    %135 = arith.index_cast %106 : i32 to index
    %c0_71 = arith.constant 0 : index
    %c0_72 = arith.constant 0 : index
    %136 = vector.load %arg10[%135, %c0_71, %c0_72] : memref<8x2x32xf32, #tpu.memory_space<vmem>>, vector<1x2x32xf32>
    %137 = vector.shape_cast %136 : vector<1x2x32xf32> to vector<2x32xf32>
    %138 = vector.shape_cast %132 : vector<2x32xf32> to vector<1x2x32xf32>
    tpu.vector_store %arg10[%135, %c0_71, %c0_72], %138 {strides = array<i32>} : memref<8x2x32xf32, #tpu.memory_space<vmem>>, vector<1x2x32xf32>,
    %c2_i32 = arith.constant 2 : i32
    %139 = arith.index_cast %c2_i32 : i32 to index
    %c0_73 = arith.constant 0 : index
    %c0_74 = arith.constant 0 : index
    %140 = vector.load %arg1[%139, %c0_73, %c0_74] : memref<8x2x16xf32, #tpu.memory_space<vmem>>, vector<1x2x16xf32>
    %141 = vector.shape_cast %140 : vector<1x2x16xf32> to vector<2x16xf32>
    %c0_75 = arith.constant 0 : index
    %c0_76 = arith.constant 0 : index
    %142 = vector.load %arg11[%c0_75, %c0_76] : memref<2x32xf32, #tpu.memory_space<vmem>>, vector<2x32xf32>
    %c0_77 = arith.constant 0 : index
    %c0_78 = arith.constant 0 : index
    %143 = vector.load %arg12[%c0_77, %c0_78] : memref<2x32xf32, #tpu.memory_space<vmem>>, vector<2x32xf32>
    %cst_79 = arith.constant dense<0.000000e+00> : vector<2x128xf32>
    %144 = tpu.matmul %141, %3, %cst_79 {dimension_numbers = #tpu.dot_dimension_numbers<[1], [0], [0], [1], [0, 0, 1, 1], [], []>} : vector<2x16xf32>, vector<16x128xf32>, vector<2x128xf32> -> vector<2x128xf32>
    %145 = vector.broadcast %7 : vector<1x128xf32> to vector<2x128xf32>
    %146 = arith.addf %144, %145 : vector<2x128xf32>
    %cst_80 = arith.constant dense<0.000000e+00> : vector<2x128xf32>
    %147 = tpu.matmul %142, %5, %cst_80 {dimension_numbers = #tpu.dot_dimension_numbers<[1], [0], [0], [1], [0, 0, 1, 1], [], []>} : vector<2x32xf32>, vector<32x128xf32>, vector<2x128xf32> -> vector<2x128xf32>
    %148 = arith.addf %146, %147 : vector<2x128xf32>
    %149 = vector.extract_strided_slice %148 {offsets = [0, 0], sizes = [2, 96], strides = [1, 1]} : vector<2x128xf32> to vector<2x96xf32>
    %150 = arith.negf %149 : vector<2x96xf32>
    %151 = math.exp %150 : vector<2x96xf32>
    %cst_81 = arith.constant 1.000000e+00 : f32
    %152 = vector.broadcast %cst_81 : f32 to vector<2x96xf32>
    %153 = arith.addf %152, %151 : vector<2x96xf32>
    %154 = arith.divf %152, %153 : vector<2x96xf32>
    %155 = vector.extract_strided_slice %154 {offsets = [0, 0], sizes = [2, 32], strides = [1, 1]} : vector<2x96xf32> to vector<2x32xf32>
    %156 = vector.extract_strided_slice %154 {offsets = [0, 32], sizes = [2, 32], strides = [1, 1]} : vector<2x96xf32> to vector<2x32xf32>
    %157 = vector.extract_strided_slice %154 {offsets = [0, 64], sizes = [2, 32], strides = [1, 1]} : vector<2x96xf32> to vector<2x32xf32>
    %158 = vector.extract_strided_slice %148 {offsets = [0, 96], sizes = [2, 32], strides = [1, 1]} : vector<2x128xf32> to vector<2x32xf32>
    %159 = math.tanh %158 : vector<2x32xf32>
    %160 = arith.mulf %156, %143 : vector<2x32xf32>
    %161 = arith.mulf %155, %159 : vector<2x32xf32>
    %162 = arith.addf %160, %161 : vector<2x32xf32>
    %163 = math.tanh %162 : vector<2x32xf32>
    %164 = arith.mulf %157, %163 : vector<2x32xf32>
    %c0_82 = arith.constant 0 : index
    %c0_83 = arith.constant 0 : index
    %165 = vector.load %arg11[%c0_82, %c0_83] : memref<2x32xf32, #tpu.memory_space<vmem>>, vector<2x32xf32>
    tpu.vector_store %arg11[%c0_82, %c0_83], %164 {strides = array<i32>} : memref<2x32xf32, #tpu.memory_space<vmem>>, vector<2x32xf32>,
    %c0_84 = arith.constant 0 : index
    %c0_85 = arith.constant 0 : index
    %166 = vector.load %arg12[%c0_84, %c0_85] : memref<2x32xf32, #tpu.memory_space<vmem>>, vector<2x32xf32>
    tpu.vector_store %arg12[%c0_84, %c0_85], %162 {strides = array<i32>} : memref<2x32xf32, #tpu.memory_space<vmem>>, vector<2x32xf32>,
    %167 = arith.index_cast %c2_i32 : i32 to index
    %c0_86 = arith.constant 0 : index
    %c0_87 = arith.constant 0 : index
    %168 = vector.load %arg9[%167, %c0_86, %c0_87] : memref<8x2x32xf32, #tpu.memory_space<vmem>>, vector<1x2x32xf32>
    %169 = vector.shape_cast %168 : vector<1x2x32xf32> to vector<2x32xf32>
    %170 = vector.shape_cast %164 : vector<2x32xf32> to vector<1x2x32xf32>
    tpu.vector_store %arg9[%167, %c0_86, %c0_87], %170 {strides = array<i32>} : memref<8x2x32xf32, #tpu.memory_space<vmem>>, vector<1x2x32xf32>,
    %c7_i32_88 = arith.constant 7 : i32
    %171 = arith.subi %c7_i32_88, %c2_i32 : i32
    %172 = arith.index_cast %171 : i32 to index
    %c0_89 = arith.constant 0 : index
    %c0_90 = arith.constant 0 : index
    %173 = vector.load %arg2[%172, %c0_89, %c0_90] : memref<8x2x16xf32, #tpu.memory_space<vmem>>, vector<1x2x16xf32>
    %174 = vector.shape_cast %173 : vector<1x2x16xf32> to vector<2x16xf32>
    %c0_91 = arith.constant 0 : index
    %c0_92 = arith.constant 0 : index
    %175 = vector.load %arg13[%c0_91, %c0_92] : memref<2x32xf32, #tpu.memory_space<vmem>>, vector<2x32xf32>
    %c0_93 = arith.constant 0 : index
    %c0_94 = arith.constant 0 : index
    %176 = vector.load %arg14[%c0_93, %c0_94] : memref<2x32xf32, #tpu.memory_space<vmem>>, vector<2x32xf32>
    %cst_95 = arith.constant dense<0.000000e+00> : vector<2x128xf32>
    %177 = tpu.matmul %174, %4, %cst_95 {dimension_numbers = #tpu.dot_dimension_numbers<[1], [0], [0], [1], [0, 0, 1, 1], [], []>} : vector<2x16xf32>, vector<16x128xf32>, vector<2x128xf32> -> vector<2x128xf32>
    %178 = vector.broadcast %8 : vector<1x128xf32> to vector<2x128xf32>
    %179 = arith.addf %177, %178 : vector<2x128xf32>
    %cst_96 = arith.constant dense<0.000000e+00> : vector<2x128xf32>
    %180 = tpu.matmul %175, %6, %cst_96 {dimension_numbers = #tpu.dot_dimension_numbers<[1], [0], [0], [1], [0, 0, 1, 1], [], []>} : vector<2x32xf32>, vector<32x128xf32>, vector<2x128xf32> -> vector<2x128xf32>
    %181 = arith.addf %179, %180 : vector<2x128xf32>
    %182 = vector.extract_strided_slice %181 {offsets = [0, 0], sizes = [2, 96], strides = [1, 1]} : vector<2x128xf32> to vector<2x96xf32>
    %183 = arith.negf %182 : vector<2x96xf32>
    %184 = math.exp %183 : vector<2x96xf32>
    %cst_97 = arith.constant 1.000000e+00 : f32
    %185 = vector.broadcast %cst_97 : f32 to vector<2x96xf32>
    %186 = arith.addf %185, %184 : vector<2x96xf32>
    %187 = arith.divf %185, %186 : vector<2x96xf32>
    %188 = vector.extract_strided_slice %187 {offsets = [0, 0], sizes = [2, 32], strides = [1, 1]} : vector<2x96xf32> to vector<2x32xf32>
    %189 = vector.extract_strided_slice %187 {offsets = [0, 32], sizes = [2, 32], strides = [1, 1]} : vector<2x96xf32> to vector<2x32xf32>
    %190 = vector.extract_strided_slice %187 {offsets = [0, 64], sizes = [2, 32], strides = [1, 1]} : vector<2x96xf32> to vector<2x32xf32>
    %191 = vector.extract_strided_slice %181 {offsets = [0, 96], sizes = [2, 32], strides = [1, 1]} : vector<2x128xf32> to vector<2x32xf32>
    %192 = math.tanh %191 : vector<2x32xf32>
    %193 = arith.mulf %189, %176 : vector<2x32xf32>
    %194 = arith.mulf %188, %192 : vector<2x32xf32>
    %195 = arith.addf %193, %194 : vector<2x32xf32>
    %196 = math.tanh %195 : vector<2x32xf32>
    %197 = arith.mulf %190, %196 : vector<2x32xf32>
    %c0_98 = arith.constant 0 : index
    %c0_99 = arith.constant 0 : index
    %198 = vector.load %arg13[%c0_98, %c0_99] : memref<2x32xf32, #tpu.memory_space<vmem>>, vector<2x32xf32>
    tpu.vector_store %arg13[%c0_98, %c0_99], %197 {strides = array<i32>} : memref<2x32xf32, #tpu.memory_space<vmem>>, vector<2x32xf32>,
    %c0_100 = arith.constant 0 : index
    %c0_101 = arith.constant 0 : index
    %199 = vector.load %arg14[%c0_100, %c0_101] : memref<2x32xf32, #tpu.memory_space<vmem>>, vector<2x32xf32>
    tpu.vector_store %arg14[%c0_100, %c0_101], %195 {strides = array<i32>} : memref<2x32xf32, #tpu.memory_space<vmem>>, vector<2x32xf32>,
    %200 = arith.index_cast %171 : i32 to index
    %c0_102 = arith.constant 0 : index
    %c0_103 = arith.constant 0 : index
    %201 = vector.load %arg10[%200, %c0_102, %c0_103] : memref<8x2x32xf32, #tpu.memory_space<vmem>>, vector<1x2x32xf32>
    %202 = vector.shape_cast %201 : vector<1x2x32xf32> to vector<2x32xf32>
    %203 = vector.shape_cast %197 : vector<2x32xf32> to vector<1x2x32xf32>
    tpu.vector_store %arg10[%200, %c0_102, %c0_103], %203 {strides = array<i32>} : memref<8x2x32xf32, #tpu.memory_space<vmem>>, vector<1x2x32xf32>,
    %c3_i32 = arith.constant 3 : i32
    %204 = arith.index_cast %c3_i32 : i32 to index
    %c0_104 = arith.constant 0 : index
    %c0_105 = arith.constant 0 : index
    %205 = vector.load %arg1[%204, %c0_104, %c0_105] : memref<8x2x16xf32, #tpu.memory_space<vmem>>, vector<1x2x16xf32>
    %206 = vector.shape_cast %205 : vector<1x2x16xf32> to vector<2x16xf32>
    %c0_106 = arith.constant 0 : index
    %c0_107 = arith.constant 0 : index
    %207 = vector.load %arg11[%c0_106, %c0_107] : memref<2x32xf32, #tpu.memory_space<vmem>>, vector<2x32xf32>
    %c0_108 = arith.constant 0 : index
    %c0_109 = arith.constant 0 : index
    %208 = vector.load %arg12[%c0_108, %c0_109] : memref<2x32xf32, #tpu.memory_space<vmem>>, vector<2x32xf32>
    %cst_110 = arith.constant dense<0.000000e+00> : vector<2x128xf32>
    %209 = tpu.matmul %206, %3, %cst_110 {dimension_numbers = #tpu.dot_dimension_numbers<[1], [0], [0], [1], [0, 0, 1, 1], [], []>} : vector<2x16xf32>, vector<16x128xf32>, vector<2x128xf32> -> vector<2x128xf32>
    %210 = vector.broadcast %7 : vector<1x128xf32> to vector<2x128xf32>
    %211 = arith.addf %209, %210 : vector<2x128xf32>
    %cst_111 = arith.constant dense<0.000000e+00> : vector<2x128xf32>
    %212 = tpu.matmul %207, %5, %cst_111 {dimension_numbers = #tpu.dot_dimension_numbers<[1], [0], [0], [1], [0, 0, 1, 1], [], []>} : vector<2x32xf32>, vector<32x128xf32>, vector<2x128xf32> -> vector<2x128xf32>
    %213 = arith.addf %211, %212 : vector<2x128xf32>
    %214 = vector.extract_strided_slice %213 {offsets = [0, 0], sizes = [2, 96], strides = [1, 1]} : vector<2x128xf32> to vector<2x96xf32>
    %215 = arith.negf %214 : vector<2x96xf32>
    %216 = math.exp %215 : vector<2x96xf32>
    %cst_112 = arith.constant 1.000000e+00 : f32
    %217 = vector.broadcast %cst_112 : f32 to vector<2x96xf32>
    %218 = arith.addf %217, %216 : vector<2x96xf32>
    %219 = arith.divf %217, %218 : vector<2x96xf32>
    %220 = vector.extract_strided_slice %219 {offsets = [0, 0], sizes = [2, 32], strides = [1, 1]} : vector<2x96xf32> to vector<2x32xf32>
    %221 = vector.extract_strided_slice %219 {offsets = [0, 32], sizes = [2, 32], strides = [1, 1]} : vector<2x96xf32> to vector<2x32xf32>
    %222 = vector.extract_strided_slice %219 {offsets = [0, 64], sizes = [2, 32], strides = [1, 1]} : vector<2x96xf32> to vector<2x32xf32>
    %223 = vector.extract_strided_slice %213 {offsets = [0, 96], sizes = [2, 32], strides = [1, 1]} : vector<2x128xf32> to vector<2x32xf32>
    %224 = math.tanh %223 : vector<2x32xf32>
    %225 = arith.mulf %221, %208 : vector<2x32xf32>
    %226 = arith.mulf %220, %224 : vector<2x32xf32>
    %227 = arith.addf %225, %226 : vector<2x32xf32>
    %228 = math.tanh %227 : vector<2x32xf32>
    %229 = arith.mulf %222, %228 : vector<2x32xf32>
    %c0_113 = arith.constant 0 : index
    %c0_114 = arith.constant 0 : index
    %230 = vector.load %arg11[%c0_113, %c0_114] : memref<2x32xf32, #tpu.memory_space<vmem>>, vector<2x32xf32>
    tpu.vector_store %arg11[%c0_113, %c0_114], %229 {strides = array<i32>} : memref<2x32xf32, #tpu.memory_space<vmem>>, vector<2x32xf32>,
    %c0_115 = arith.constant 0 : index
    %c0_116 = arith.constant 0 : index
    %231 = vector.load %arg12[%c0_115, %c0_116] : memref<2x32xf32, #tpu.memory_space<vmem>>, vector<2x32xf32>
    tpu.vector_store %arg12[%c0_115, %c0_116], %227 {strides = array<i32>} : memref<2x32xf32, #tpu.memory_space<vmem>>, vector<2x32xf32>,
    %232 = arith.index_cast %c3_i32 : i32 to index
    %c0_117 = arith.constant 0 : index
    %c0_118 = arith.constant 0 : index
    %233 = vector.load %arg9[%232, %c0_117, %c0_118] : memref<8x2x32xf32, #tpu.memory_space<vmem>>, vector<1x2x32xf32>
    %234 = vector.shape_cast %233 : vector<1x2x32xf32> to vector<2x32xf32>
    %235 = vector.shape_cast %229 : vector<2x32xf32> to vector<1x2x32xf32>
    tpu.vector_store %arg9[%232, %c0_117, %c0_118], %235 {strides = array<i32>} : memref<8x2x32xf32, #tpu.memory_space<vmem>>, vector<1x2x32xf32>,
    %c7_i32_119 = arith.constant 7 : i32
    %236 = arith.subi %c7_i32_119, %c3_i32 : i32
    %237 = arith.index_cast %236 : i32 to index
    %c0_120 = arith.constant 0 : index
    %c0_121 = arith.constant 0 : index
    %238 = vector.load %arg2[%237, %c0_120, %c0_121] : memref<8x2x16xf32, #tpu.memory_space<vmem>>, vector<1x2x16xf32>
    %239 = vector.shape_cast %238 : vector<1x2x16xf32> to vector<2x16xf32>
    %c0_122 = arith.constant 0 : index
    %c0_123 = arith.constant 0 : index
    %240 = vector.load %arg13[%c0_122, %c0_123] : memref<2x32xf32, #tpu.memory_space<vmem>>, vector<2x32xf32>
    %c0_124 = arith.constant 0 : index
    %c0_125 = arith.constant 0 : index
    %241 = vector.load %arg14[%c0_124, %c0_125] : memref<2x32xf32, #tpu.memory_space<vmem>>, vector<2x32xf32>
    %cst_126 = arith.constant dense<0.000000e+00> : vector<2x128xf32>
    %242 = tpu.matmul %239, %4, %cst_126 {dimension_numbers = #tpu.dot_dimension_numbers<[1], [0], [0], [1], [0, 0, 1, 1], [], []>} : vector<2x16xf32>, vector<16x128xf32>, vector<2x128xf32> -> vector<2x128xf32>
    %243 = vector.broadcast %8 : vector<1x128xf32> to vector<2x128xf32>
    %244 = arith.addf %242, %243 : vector<2x128xf32>
    %cst_127 = arith.constant dense<0.000000e+00> : vector<2x128xf32>
    %245 = tpu.matmul %240, %6, %cst_127 {dimension_numbers = #tpu.dot_dimension_numbers<[1], [0], [0], [1], [0, 0, 1, 1], [], []>} : vector<2x32xf32>, vector<32x128xf32>, vector<2x128xf32> -> vector<2x128xf32>
    %246 = arith.addf %244, %245 : vector<2x128xf32>
    %247 = vector.extract_strided_slice %246 {offsets = [0, 0], sizes = [2, 96], strides = [1, 1]} : vector<2x128xf32> to vector<2x96xf32>
    %248 = arith.negf %247 : vector<2x96xf32>
    %249 = math.exp %248 : vector<2x96xf32>
    %cst_128 = arith.constant 1.000000e+00 : f32
    %250 = vector.broadcast %cst_128 : f32 to vector<2x96xf32>
    %251 = arith.addf %250, %249 : vector<2x96xf32>
    %252 = arith.divf %250, %251 : vector<2x96xf32>
    %253 = vector.extract_strided_slice %252 {offsets = [0, 0], sizes = [2, 32], strides = [1, 1]} : vector<2x96xf32> to vector<2x32xf32>
    %254 = vector.extract_strided_slice %252 {offsets = [0, 32], sizes = [2, 32], strides = [1, 1]} : vector<2x96xf32> to vector<2x32xf32>
    %255 = vector.extract_strided_slice %252 {offsets = [0, 64], sizes = [2, 32], strides = [1, 1]} : vector<2x96xf32> to vector<2x32xf32>
    %256 = vector.extract_strided_slice %246 {offsets = [0, 96], sizes = [2, 32], strides = [1, 1]} : vector<2x128xf32> to vector<2x32xf32>
    %257 = math.tanh %256 : vector<2x32xf32>
    %258 = arith.mulf %254, %241 : vector<2x32xf32>
    %259 = arith.mulf %253, %257 : vector<2x32xf32>
    %260 = arith.addf %258, %259 : vector<2x32xf32>
    %261 = math.tanh %260 : vector<2x32xf32>
    %262 = arith.mulf %255, %261 : vector<2x32xf32>
    %c0_129 = arith.constant 0 : index
    %c0_130 = arith.constant 0 : index
    %263 = vector.load %arg13[%c0_129, %c0_130] : memref<2x32xf32, #tpu.memory_space<vmem>>, vector<2x32xf32>
    tpu.vector_store %arg13[%c0_129, %c0_130], %262 {strides = array<i32>} : memref<2x32xf32, #tpu.memory_space<vmem>>, vector<2x32xf32>,
    %c0_131 = arith.constant 0 : index
    %c0_132 = arith.constant 0 : index
    %264 = vector.load %arg14[%c0_131, %c0_132] : memref<2x32xf32, #tpu.memory_space<vmem>>, vector<2x32xf32>
    tpu.vector_store %arg14[%c0_131, %c0_132], %260 {strides = array<i32>} : memref<2x32xf32, #tpu.memory_space<vmem>>, vector<2x32xf32>,
    %265 = arith.index_cast %236 : i32 to index
    %c0_133 = arith.constant 0 : index
    %c0_134 = arith.constant 0 : index
    %266 = vector.load %arg10[%265, %c0_133, %c0_134] : memref<8x2x32xf32, #tpu.memory_space<vmem>>, vector<1x2x32xf32>
    %267 = vector.shape_cast %266 : vector<1x2x32xf32> to vector<2x32xf32>
    %268 = vector.shape_cast %262 : vector<2x32xf32> to vector<1x2x32xf32>
    tpu.vector_store %arg10[%265, %c0_133, %c0_134], %268 {strides = array<i32>} : memref<8x2x32xf32, #tpu.memory_space<vmem>>, vector<1x2x32xf32>,
    %c4_i32 = arith.constant 4 : i32
    %269 = arith.index_cast %c4_i32 : i32 to index
    %c0_135 = arith.constant 0 : index
    %c0_136 = arith.constant 0 : index
    %270 = vector.load %arg1[%269, %c0_135, %c0_136] : memref<8x2x16xf32, #tpu.memory_space<vmem>>, vector<1x2x16xf32>
    %271 = vector.shape_cast %270 : vector<1x2x16xf32> to vector<2x16xf32>
    %c0_137 = arith.constant 0 : index
    %c0_138 = arith.constant 0 : index
    %272 = vector.load %arg11[%c0_137, %c0_138] : memref<2x32xf32, #tpu.memory_space<vmem>>, vector<2x32xf32>
    %c0_139 = arith.constant 0 : index
    %c0_140 = arith.constant 0 : index
    %273 = vector.load %arg12[%c0_139, %c0_140] : memref<2x32xf32, #tpu.memory_space<vmem>>, vector<2x32xf32>
    %cst_141 = arith.constant dense<0.000000e+00> : vector<2x128xf32>
    %274 = tpu.matmul %271, %3, %cst_141 {dimension_numbers = #tpu.dot_dimension_numbers<[1], [0], [0], [1], [0, 0, 1, 1], [], []>} : vector<2x16xf32>, vector<16x128xf32>, vector<2x128xf32> -> vector<2x128xf32>
    %275 = vector.broadcast %7 : vector<1x128xf32> to vector<2x128xf32>
    %276 = arith.addf %274, %275 : vector<2x128xf32>
    %cst_142 = arith.constant dense<0.000000e+00> : vector<2x128xf32>
    %277 = tpu.matmul %272, %5, %cst_142 {dimension_numbers = #tpu.dot_dimension_numbers<[1], [0], [0], [1], [0, 0, 1, 1], [], []>} : vector<2x32xf32>, vector<32x128xf32>, vector<2x128xf32> -> vector<2x128xf32>
    %278 = arith.addf %276, %277 : vector<2x128xf32>
    %279 = vector.extract_strided_slice %278 {offsets = [0, 0], sizes = [2, 96], strides = [1, 1]} : vector<2x128xf32> to vector<2x96xf32>
    %280 = arith.negf %279 : vector<2x96xf32>
    %281 = math.exp %280 : vector<2x96xf32>
    %cst_143 = arith.constant 1.000000e+00 : f32
    %282 = vector.broadcast %cst_143 : f32 to vector<2x96xf32>
    %283 = arith.addf %282, %281 : vector<2x96xf32>
    %284 = arith.divf %282, %283 : vector<2x96xf32>
    %285 = vector.extract_strided_slice %284 {offsets = [0, 0], sizes = [2, 32], strides = [1, 1]} : vector<2x96xf32> to vector<2x32xf32>
    %286 = vector.extract_strided_slice %284 {offsets = [0, 32], sizes = [2, 32], strides = [1, 1]} : vector<2x96xf32> to vector<2x32xf32>
    %287 = vector.extract_strided_slice %284 {offsets = [0, 64], sizes = [2, 32], strides = [1, 1]} : vector<2x96xf32> to vector<2x32xf32>
    %288 = vector.extract_strided_slice %278 {offsets = [0, 96], sizes = [2, 32], strides = [1, 1]} : vector<2x128xf32> to vector<2x32xf32>
    %289 = math.tanh %288 : vector<2x32xf32>
    %290 = arith.mulf %286, %273 : vector<2x32xf32>
    %291 = arith.mulf %285, %289 : vector<2x32xf32>
    %292 = arith.addf %290, %291 : vector<2x32xf32>
    %293 = math.tanh %292 : vector<2x32xf32>
    %294 = arith.mulf %287, %293 : vector<2x32xf32>
    %c0_144 = arith.constant 0 : index
    %c0_145 = arith.constant 0 : index
    %295 = vector.load %arg11[%c0_144, %c0_145] : memref<2x32xf32, #tpu.memory_space<vmem>>, vector<2x32xf32>
    tpu.vector_store %arg11[%c0_144, %c0_145], %294 {strides = array<i32>} : memref<2x32xf32, #tpu.memory_space<vmem>>, vector<2x32xf32>,
    %c0_146 = arith.constant 0 : index
    %c0_147 = arith.constant 0 : index
    %296 = vector.load %arg12[%c0_146, %c0_147] : memref<2x32xf32, #tpu.memory_space<vmem>>, vector<2x32xf32>
    tpu.vector_store %arg12[%c0_146, %c0_147], %292 {strides = array<i32>} : memref<2x32xf32, #tpu.memory_space<vmem>>, vector<2x32xf32>,
    %297 = arith.index_cast %c4_i32 : i32 to index
    %c0_148 = arith.constant 0 : index
    %c0_149 = arith.constant 0 : index
    %298 = vector.load %arg9[%297, %c0_148, %c0_149] : memref<8x2x32xf32, #tpu.memory_space<vmem>>, vector<1x2x32xf32>
    %299 = vector.shape_cast %298 : vector<1x2x32xf32> to vector<2x32xf32>
    %300 = vector.shape_cast %294 : vector<2x32xf32> to vector<1x2x32xf32>
    tpu.vector_store %arg9[%297, %c0_148, %c0_149], %300 {strides = array<i32>} : memref<8x2x32xf32, #tpu.memory_space<vmem>>, vector<1x2x32xf32>,
    %c7_i32_150 = arith.constant 7 : i32
    %301 = arith.subi %c7_i32_150, %c4_i32 : i32
    %302 = arith.index_cast %301 : i32 to index
    %c0_151 = arith.constant 0 : index
    %c0_152 = arith.constant 0 : index
    %303 = vector.load %arg2[%302, %c0_151, %c0_152] : memref<8x2x16xf32, #tpu.memory_space<vmem>>, vector<1x2x16xf32>
    %304 = vector.shape_cast %303 : vector<1x2x16xf32> to vector<2x16xf32>
    %c0_153 = arith.constant 0 : index
    %c0_154 = arith.constant 0 : index
    %305 = vector.load %arg13[%c0_153, %c0_154] : memref<2x32xf32, #tpu.memory_space<vmem>>, vector<2x32xf32>
    %c0_155 = arith.constant 0 : index
    %c0_156 = arith.constant 0 : index
    %306 = vector.load %arg14[%c0_155, %c0_156] : memref<2x32xf32, #tpu.memory_space<vmem>>, vector<2x32xf32>
    %cst_157 = arith.constant dense<0.000000e+00> : vector<2x128xf32>
    %307 = tpu.matmul %304, %4, %cst_157 {dimension_numbers = #tpu.dot_dimension_numbers<[1], [0], [0], [1], [0, 0, 1, 1], [], []>} : vector<2x16xf32>, vector<16x128xf32>, vector<2x128xf32> -> vector<2x128xf32>
    %308 = vector.broadcast %8 : vector<1x128xf32> to vector<2x128xf32>
    %309 = arith.addf %307, %308 : vector<2x128xf32>
    %cst_158 = arith.constant dense<0.000000e+00> : vector<2x128xf32>
    %310 = tpu.matmul %305, %6, %cst_158 {dimension_numbers = #tpu.dot_dimension_numbers<[1], [0], [0], [1], [0, 0, 1, 1], [], []>} : vector<2x32xf32>, vector<32x128xf32>, vector<2x128xf32> -> vector<2x128xf32>
    %311 = arith.addf %309, %310 : vector<2x128xf32>
    %312 = vector.extract_strided_slice %311 {offsets = [0, 0], sizes = [2, 96], strides = [1, 1]} : vector<2x128xf32> to vector<2x96xf32>
    %313 = arith.negf %312 : vector<2x96xf32>
    %314 = math.exp %313 : vector<2x96xf32>
    %cst_159 = arith.constant 1.000000e+00 : f32
    %315 = vector.broadcast %cst_159 : f32 to vector<2x96xf32>
    %316 = arith.addf %315, %314 : vector<2x96xf32>
    %317 = arith.divf %315, %316 : vector<2x96xf32>
    %318 = vector.extract_strided_slice %317 {offsets = [0, 0], sizes = [2, 32], strides = [1, 1]} : vector<2x96xf32> to vector<2x32xf32>
    %319 = vector.extract_strided_slice %317 {offsets = [0, 32], sizes = [2, 32], strides = [1, 1]} : vector<2x96xf32> to vector<2x32xf32>
    %320 = vector.extract_strided_slice %317 {offsets = [0, 64], sizes = [2, 32], strides = [1, 1]} : vector<2x96xf32> to vector<2x32xf32>
    %321 = vector.extract_strided_slice %311 {offsets = [0, 96], sizes = [2, 32], strides = [1, 1]} : vector<2x128xf32> to vector<2x32xf32>
    %322 = math.tanh %321 : vector<2x32xf32>
    %323 = arith.mulf %319, %306 : vector<2x32xf32>
    %324 = arith.mulf %318, %322 : vector<2x32xf32>
    %325 = arith.addf %323, %324 : vector<2x32xf32>
    %326 = math.tanh %325 : vector<2x32xf32>
    %327 = arith.mulf %320, %326 : vector<2x32xf32>
    %c0_160 = arith.constant 0 : index
    %c0_161 = arith.constant 0 : index
    %328 = vector.load %arg13[%c0_160, %c0_161] : memref<2x32xf32, #tpu.memory_space<vmem>>, vector<2x32xf32>
    tpu.vector_store %arg13[%c0_160, %c0_161], %327 {strides = array<i32>} : memref<2x32xf32, #tpu.memory_space<vmem>>, vector<2x32xf32>,
    %c0_162 = arith.constant 0 : index
    %c0_163 = arith.constant 0 : index
    %329 = vector.load %arg14[%c0_162, %c0_163] : memref<2x32xf32, #tpu.memory_space<vmem>>, vector<2x32xf32>
    tpu.vector_store %arg14[%c0_162, %c0_163], %325 {strides = array<i32>} : memref<2x32xf32, #tpu.memory_space<vmem>>, vector<2x32xf32>,
    %330 = arith.index_cast %301 : i32 to index
    %c0_164 = arith.constant 0 : index
    %c0_165 = arith.constant 0 : index
    %331 = vector.load %arg10[%330, %c0_164, %c0_165] : memref<8x2x32xf32, #tpu.memory_space<vmem>>, vector<1x2x32xf32>
    %332 = vector.shape_cast %331 : vector<1x2x32xf32> to vector<2x32xf32>
    %333 = vector.shape_cast %327 : vector<2x32xf32> to vector<1x2x32xf32>
    tpu.vector_store %arg10[%330, %c0_164, %c0_165], %333 {strides = array<i32>} : memref<8x2x32xf32, #tpu.memory_space<vmem>>, vector<1x2x32xf32>,
    %c5_i32 = arith.constant 5 : i32
    %334 = arith.index_cast %c5_i32 : i32 to index
    %c0_166 = arith.constant 0 : index
    %c0_167 = arith.constant 0 : index
    %335 = vector.load %arg1[%334, %c0_166, %c0_167] : memref<8x2x16xf32, #tpu.memory_space<vmem>>, vector<1x2x16xf32>
    %336 = vector.shape_cast %335 : vector<1x2x16xf32> to vector<2x16xf32>
    %c0_168 = arith.constant 0 : index
    %c0_169 = arith.constant 0 : index
    %337 = vector.load %arg11[%c0_168, %c0_169] : memref<2x32xf32, #tpu.memory_space<vmem>>, vector<2x32xf32>
    %c0_170 = arith.constant 0 : index
    %c0_171 = arith.constant 0 : index
    %338 = vector.load %arg12[%c0_170, %c0_171] : memref<2x32xf32, #tpu.memory_space<vmem>>, vector<2x32xf32>
    %cst_172 = arith.constant dense<0.000000e+00> : vector<2x128xf32>
    %339 = tpu.matmul %336, %3, %cst_172 {dimension_numbers = #tpu.dot_dimension_numbers<[1], [0], [0], [1], [0, 0, 1, 1], [], []>} : vector<2x16xf32>, vector<16x128xf32>, vector<2x128xf32> -> vector<2x128xf32>
    %340 = vector.broadcast %7 : vector<1x128xf32> to vector<2x128xf32>
    %341 = arith.addf %339, %340 : vector<2x128xf32>
    %cst_173 = arith.constant dense<0.000000e+00> : vector<2x128xf32>
    %342 = tpu.matmul %337, %5, %cst_173 {dimension_numbers = #tpu.dot_dimension_numbers<[1], [0], [0], [1], [0, 0, 1, 1], [], []>} : vector<2x32xf32>, vector<32x128xf32>, vector<2x128xf32> -> vector<2x128xf32>
    %343 = arith.addf %341, %342 : vector<2x128xf32>
    %344 = vector.extract_strided_slice %343 {offsets = [0, 0], sizes = [2, 96], strides = [1, 1]} : vector<2x128xf32> to vector<2x96xf32>
    %345 = arith.negf %344 : vector<2x96xf32>
    %346 = math.exp %345 : vector<2x96xf32>
    %cst_174 = arith.constant 1.000000e+00 : f32
    %347 = vector.broadcast %cst_174 : f32 to vector<2x96xf32>
    %348 = arith.addf %347, %346 : vector<2x96xf32>
    %349 = arith.divf %347, %348 : vector<2x96xf32>
    %350 = vector.extract_strided_slice %349 {offsets = [0, 0], sizes = [2, 32], strides = [1, 1]} : vector<2x96xf32> to vector<2x32xf32>
    %351 = vector.extract_strided_slice %349 {offsets = [0, 32], sizes = [2, 32], strides = [1, 1]} : vector<2x96xf32> to vector<2x32xf32>
    %352 = vector.extract_strided_slice %349 {offsets = [0, 64], sizes = [2, 32], strides = [1, 1]} : vector<2x96xf32> to vector<2x32xf32>
    %353 = vector.extract_strided_slice %343 {offsets = [0, 96], sizes = [2, 32], strides = [1, 1]} : vector<2x128xf32> to vector<2x32xf32>
    %354 = math.tanh %353 : vector<2x32xf32>
    %355 = arith.mulf %351, %338 : vector<2x32xf32>
    %356 = arith.mulf %350, %354 : vector<2x32xf32>
    %357 = arith.addf %355, %356 : vector<2x32xf32>
    %358 = math.tanh %357 : vector<2x32xf32>
    %359 = arith.mulf %352, %358 : vector<2x32xf32>
    %c0_175 = arith.constant 0 : index
    %c0_176 = arith.constant 0 : index
    %360 = vector.load %arg11[%c0_175, %c0_176] : memref<2x32xf32, #tpu.memory_space<vmem>>, vector<2x32xf32>
    tpu.vector_store %arg11[%c0_175, %c0_176], %359 {strides = array<i32>} : memref<2x32xf32, #tpu.memory_space<vmem>>, vector<2x32xf32>,
    %c0_177 = arith.constant 0 : index
    %c0_178 = arith.constant 0 : index
    %361 = vector.load %arg12[%c0_177, %c0_178] : memref<2x32xf32, #tpu.memory_space<vmem>>, vector<2x32xf32>
    tpu.vector_store %arg12[%c0_177, %c0_178], %357 {strides = array<i32>} : memref<2x32xf32, #tpu.memory_space<vmem>>, vector<2x32xf32>,
    %362 = arith.index_cast %c5_i32 : i32 to index
    %c0_179 = arith.constant 0 : index
    %c0_180 = arith.constant 0 : index
    %363 = vector.load %arg9[%362, %c0_179, %c0_180] : memref<8x2x32xf32, #tpu.memory_space<vmem>>, vector<1x2x32xf32>
    %364 = vector.shape_cast %363 : vector<1x2x32xf32> to vector<2x32xf32>
    %365 = vector.shape_cast %359 : vector<2x32xf32> to vector<1x2x32xf32>
    tpu.vector_store %arg9[%362, %c0_179, %c0_180], %365 {strides = array<i32>} : memref<8x2x32xf32, #tpu.memory_space<vmem>>, vector<1x2x32xf32>,
    %c7_i32_181 = arith.constant 7 : i32
    %366 = arith.subi %c7_i32_181, %c5_i32 : i32
    %367 = arith.index_cast %366 : i32 to index
    %c0_182 = arith.constant 0 : index
    %c0_183 = arith.constant 0 : index
    %368 = vector.load %arg2[%367, %c0_182, %c0_183] : memref<8x2x16xf32, #tpu.memory_space<vmem>>, vector<1x2x16xf32>
    %369 = vector.shape_cast %368 : vector<1x2x16xf32> to vector<2x16xf32>
    %c0_184 = arith.constant 0 : index
    %c0_185 = arith.constant 0 : index
    %370 = vector.load %arg13[%c0_184, %c0_185] : memref<2x32xf32, #tpu.memory_space<vmem>>, vector<2x32xf32>
    %c0_186 = arith.constant 0 : index
    %c0_187 = arith.constant 0 : index
    %371 = vector.load %arg14[%c0_186, %c0_187] : memref<2x32xf32, #tpu.memory_space<vmem>>, vector<2x32xf32>
    %cst_188 = arith.constant dense<0.000000e+00> : vector<2x128xf32>
    %372 = tpu.matmul %369, %4, %cst_188 {dimension_numbers = #tpu.dot_dimension_numbers<[1], [0], [0], [1], [0, 0, 1, 1], [], []>} : vector<2x16xf32>, vector<16x128xf32>, vector<2x128xf32> -> vector<2x128xf32>
    %373 = vector.broadcast %8 : vector<1x128xf32> to vector<2x128xf32>
    %374 = arith.addf %372, %373 : vector<2x128xf32>
    %cst_189 = arith.constant dense<0.000000e+00> : vector<2x128xf32>
    %375 = tpu.matmul %370, %6, %cst_189 {dimension_numbers = #tpu.dot_dimension_numbers<[1], [0], [0], [1], [0, 0, 1, 1], [], []>} : vector<2x32xf32>, vector<32x128xf32>, vector<2x128xf32> -> vector<2x128xf32>
    %376 = arith.addf %374, %375 : vector<2x128xf32>
    %377 = vector.extract_strided_slice %376 {offsets = [0, 0], sizes = [2, 96], strides = [1, 1]} : vector<2x128xf32> to vector<2x96xf32>
    %378 = arith.negf %377 : vector<2x96xf32>
    %379 = math.exp %378 : vector<2x96xf32>
    %cst_190 = arith.constant 1.000000e+00 : f32
    %380 = vector.broadcast %cst_190 : f32 to vector<2x96xf32>
    %381 = arith.addf %380, %379 : vector<2x96xf32>
    %382 = arith.divf %380, %381 : vector<2x96xf32>
    %383 = vector.extract_strided_slice %382 {offsets = [0, 0], sizes = [2, 32], strides = [1, 1]} : vector<2x96xf32> to vector<2x32xf32>
    %384 = vector.extract_strided_slice %382 {offsets = [0, 32], sizes = [2, 32], strides = [1, 1]} : vector<2x96xf32> to vector<2x32xf32>
    %385 = vector.extract_strided_slice %382 {offsets = [0, 64], sizes = [2, 32], strides = [1, 1]} : vector<2x96xf32> to vector<2x32xf32>
    %386 = vector.extract_strided_slice %376 {offsets = [0, 96], sizes = [2, 32], strides = [1, 1]} : vector<2x128xf32> to vector<2x32xf32>
    %387 = math.tanh %386 : vector<2x32xf32>
    %388 = arith.mulf %384, %371 : vector<2x32xf32>
    %389 = arith.mulf %383, %387 : vector<2x32xf32>
    %390 = arith.addf %388, %389 : vector<2x32xf32>
    %391 = math.tanh %390 : vector<2x32xf32>
    %392 = arith.mulf %385, %391 : vector<2x32xf32>
    %c0_191 = arith.constant 0 : index
    %c0_192 = arith.constant 0 : index
    %393 = vector.load %arg13[%c0_191, %c0_192] : memref<2x32xf32, #tpu.memory_space<vmem>>, vector<2x32xf32>
    tpu.vector_store %arg13[%c0_191, %c0_192], %392 {strides = array<i32>} : memref<2x32xf32, #tpu.memory_space<vmem>>, vector<2x32xf32>,
    %c0_193 = arith.constant 0 : index
    %c0_194 = arith.constant 0 : index
    %394 = vector.load %arg14[%c0_193, %c0_194] : memref<2x32xf32, #tpu.memory_space<vmem>>, vector<2x32xf32>
    tpu.vector_store %arg14[%c0_193, %c0_194], %390 {strides = array<i32>} : memref<2x32xf32, #tpu.memory_space<vmem>>, vector<2x32xf32>,
    %395 = arith.index_cast %366 : i32 to index
    %c0_195 = arith.constant 0 : index
    %c0_196 = arith.constant 0 : index
    %396 = vector.load %arg10[%395, %c0_195, %c0_196] : memref<8x2x32xf32, #tpu.memory_space<vmem>>, vector<1x2x32xf32>
    %397 = vector.shape_cast %396 : vector<1x2x32xf32> to vector<2x32xf32>
    %398 = vector.shape_cast %392 : vector<2x32xf32> to vector<1x2x32xf32>
    tpu.vector_store %arg10[%395, %c0_195, %c0_196], %398 {strides = array<i32>} : memref<8x2x32xf32, #tpu.memory_space<vmem>>, vector<1x2x32xf32>,
    %c6_i32 = arith.constant 6 : i32
    %399 = arith.index_cast %c6_i32 : i32 to index
    %c0_197 = arith.constant 0 : index
    %c0_198 = arith.constant 0 : index
    %400 = vector.load %arg1[%399, %c0_197, %c0_198] : memref<8x2x16xf32, #tpu.memory_space<vmem>>, vector<1x2x16xf32>
    %401 = vector.shape_cast %400 : vector<1x2x16xf32> to vector<2x16xf32>
    %c0_199 = arith.constant 0 : index
    %c0_200 = arith.constant 0 : index
    %402 = vector.load %arg11[%c0_199, %c0_200] : memref<2x32xf32, #tpu.memory_space<vmem>>, vector<2x32xf32>
    %c0_201 = arith.constant 0 : index
    %c0_202 = arith.constant 0 : index
    %403 = vector.load %arg12[%c0_201, %c0_202] : memref<2x32xf32, #tpu.memory_space<vmem>>, vector<2x32xf32>
    %cst_203 = arith.constant dense<0.000000e+00> : vector<2x128xf32>
    %404 = tpu.matmul %401, %3, %cst_203 {dimension_numbers = #tpu.dot_dimension_numbers<[1], [0], [0], [1], [0, 0, 1, 1], [], []>} : vector<2x16xf32>, vector<16x128xf32>, vector<2x128xf32> -> vector<2x128xf32>
    %405 = vector.broadcast %7 : vector<1x128xf32> to vector<2x128xf32>
    %406 = arith.addf %404, %405 : vector<2x128xf32>
    %cst_204 = arith.constant dense<0.000000e+00> : vector<2x128xf32>
    %407 = tpu.matmul %402, %5, %cst_204 {dimension_numbers = #tpu.dot_dimension_numbers<[1], [0], [0], [1], [0, 0, 1, 1], [], []>} : vector<2x32xf32>, vector<32x128xf32>, vector<2x128xf32> -> vector<2x128xf32>
    %408 = arith.addf %406, %407 : vector<2x128xf32>
    %409 = vector.extract_strided_slice %408 {offsets = [0, 0], sizes = [2, 96], strides = [1, 1]} : vector<2x128xf32> to vector<2x96xf32>
    %410 = arith.negf %409 : vector<2x96xf32>
    %411 = math.exp %410 : vector<2x96xf32>
    %cst_205 = arith.constant 1.000000e+00 : f32
    %412 = vector.broadcast %cst_205 : f32 to vector<2x96xf32>
    %413 = arith.addf %412, %411 : vector<2x96xf32>
    %414 = arith.divf %412, %413 : vector<2x96xf32>
    %415 = vector.extract_strided_slice %414 {offsets = [0, 0], sizes = [2, 32], strides = [1, 1]} : vector<2x96xf32> to vector<2x32xf32>
    %416 = vector.extract_strided_slice %414 {offsets = [0, 32], sizes = [2, 32], strides = [1, 1]} : vector<2x96xf32> to vector<2x32xf32>
    %417 = vector.extract_strided_slice %414 {offsets = [0, 64], sizes = [2, 32], strides = [1, 1]} : vector<2x96xf32> to vector<2x32xf32>
    %418 = vector.extract_strided_slice %408 {offsets = [0, 96], sizes = [2, 32], strides = [1, 1]} : vector<2x128xf32> to vector<2x32xf32>
    %419 = math.tanh %418 : vector<2x32xf32>
    %420 = arith.mulf %416, %403 : vector<2x32xf32>
    %421 = arith.mulf %415, %419 : vector<2x32xf32>
    %422 = arith.addf %420, %421 : vector<2x32xf32>
    %423 = math.tanh %422 : vector<2x32xf32>
    %424 = arith.mulf %417, %423 : vector<2x32xf32>
    %c0_206 = arith.constant 0 : index
    %c0_207 = arith.constant 0 : index
    %425 = vector.load %arg11[%c0_206, %c0_207] : memref<2x32xf32, #tpu.memory_space<vmem>>, vector<2x32xf32>
    tpu.vector_store %arg11[%c0_206, %c0_207], %424 {strides = array<i32>} : memref<2x32xf32, #tpu.memory_space<vmem>>, vector<2x32xf32>,
    %c0_208 = arith.constant 0 : index
    %c0_209 = arith.constant 0 : index
    %426 = vector.load %arg12[%c0_208, %c0_209] : memref<2x32xf32, #tpu.memory_space<vmem>>, vector<2x32xf32>
    tpu.vector_store %arg12[%c0_208, %c0_209], %422 {strides = array<i32>} : memref<2x32xf32, #tpu.memory_space<vmem>>, vector<2x32xf32>,
    %427 = arith.index_cast %c6_i32 : i32 to index
    %c0_210 = arith.constant 0 : index
    %c0_211 = arith.constant 0 : index
    %428 = vector.load %arg9[%427, %c0_210, %c0_211] : memref<8x2x32xf32, #tpu.memory_space<vmem>>, vector<1x2x32xf32>
    %429 = vector.shape_cast %428 : vector<1x2x32xf32> to vector<2x32xf32>
    %430 = vector.shape_cast %424 : vector<2x32xf32> to vector<1x2x32xf32>
    tpu.vector_store %arg9[%427, %c0_210, %c0_211], %430 {strides = array<i32>} : memref<8x2x32xf32, #tpu.memory_space<vmem>>, vector<1x2x32xf32>,
    %c7_i32_212 = arith.constant 7 : i32
    %431 = arith.subi %c7_i32_212, %c6_i32 : i32
    %432 = arith.index_cast %431 : i32 to index
    %c0_213 = arith.constant 0 : index
    %c0_214 = arith.constant 0 : index
    %433 = vector.load %arg2[%432, %c0_213, %c0_214] : memref<8x2x16xf32, #tpu.memory_space<vmem>>, vector<1x2x16xf32>
    %434 = vector.shape_cast %433 : vector<1x2x16xf32> to vector<2x16xf32>
    %c0_215 = arith.constant 0 : index
    %c0_216 = arith.constant 0 : index
    %435 = vector.load %arg13[%c0_215, %c0_216] : memref<2x32xf32, #tpu.memory_space<vmem>>, vector<2x32xf32>
    %c0_217 = arith.constant 0 : index
    %c0_218 = arith.constant 0 : index
    %436 = vector.load %arg14[%c0_217, %c0_218] : memref<2x32xf32, #tpu.memory_space<vmem>>, vector<2x32xf32>
    %cst_219 = arith.constant dense<0.000000e+00> : vector<2x128xf32>
    %437 = tpu.matmul %434, %4, %cst_219 {dimension_numbers = #tpu.dot_dimension_numbers<[1], [0], [0], [1], [0, 0, 1, 1], [], []>} : vector<2x16xf32>, vector<16x128xf32>, vector<2x128xf32> -> vector<2x128xf32>
    %438 = vector.broadcast %8 : vector<1x128xf32> to vector<2x128xf32>
    %439 = arith.addf %437, %438 : vector<2x128xf32>
    %cst_220 = arith.constant dense<0.000000e+00> : vector<2x128xf32>
    %440 = tpu.matmul %435, %6, %cst_220 {dimension_numbers = #tpu.dot_dimension_numbers<[1], [0], [0], [1], [0, 0, 1, 1], [], []>} : vector<2x32xf32>, vector<32x128xf32>, vector<2x128xf32> -> vector<2x128xf32>
    %441 = arith.addf %439, %440 : vector<2x128xf32>
    %442 = vector.extract_strided_slice %441 {offsets = [0, 0], sizes = [2, 96], strides = [1, 1]} : vector<2x128xf32> to vector<2x96xf32>
    %443 = arith.negf %442 : vector<2x96xf32>
    %444 = math.exp %443 : vector<2x96xf32>
    %cst_221 = arith.constant 1.000000e+00 : f32
    %445 = vector.broadcast %cst_221 : f32 to vector<2x96xf32>
    %446 = arith.addf %445, %444 : vector<2x96xf32>
    %447 = arith.divf %445, %446 : vector<2x96xf32>
    %448 = vector.extract_strided_slice %447 {offsets = [0, 0], sizes = [2, 32], strides = [1, 1]} : vector<2x96xf32> to vector<2x32xf32>
    %449 = vector.extract_strided_slice %447 {offsets = [0, 32], sizes = [2, 32], strides = [1, 1]} : vector<2x96xf32> to vector<2x32xf32>
    %450 = vector.extract_strided_slice %447 {offsets = [0, 64], sizes = [2, 32], strides = [1, 1]} : vector<2x96xf32> to vector<2x32xf32>
    %451 = vector.extract_strided_slice %441 {offsets = [0, 96], sizes = [2, 32], strides = [1, 1]} : vector<2x128xf32> to vector<2x32xf32>
    %452 = math.tanh %451 : vector<2x32xf32>
    %453 = arith.mulf %449, %436 : vector<2x32xf32>
    %454 = arith.mulf %448, %452 : vector<2x32xf32>
    %455 = arith.addf %453, %454 : vector<2x32xf32>
    %456 = math.tanh %455 : vector<2x32xf32>
    %457 = arith.mulf %450, %456 : vector<2x32xf32>
    %c0_222 = arith.constant 0 : index
    %c0_223 = arith.constant 0 : index
    %458 = vector.load %arg13[%c0_222, %c0_223] : memref<2x32xf32, #tpu.memory_space<vmem>>, vector<2x32xf32>
    tpu.vector_store %arg13[%c0_222, %c0_223], %457 {strides = array<i32>} : memref<2x32xf32, #tpu.memory_space<vmem>>, vector<2x32xf32>,
    %c0_224 = arith.constant 0 : index
    %c0_225 = arith.constant 0 : index
    %459 = vector.load %arg14[%c0_224, %c0_225] : memref<2x32xf32, #tpu.memory_space<vmem>>, vector<2x32xf32>
    tpu.vector_store %arg14[%c0_224, %c0_225], %455 {strides = array<i32>} : memref<2x32xf32, #tpu.memory_space<vmem>>, vector<2x32xf32>,
    %460 = arith.index_cast %431 : i32 to index
    %c0_226 = arith.constant 0 : index
    %c0_227 = arith.constant 0 : index
    %461 = vector.load %arg10[%460, %c0_226, %c0_227] : memref<8x2x32xf32, #tpu.memory_space<vmem>>, vector<1x2x32xf32>
    %462 = vector.shape_cast %461 : vector<1x2x32xf32> to vector<2x32xf32>
    %463 = vector.shape_cast %457 : vector<2x32xf32> to vector<1x2x32xf32>
    tpu.vector_store %arg10[%460, %c0_226, %c0_227], %463 {strides = array<i32>} : memref<8x2x32xf32, #tpu.memory_space<vmem>>, vector<1x2x32xf32>,
    %c7_i32_228 = arith.constant 7 : i32
    %464 = arith.index_cast %c7_i32_228 : i32 to index
    %c0_229 = arith.constant 0 : index
    %c0_230 = arith.constant 0 : index
    %465 = vector.load %arg1[%464, %c0_229, %c0_230] : memref<8x2x16xf32, #tpu.memory_space<vmem>>, vector<1x2x16xf32>
    %466 = vector.shape_cast %465 : vector<1x2x16xf32> to vector<2x16xf32>
    %c0_231 = arith.constant 0 : index
    %c0_232 = arith.constant 0 : index
    %467 = vector.load %arg11[%c0_231, %c0_232] : memref<2x32xf32, #tpu.memory_space<vmem>>, vector<2x32xf32>
    %c0_233 = arith.constant 0 : index
    %c0_234 = arith.constant 0 : index
    %468 = vector.load %arg12[%c0_233, %c0_234] : memref<2x32xf32, #tpu.memory_space<vmem>>, vector<2x32xf32>
    %cst_235 = arith.constant dense<0.000000e+00> : vector<2x128xf32>
    %469 = tpu.matmul %466, %3, %cst_235 {dimension_numbers = #tpu.dot_dimension_numbers<[1], [0], [0], [1], [0, 0, 1, 1], [], []>} : vector<2x16xf32>, vector<16x128xf32>, vector<2x128xf32> -> vector<2x128xf32>
    %470 = vector.broadcast %7 : vector<1x128xf32> to vector<2x128xf32>
    %471 = arith.addf %469, %470 : vector<2x128xf32>
    %cst_236 = arith.constant dense<0.000000e+00> : vector<2x128xf32>
    %472 = tpu.matmul %467, %5, %cst_236 {dimension_numbers = #tpu.dot_dimension_numbers<[1], [0], [0], [1], [0, 0, 1, 1], [], []>} : vector<2x32xf32>, vector<32x128xf32>, vector<2x128xf32> -> vector<2x128xf32>
    %473 = arith.addf %471, %472 : vector<2x128xf32>
    %474 = vector.extract_strided_slice %473 {offsets = [0, 0], sizes = [2, 96], strides = [1, 1]} : vector<2x128xf32> to vector<2x96xf32>
    %475 = arith.negf %474 : vector<2x96xf32>
    %476 = math.exp %475 : vector<2x96xf32>
    %cst_237 = arith.constant 1.000000e+00 : f32
    %477 = vector.broadcast %cst_237 : f32 to vector<2x96xf32>
    %478 = arith.addf %477, %476 : vector<2x96xf32>
    %479 = arith.divf %477, %478 : vector<2x96xf32>
    %480 = vector.extract_strided_slice %479 {offsets = [0, 0], sizes = [2, 32], strides = [1, 1]} : vector<2x96xf32> to vector<2x32xf32>
    %481 = vector.extract_strided_slice %479 {offsets = [0, 32], sizes = [2, 32], strides = [1, 1]} : vector<2x96xf32> to vector<2x32xf32>
    %482 = vector.extract_strided_slice %479 {offsets = [0, 64], sizes = [2, 32], strides = [1, 1]} : vector<2x96xf32> to vector<2x32xf32>
    %483 = vector.extract_strided_slice %473 {offsets = [0, 96], sizes = [2, 32], strides = [1, 1]} : vector<2x128xf32> to vector<2x32xf32>
    %484 = math.tanh %483 : vector<2x32xf32>
    %485 = arith.mulf %481, %468 : vector<2x32xf32>
    %486 = arith.mulf %480, %484 : vector<2x32xf32>
    %487 = arith.addf %485, %486 : vector<2x32xf32>
    %488 = math.tanh %487 : vector<2x32xf32>
    %489 = arith.mulf %482, %488 : vector<2x32xf32>
    %c0_238 = arith.constant 0 : index
    %c0_239 = arith.constant 0 : index
    %490 = vector.load %arg11[%c0_238, %c0_239] : memref<2x32xf32, #tpu.memory_space<vmem>>, vector<2x32xf32>
    tpu.vector_store %arg11[%c0_238, %c0_239], %489 {strides = array<i32>} : memref<2x32xf32, #tpu.memory_space<vmem>>, vector<2x32xf32>,
    %c0_240 = arith.constant 0 : index
    %c0_241 = arith.constant 0 : index
    %491 = vector.load %arg12[%c0_240, %c0_241] : memref<2x32xf32, #tpu.memory_space<vmem>>, vector<2x32xf32>
    tpu.vector_store %arg12[%c0_240, %c0_241], %487 {strides = array<i32>} : memref<2x32xf32, #tpu.memory_space<vmem>>, vector<2x32xf32>,
    %492 = arith.index_cast %c7_i32_228 : i32 to index
    %c0_242 = arith.constant 0 : index
    %c0_243 = arith.constant 0 : index
    %493 = vector.load %arg9[%492, %c0_242, %c0_243] : memref<8x2x32xf32, #tpu.memory_space<vmem>>, vector<1x2x32xf32>
    %494 = vector.shape_cast %493 : vector<1x2x32xf32> to vector<2x32xf32>
    %495 = vector.shape_cast %489 : vector<2x32xf32> to vector<1x2x32xf32>
    tpu.vector_store %arg9[%492, %c0_242, %c0_243], %495 {strides = array<i32>} : memref<8x2x32xf32, #tpu.memory_space<vmem>>, vector<1x2x32xf32>,
    %c7_i32_244 = arith.constant 7 : i32
    %496 = arith.subi %c7_i32_244, %c7_i32_228 : i32
    %497 = arith.index_cast %496 : i32 to index
    %c0_245 = arith.constant 0 : index
    %c0_246 = arith.constant 0 : index
    %498 = vector.load %arg2[%497, %c0_245, %c0_246] : memref<8x2x16xf32, #tpu.memory_space<vmem>>, vector<1x2x16xf32>
    %499 = vector.shape_cast %498 : vector<1x2x16xf32> to vector<2x16xf32>
    %c0_247 = arith.constant 0 : index
    %c0_248 = arith.constant 0 : index
    %500 = vector.load %arg13[%c0_247, %c0_248] : memref<2x32xf32, #tpu.memory_space<vmem>>, vector<2x32xf32>
    %c0_249 = arith.constant 0 : index
    %c0_250 = arith.constant 0 : index
    %501 = vector.load %arg14[%c0_249, %c0_250] : memref<2x32xf32, #tpu.memory_space<vmem>>, vector<2x32xf32>
    %cst_251 = arith.constant dense<0.000000e+00> : vector<2x128xf32>
    %502 = tpu.matmul %499, %4, %cst_251 {dimension_numbers = #tpu.dot_dimension_numbers<[1], [0], [0], [1], [0, 0, 1, 1], [], []>} : vector<2x16xf32>, vector<16x128xf32>, vector<2x128xf32> -> vector<2x128xf32>
    %503 = vector.broadcast %8 : vector<1x128xf32> to vector<2x128xf32>
    %504 = arith.addf %502, %503 : vector<2x128xf32>
    %cst_252 = arith.constant dense<0.000000e+00> : vector<2x128xf32>
    %505 = tpu.matmul %500, %6, %cst_252 {dimension_numbers = #tpu.dot_dimension_numbers<[1], [0], [0], [1], [0, 0, 1, 1], [], []>} : vector<2x32xf32>, vector<32x128xf32>, vector<2x128xf32> -> vector<2x128xf32>
    %506 = arith.addf %504, %505 : vector<2x128xf32>
    %507 = vector.extract_strided_slice %506 {offsets = [0, 0], sizes = [2, 96], strides = [1, 1]} : vector<2x128xf32> to vector<2x96xf32>
    %508 = arith.negf %507 : vector<2x96xf32>
    %509 = math.exp %508 : vector<2x96xf32>
    %cst_253 = arith.constant 1.000000e+00 : f32
    %510 = vector.broadcast %cst_253 : f32 to vector<2x96xf32>
    %511 = arith.addf %510, %509 : vector<2x96xf32>
    %512 = arith.divf %510, %511 : vector<2x96xf32>
    %513 = vector.extract_strided_slice %512 {offsets = [0, 0], sizes = [2, 32], strides = [1, 1]} : vector<2x96xf32> to vector<2x32xf32>
    %514 = vector.extract_strided_slice %512 {offsets = [0, 32], sizes = [2, 32], strides = [1, 1]} : vector<2x96xf32> to vector<2x32xf32>
    %515 = vector.extract_strided_slice %512 {offsets = [0, 64], sizes = [2, 32], strides = [1, 1]} : vector<2x96xf32> to vector<2x32xf32>
    %516 = vector.extract_strided_slice %506 {offsets = [0, 96], sizes = [2, 32], strides = [1, 1]} : vector<2x128xf32> to vector<2x32xf32>
    %517 = math.tanh %516 : vector<2x32xf32>
    %518 = arith.mulf %514, %501 : vector<2x32xf32>
    %519 = arith.mulf %513, %517 : vector<2x32xf32>
    %520 = arith.addf %518, %519 : vector<2x32xf32>
    %521 = math.tanh %520 : vector<2x32xf32>
    %522 = arith.mulf %515, %521 : vector<2x32xf32>
    %c0_254 = arith.constant 0 : index
    %c0_255 = arith.constant 0 : index
    %523 = vector.load %arg13[%c0_254, %c0_255] : memref<2x32xf32, #tpu.memory_space<vmem>>, vector<2x32xf32>
    tpu.vector_store %arg13[%c0_254, %c0_255], %522 {strides = array<i32>} : memref<2x32xf32, #tpu.memory_space<vmem>>, vector<2x32xf32>,
    %c0_256 = arith.constant 0 : index
    %c0_257 = arith.constant 0 : index
    %524 = vector.load %arg14[%c0_256, %c0_257] : memref<2x32xf32, #tpu.memory_space<vmem>>, vector<2x32xf32>
    tpu.vector_store %arg14[%c0_256, %c0_257], %520 {strides = array<i32>} : memref<2x32xf32, #tpu.memory_space<vmem>>, vector<2x32xf32>,
    %525 = arith.index_cast %496 : i32 to index
    %c0_258 = arith.constant 0 : index
    %c0_259 = arith.constant 0 : index
    %526 = vector.load %arg10[%525, %c0_258, %c0_259] : memref<8x2x32xf32, #tpu.memory_space<vmem>>, vector<1x2x32xf32>
    %527 = vector.shape_cast %526 : vector<1x2x32xf32> to vector<2x32xf32>
    %528 = vector.shape_cast %522 : vector<2x32xf32> to vector<1x2x32xf32>
    tpu.vector_store %arg10[%525, %c0_258, %c0_259], %528 {strides = array<i32>} : memref<8x2x32xf32, #tpu.memory_space<vmem>>, vector<1x2x32xf32>,
    %c8_i32 = arith.constant 8 : i32
    return
  }
  func.func @transform_0(%arg0: i32) -> (i32, i32, i32) {
    %c0_i32 = arith.constant 0 : i32
    %c0_i32_0 = arith.constant 0 : i32
    %c0_i32_1 = arith.constant 0 : i32
    return %arg0, %c0_i32, %c0_i32_0 : i32, i32, i32
  }
  func.func @transform_1(%arg0: i32) -> (i32, i32, i32) {
    %c0_i32 = arith.constant 0 : i32
    %0 = arith.subi %c0_i32, %arg0 : i32
    %c0_i32_0 = arith.constant 0 : i32
    %c0_i32_1 = arith.constant 0 : i32
    %c0_i32_2 = arith.constant 0 : i32
    return %0, %c0_i32_0, %c0_i32_1 : i32, i32, i32
  }
  func.func @transform_2(%arg0: i32) -> (i32, i32) {
    %c0_i32 = arith.constant 0 : i32
    %c0_i32_0 = arith.constant 0 : i32
    %c0_i32_1 = arith.constant 0 : i32
    return %c0_i32, %c0_i32_0 : i32, i32
  }
  func.func @transform_3(%arg0: i32) -> (i32, i32) {
    %c0_i32 = arith.constant 0 : i32
    %c0_i32_0 = arith.constant 0 : i32
    %c0_i32_1 = arith.constant 0 : i32
    return %c0_i32, %c0_i32_0 : i32, i32
  }
  func.func @transform_4(%arg0: i32) -> (i32, i32) {
    %c0_i32 = arith.constant 0 : i32
    %c0_i32_0 = arith.constant 0 : i32
    %c0_i32_1 = arith.constant 0 : i32
    return %c0_i32, %c0_i32_0 : i32, i32
  }
  func.func @transform_5(%arg0: i32) -> (i32, i32) {
    %c0_i32 = arith.constant 0 : i32
    %c0_i32_0 = arith.constant 0 : i32
    %c0_i32_1 = arith.constant 0 : i32
    return %c0_i32, %c0_i32_0 : i32, i32
  }
  func.func @transform_6(%arg0: i32) -> (i32, i32) {
    %c0_i32 = arith.constant 0 : i32
    %c0_i32_0 = arith.constant 0 : i32
    %c0_i32_1 = arith.constant 0 : i32
    return %c0_i32, %c0_i32_0 : i32, i32
  }
  func.func @transform_7(%arg0: i32) -> (i32, i32) {
    %c0_i32 = arith.constant 0 : i32
    %c0_i32_0 = arith.constant 0 : i32
    %c0_i32_1 = arith.constant 0 : i32
    return %c0_i32, %c0_i32_0 : i32, i32
  }
  func.func @transform_8(%arg0: i32) -> (i32, i32, i32) {
    %c0_i32 = arith.constant 0 : i32
    %c0_i32_0 = arith.constant 0 : i32
    %c0_i32_1 = arith.constant 0 : i32
    return %arg0, %c0_i32, %c0_i32_0 : i32, i32, i32
  }
  func.func @transform_9(%arg0: i32) -> (i32, i32, i32) {
    %c0_i32 = arith.constant 0 : i32
    %0 = arith.subi %c0_i32, %arg0 : i32
    %c0_i32_0 = arith.constant 0 : i32
    %c0_i32_1 = arith.constant 0 : i32
    %c0_i32_2 = arith.constant 0 : i32
    return %0, %c0_i32_0, %c0_i32_1 : i32, i32, i32
  }
}

</mosaic_0001>

<llo_original>
// kernel: tpu_custom_call.1
$region0: #{tpu_custom_call.1}
  #allocation0 [shape = 'u32[]', space=smem, size = 0x4, offset = 0x4, fixed_abs, tag = 'smem constant byte address 0x4 - core index']
  #allocation1 [shape = 'u32[144,128]{1,0:T(1,128)}', space=vmem, size = 0x12000, scoped, tag = 'internal scratch']
  #allocation2 [shape = 'f32[2,32]{1,0:T(2,128)}', space=vmem, size = 0x400, scoped, tag = 'scratch operand']
  #allocation3 [shape = 'f32[2,32]{1,0:T(2,128)}', space=vmem, size = 0x400, scoped, tag = 'scratch operand']
  #allocation4 [shape = 'f32[2,32]{1,0:T(2,128)}', space=vmem, size = 0x400, scoped, tag = 'scratch operand']
  #allocation5 [shape = 'f32[2,32]{1,0:T(2,128)}', space=vmem, size = 0x400, scoped, tag = 'scratch operand']
  %s0 = inlined_call_operand.hbm [shape: f32[8,2,16], index: 0, kind: input, shape index: {}]
  %s1 = inlined_call_operand.hbm [shape: f32[8,2,16], index: 1, kind: input, shape index: {}]
  %s2 = inlined_call_operand.hbm [shape: f32[16,128], index: 2, kind: input, shape index: {}]
  %s3 = inlined_call_operand.hbm [shape: f32[16,128], index: 3, kind: input, shape index: {}]
  %s4 = inlined_call_operand.vmem [shape: f32[1,128], index: 4, kind: input, shape index: {}]
  %s5 = inlined_call_operand.vmem [shape: f32[1,128], index: 5, kind: input, shape index: {}]
  %s6 = inlined_call_operand.hbm [shape: f32[32,128], index: 6, kind: input, shape index: {}]
  %s7 = inlined_call_operand.hbm [shape: f32[32,128], index: 7, kind: input, shape index: {}]
  %s8 = inlined_call_operand.hbm [shape: f32[8,2,32], index: 8, kind: output, shape index: {0}]
  %s9 = inlined_call_operand.hbm [shape: f32[8,2,32], index: 9, kind: output, shape index: {1}]
  %10 = xla_tuple %s8, %s9
  %s11 = sld [smem:[#allocation0]]
  $region78: #{tpu_custom_call.1} parent=0
    _
  %s13 = ssub.s32 1, %s11
  %s14 = scalar_select 0, %s13, %s11
  $region1: #{tpu_custom_call.1} parent=0
    #allocation6 [shape = 'u8[8192]{0}', space=vmem, size = 0x2000, scoped, tag = 'input window, operand 0, single buffered']
    #allocation7 [shape = 's32[1]{0}', space=sflag, size = 0x4, scoped, tag = 'scoped memory for tpu_custom_call.1']
    #allocation8 [shape = 's32[1]{0}', space=sflag, size = 0x4, scoped, tag = 'scoped memory for tpu_custom_call.1']
    #allocation9 [shape = 'u8[8192]{0}', space=vmem, size = 0x2000, scoped, tag = 'input window, operand 1, single buffered']
    #allocation10 [shape = 's32[1]{0}', space=sflag, size = 0x4, scoped, tag = 'scoped memory for tpu_custom_call.1']
    #allocation11 [shape = 'u8[8192]{0}', space=vmem, size = 0x2000, scoped, tag = 'input window, operand 2, single buffered']
    #allocation12 [shape = 'u8[8192]{0}', space=vmem, size = 0x2000, scoped, tag = 'input window, operand 3, single buffered']
    #allocation13 [shape = 's32[1]{0}', space=sflag, size = 0x4, scoped, tag = 'scoped memory for tpu_custom_call.1']
    #allocation14 [shape = 'u8[16384]{0}', space=vmem, size = 0x4000, scoped, tag = 'input window, operand 6, single buffered']
    #allocation15 [shape = 'u8[16384]{0}', space=vmem, size = 0x4000, scoped, tag = 'input window, operand 7, single buffered']
    #allocation16 [shape = 's32[1]{0}', space=sflag, size = 0x4, scoped, tag = 'scoped memory for tpu_custom_call.1']
    #allocation17 [shape = 'u8[8192]{0}', space=vmem, size = 0x2000, scoped, tag = 'output window, operand 0, single buffered']
    #allocation18 [shape = 'u8[8192]{0}', space=vmem, size = 0x2000, scoped, tag = 'output window, operand 1, single buffered']
    #allocation19 [shape = 's32[1]{0}', space=sflag, size = 0x4, scoped, tag = 'scoped memory for tpu_custom_call.1']
    %15 = vsyncpa [#allocation7], 0
    %16 = vsyncpa [#allocation10], 0
    %17 = vsyncpa [#allocation13], 0
    %18 = vsyncpa [#allocation16], 0
    %19 = vsyncpa [#allocation8], 0
    %20 = vsyncpa [#allocation19], 0
    // Predicated region
    $region2: #{tpu_custom_call.1} parent=1 // pred_check
      _
    $region3: #{tpu_custom_call.1} parent=1 // pred_check_branch
      %22 = sbr.rel (0) target = $region5
    $region4: #{tpu_custom_call.1} parent=1 // pred_region
      %s24 = ssub.s32 256, 256
      %25 = vsyncadd [#allocation7], %s24
      %s26 = sshll.u32 [#allocation6], 4
      %s27 = int_to_ptr.vmem [resolvable:$true] %s26
      %32 = dma.hbm_to_vmem [thread:$0]  %s0, 256, %s27, [#allocation7], 32, 32, 2
    $region5: #{tpu_custom_call.1} parent=1 // pred_fallthru
      _
    // Predicated region
    $region6: #{tpu_custom_call.1} parent=1 // pred_check
      _
    $region7: #{tpu_custom_call.1} parent=1 // pred_check_branch
      %34 = sbr.rel (0) target = $region9
    $region8: #{tpu_custom_call.1} parent=1 // pred_region
      %s35 = ssub.s32 0, 0
      %s36 = smul.u32 8, %s35
      %s38 = ssub.s32 256, 256
      %39 = vsyncadd [#allocation10], %s38
      %s40 = smul.addr %s36, 32
      %s41 = scalar_lea.hbm %s1, %s40
      %s42 = sshll.u32 [#allocation9], 4
      %s43 = int_to_ptr.vmem [resolvable:$true] %s42
      %48 = dma.hbm_to_vmem [thread:$0]  %s41, 256, %s43, [#allocation10], 32, 32, 2
    $region9: #{tpu_custom_call.1} parent=1 // pred_fallthru
      _
    // Predicated region
    $region10: #{tpu_custom_call.1} parent=1 // pred_check
      _
    $region11: #{tpu_custom_call.1} parent=1 // pred_check_branch
      %50 = sbr.rel (0) target = $region13
    $region12: #{tpu_custom_call.1} parent=1 // pred_region
      %s52 = ssub.s32 256, 256
      %53 = vsyncadd [#allocation10], %s52
      %s54 = sshll.u32 [#allocation11], 4
      %s55 = int_to_ptr.vmem [resolvable:$true] %s54
      %60 = dma.hbm_to_vmem [thread:$0]  %s2, 256, %s55, [#allocation10], 128, 128, 8
    $region13: #{tpu_custom_call.1} parent=1 // pred_fallthru
      _
    // Predicated region
    $region14: #{tpu_custom_call.1} parent=1 // pred_check
      _
    $region15: #{tpu_custom_call.1} parent=1 // pred_check_branch
      %62 = sbr.rel (0) target = $region17
    $region16: #{tpu_custom_call.1} parent=1 // pred_region
      %s64 = ssub.s32 256, 256
      %65 = vsyncadd [#allocation13], %s64
      %s66 = sshll.u32 [#allocation12], 4
      %s67 = int_to_ptr.vmem [resolvable:$true] %s66
      %72 = dma.hbm_to_vmem [thread:$0]  %s3, 256, %s67, [#allocation13], 128, 128, 8
    $region17: #{tpu_custom_call.1} parent=1 // pred_fallthru
      _
    // Predicated region
    $region18: #{tpu_custom_call.1} parent=1 // pred_check
      _
    $region19: #{tpu_custom_call.1} parent=1 // pred_check_branch
      %74 = sbr.rel (0) target = $region21
    $region20: #{tpu_custom_call.1} parent=1 // pred_region
      _
    $region21: #{tpu_custom_call.1} parent=1 // pred_fallthru
      _
    // Predicated region
    $region22: #{tpu_custom_call.1} parent=1 // pred_check
      _
    $region23: #{tpu_custom_call.1} parent=1 // pred_check_branch
      %76 = sbr.rel (0) target = $region25
    $region24: #{tpu_custom_call.1} parent=1 // pred_region
      _
    $region25: #{tpu_custom_call.1} parent=1 // pred_fallthru
      _
    // Predicated region
    $region26: #{tpu_custom_call.1} parent=1 // pred_check
      _
    $region27: #{tpu_custom_call.1} parent=1 // pred_check_branch
      %78 = sbr.rel (0) target = $region29
    $region28: #{tpu_custom_call.1} parent=1 // pred_region
      %s80 = ssub.s32 512, 512
      %81 = vsyncadd [#allocation13], %s80
      %s82 = sshll.u32 [#allocation14], 4
      %s83 = int_to_ptr.vmem [resolvable:$true] %s82
      %88 = dma.hbm_to_vmem [thread:$0]  %s6, 512, %s83, [#allocation13], 128, 128, 8
    $region29: #{tpu_custom_call.1} parent=1 // pred_fallthru
      _
    // Predicated region
    $region30: #{tpu_custom_call.1} parent=1 // pred_check
      _
    $region31: #{tpu_custom_call.1} parent=1 // pred_check_branch
      %90 = sbr.rel (0) target = $region33
    $region32: #{tpu_custom_call.1} parent=1 // pred_region
      %s92 = ssub.s32 512, 512
      %93 = vsyncadd [#allocation16], %s92
      %s94 = sshll.u32 [#allocation15], 4
      %s95 = int_to_ptr.vmem [resolvable:$true] %s94
      %100 = dma.hbm_to_vmem [thread:$0]  %s7, 512, %s95, [#allocation16], 128, 128, 8
    $region33: #{tpu_custom_call.1} parent=1 // pred_fallthru
      _
    // Predicated region
    $region34: #{tpu_custom_call.1} parent=1 // pred_check
      _
    $region35: #{tpu_custom_call.1} parent=1 // pred_check_branch
      %102 = sbr.rel (0) target = $region37
    $region36: #{tpu_custom_call.1} parent=1 // pred_region
      %103 = dma.done [#allocation7], 256
    $region37: #{tpu_custom_call.1} parent=1 // pred_fallthru
      _
    // Predicated region
    $region38: #{tpu_custom_call.1} parent=1 // pred_check
      _
    $region39: #{tpu_custom_call.1} parent=1 // pred_check_branch
      %105 = sbr.rel (0) target = $region41
    $region40: #{tpu_custom_call.1} parent=1 // pred_region
      %106 = dma.done [#allocation10], 256
    $region41: #{tpu_custom_call.1} parent=1 // pred_fallthru
      _
    // Predicated region
    $region42: #{tpu_custom_call.1} parent=1 // pred_check
      _
    $region43: #{tpu_custom_call.1} parent=1 // pred_check_branch
      %108 = sbr.rel (0) target = $region45
    $region44: #{tpu_custom_call.1} parent=1 // pred_region
      %109 = dma.done [#allocation10], 256
    $region45: #{tpu_custom_call.1} parent=1 // pred_fallthru
      _
    // Predicated region
    $region46: #{tpu_custom_call.1} parent=1 // pred_check
      _
    $region47: #{tpu_custom_call.1} parent=1 // pred_check_branch
      %111 = sbr.rel (0) target = $region49
    $region48: #{tpu_custom_call.1} parent=1 // pred_region
      %112 = dma.done [#allocation13], 256
    $region49: #{tpu_custom_call.1} parent=1 // pred_fallthru
      _
    // Predicated region
    $region50: #{tpu_custom_call.1} parent=1 // pred_check
      _
    $region51: #{tpu_custom_call.1} parent=1 // pred_check_branch
      %114 = sbr.rel (0) target = $region53
    $region52: #{tpu_custom_call.1} parent=1 // pred_region
      %115 = dma.done [#allocation13], 512
    $region53: #{tpu_custom_call.1} parent=1 // pred_fallthru
      _
    // Predicated region
    $region54: #{tpu_custom_call.1} parent=1 // pred_check
      _
    $region55: #{tpu_custom_call.1} parent=1 // pred_check_branch
      %117 = sbr.rel (0) target = $region57
    $region56: #{tpu_custom_call.1} parent=1 // pred_region
      %118 = dma.done [#allocation16], 512
    $region57: #{tpu_custom_call.1} parent=1 // pred_fallthru
      _
    %s119 = ssub.s32 0, 0
    %s120 = smul.u32 8, %s119
    %s121 = ssub.s32 0, 0
    %s122 = smul.u32 8, %s121
    %p123 = scmp.eq.s32.totalorder 0, 0
    // Predicated region
    $region58: #{tpu_custom_call.1} parent=1 // pred_check
      %p124 = pneg %p123
    $region59: #{tpu_custom_call.1} parent=1 // pred_check_branch
      %126 = sbr.rel (%p124) target = $region61
    $region60: #{tpu_custom_call.1} parent=1 // pred_region
      %vm127 = vcmask 254976
      %128 = vst.msk [vmem:[#allocation2] sm:$0x3] %vm127, 0.0
      %129 = vst.msk [vmem:[#allocation3] sm:$0x3] %vm127, 0.0
      %130 = vst.msk [vmem:[#allocation4] sm:$0x3] %vm127, 0.0
      %131 = vst.msk [vmem:[#allocation5] sm:$0x3] %vm127, 0.0
    $region61: #{tpu_custom_call.1} parent=1 // pred_fallthru
      _
    %v132 = vld [vmem:[#allocation11] sm:$0xff]
    %v133 = vld [vmem:[#allocation11 + $0x8] sm:$0xff]
    %v134 = vld [vmem:[#allocation12] sm:$0xff]
    %v135 = vld [vmem:[#allocation12 + $0x8] sm:$0xff]
    %v136 = vld [vmem:[#allocation14] sm:$0xff]
    %v137 = vld [vmem:[#allocation14 + $0x8] sm:$0xff]
    %v138 = vld [vmem:[#allocation14 + $0x10] sm:$0xff]
    %v139 = vld [vmem:[#allocation14 + $0x18] sm:$0xff]
    %v140 = vld [vmem:[#allocation15] sm:$0xff]
    %v141 = vld [vmem:[#allocation15 + $0x8] sm:$0xff]
    %v142 = vld [vmem:[#allocation15 + $0x10] sm:$0xff]
    %v143 = vld [vmem:[#allocation15 + $0x18] sm:$0xff]
    %v144 = vld [vmem:[%s4] sm:$0x1]
    %v145 = vld [vmem:[%s5] sm:$0x1]
    %v146 = vld [vmem:[#allocation6] sm:$0x3]
    %v147 = vld [vmem:[#allocation2] sm:$0x3]
    %v148 = vld [vmem:[#allocation3] sm:$0x3]
    %v150 = vlaneseq
    %v151 = vshrl.u32 %v150, 7
    %v152 = vsub.s32 0, %v151
    %v153 = vrot.slane %v144, %v152
    %vm155 = vcmask 130048
    %v157 = vsel %vm155, %v146, 0
    %159 = vmatprep.subr.mxu0 0.0
    %160 = vmatpush1.msra.mxu0 0.0
    %161 = vmatprep.subr.mxu0 0.0
    %162 = vmatpush1.msra.mxu0 0.0
    %163 = vmatprep.subr.mxu0 0.0
    %164 = vmatpush1.msra.mxu0 0.0
    %165 = vmatprep.subr.mxu0 0.0
    %166 = vmatpush1.msra.mxu0 0.0
    %167 = vmatprep.subr.mxu0 0.0
    %168 = vmatpush1.msra.mxu0 0.0
    %169 = vmatprep.subr.mxu0 0.0
    %170 = vmatpush1.msra.mxu0 0.0
    %171 = vmatprep.subr.mxu0 0.0
    %172 = vmatpush1.msra.mxu0 0.0
    %173 = vmatprep.subr.mxu0 0.0
    %174 = vmatpush1.msra.mxu0 0.0
    %175 = vmatprep.subr.mxu0 0.0
    %176 = vmatpush1.msra.mxu0 0.0
    %177 = vmatprep.subr.mxu0 0.0
    %178 = vmatpush1.msra.mxu0 0.0
    %179 = vmatprep.subr.mxu0 0.0
    %180 = vmatpush1.msra.mxu0 0.0
    %181 = vmatprep.subr.mxu0 0.0
    %182 = vmatpush1.msra.mxu0 0.0
    %183 = vmatprep.subr.mxu0 0.0
    %184 = vmatpush1.msra.mxu0 0.0
    %185 = vmatprep.subr.mxu0 0.0
    %186 = vmatpush1.msra.mxu0 0.0
    %187 = vmatprep.subr.mxu0 0.0
    %188 = vmatpush1.msra.mxu0 %v133
    %189 = vmatprep.subr.mxu0 0.0
    %190 = vmatpush1.msra.mxu0 %v132
    %191 = vmatprep.subr.mxu0 0.0
    %192 = vmatpush2.msra.mxu0 0.0
    %193 = vmatprep.subr.mxu0 0.0
    %194 = vmatpush2.msra.mxu0 0.0
    %195 = vmatprep.subr.mxu0 0.0
    %196 = vmatpush2.msra.mxu0 0.0
    %197 = vmatprep.subr.mxu0 0.0
    %198 = vmatpush2.msra.mxu0 0.0
    %199 = vmatprep.subr.mxu0 0.0
    %200 = vmatpush2.msra.mxu0 0.0
    %201 = vmatprep.subr.mxu0 0.0
    %202 = vmatpush2.msra.mxu0 0.0
    %203 = vmatprep.subr.mxu0 0.0
    %204 = vmatpush2.msra.mxu0 0.0
    %205 = vmatprep.subr.mxu0 0.0
    %206 = vmatpush2.msra.mxu0 0.0
    %207 = vmatprep.subr.mxu0 0.0
    %208 = vmatpush2.msra.mxu0 0.0
    %209 = vmatprep.subr.mxu0 0.0
    %210 = vmatpush2.msra.mxu0 0.0
    %211 = vmatprep.subr.mxu0 0.0
    %212 = vmatpush2.msra.mxu0 0.0
    %213 = vmatprep.subr.mxu0 0.0
    %214 = vmatpush2.msra.mxu0 0.0
    %215 = vmatprep.subr.mxu0 0.0
    %216 = vmatpush2.msra.mxu0 0.0
    %217 = vmatprep.subr.mxu0 0.0
    %218 = vmatpush2.msra.mxu0 0.0
    %219 = vmatprep.subr.mxu0 0.0
    %220 = vmatpush2.msra.mxu0 0.0
    %221 = vmatprep.subr.mxu0 0.0
    %222 = vmatpush2.msra.mxu0 0.0
    %223 = vmatprep.mubr.f32.mxu0 0.0
    %224 = vmatmul.mubr.f32.gmra.mxu0 %v157
    %v225 = vpop.f32.mrf.mxu0
    %v226 = vadd.f32 %v153, %v225
    %v227 = vpop.f32.mrf.mxu0
    %228 = vdwg.mxu0
    %vm229 = vcmask 261120
    %v231 = vsel %vm229, %v147, 0
    %233 = vmatprep.subr.mxu0 0.0
    %234 = vmatpush1.msra.mxu0 0.0
    %235 = vmatprep.subr.mxu0 0.0
    %236 = vmatpush1.msra.mxu0 0.0
    %237 = vmatprep.subr.mxu0 0.0
    %238 = vmatpush1.msra.mxu0 0.0
    %239 = vmatprep.subr.mxu0 0.0
    %240 = vmatpush1.msra.mxu0 0.0
    %241 = vmatprep.subr.mxu0 0.0
    %242 = vmatpush1.msra.mxu0 0.0
    %243 = vmatprep.subr.mxu0 0.0
    %244 = vmatpush1.msra.mxu0 0.0
    %245 = vmatprep.subr.mxu0 0.0
    %246 = vmatpush1.msra.mxu0 0.0
    %247 = vmatprep.subr.mxu0 0.0
    %248 = vmatpush1.msra.mxu0 0.0
    %249 = vmatprep.subr.mxu0 0.0
    %250 = vmatpush1.msra.mxu0 0.0
    %251 = vmatprep.subr.mxu0 0.0
    %252 = vmatpush1.msra.mxu0 0.0
    %253 = vmatprep.subr.mxu0 0.0
    %254 = vmatpush1.msra.mxu0 0.0
    %255 = vmatprep.subr.mxu0 0.0
    %256 = vmatpush1.msra.mxu0 0.0
    %257 = vmatprep.subr.mxu0 0.0
    %258 = vmatpush1.msra.mxu0 %v139
    %259 = vmatprep.subr.mxu0 0.0
    %260 = vmatpush1.msra.mxu0 %v138
    %261 = vmatprep.subr.mxu0 0.0
    %262 = vmatpush1.msra.mxu0 %v137
    %263 = vmatprep.subr.mxu0 0.0
    %264 = vmatpush1.msra.mxu0 %v136
    %265 = vmatprep.subr.mxu0 0.0
    %266 = vmatpush2.msra.mxu0 0.0
    %267 = vmatprep.subr.mxu0 0.0
    %268 = vmatpush2.msra.mxu0 0.0
    %269 = vmatprep.subr.mxu0 0.0
    %270 = vmatpush2.msra.mxu0 0.0
    %271 = vmatprep.subr.mxu0 0.0
    %272 = vmatpush2.msra.mxu0 0.0
    %273 = vmatprep.subr.mxu0 0.0
    %274 = vmatpush2.msra.mxu0 0.0
    %275 = vmatprep.subr.mxu0 0.0
    %276 = vmatpush2.msra.mxu0 0.0
    %277 = vmatprep.subr.mxu0 0.0
    %278 = vmatpush2.msra.mxu0 0.0
    %279 = vmatprep.subr.mxu0 0.0
    %280 = vmatpush2.msra.mxu0 0.0
    %281 = vmatprep.subr.mxu0 0.0
    %282 = vmatpush2.msra.mxu0 0.0
    %283 = vmatprep.subr.mxu0 0.0
    %284 = vmatpush2.msra.mxu0 0.0
    %285 = vmatprep.subr.mxu0 0.0
    %286 = vmatpush2.msra.mxu0 0.0
    %287 = vmatprep.subr.mxu0 0.0
    %288 = vmatpush2.msra.mxu0 0.0
    %289 = vmatprep.subr.mxu0 0.0
    %290 = vmatpush2.msra.mxu0 0.0
    %291 = vmatprep.subr.mxu0 0.0
    %292 = vmatpush2.msra.mxu0 0.0
    %293 = vmatprep.subr.mxu0 0.0
    %294 = vmatpush2.msra.mxu0 0.0
    %295 = vmatprep.subr.mxu0 0.0
    %296 = vmatpush2.msra.mxu0 0.0
    %297 = vmatprep.mubr.f32.mxu0 0.0
    %298 = vmatmul.mubr.f32.gmra.mxu0 %v231
    %v299 = vpop.f32.mrf.mxu0
    %v300 = vadd.f32 0.0, %v299
    %v301 = vpop.f32.mrf.mxu0
    %302 = vdwg.mxu0
    %v303 = vadd.f32 %v226, %v300
    %v304 = vxor.u32 %v303, 2147483648
    %v305 = vmul.f32 %v304, 1.442695
    %v306 = vpow.pop %v305
    %v307 = vadd.f32 %v306, 1.0
    %v308 = vrcp.pop %v307
    %v309 = vmul.f32 1.0, %v308
    %v310 = vtanh.pop %v303
    %312 = vrot.lane.b32.xlu0 %v148, 32
    %v313 = vpop.permute.xlu0 %312
    %v315 = vmul.f32 %v309, %v313
    %317 = vrot.lane.b32.xlu0 %v310, 32
    %v318 = vpop.permute.xlu0 %317
    %v320 = vmul.f32 %v309, %v318
    %322 = vrot.lane.b32.xlu0 %v320, 32
    %v323 = vpop.permute.xlu0 %322
    %v325 = vadd.f32 %v315, %v323
    %v326 = vtanh.pop %v325
    %328 = vrot.lane.b32.xlu0 %v326, 32
    %v329 = vpop.permute.xlu0 %328
    %v331 = vmul.f32 %v309, %v329
    %333 = vrot.lane.b32.xlu0 %v331, 64
    %v334 = vpop.permute.xlu0 %333
    %vm336 = vcmask 254976
    %337 = vst.msk [vmem:[#allocation2] sm:$0x3] %vm336, %v334
    %339 = vrot.lane.b32.xlu0 %v325, 96
    %v340 = vpop.permute.xlu0 %339
    %342 = vst.msk [vmem:[#allocation3] sm:$0x3] %vm336, %v340
    %343 = vst.msk [vmem:[#allocation17] sm:$0x3] %vm336, %v334
    %s344 = scalar_lea.vmem [#allocation9], 14
    %v345 = vld [vmem:[%s344] sm:$0x3]
    %v346 = vld [vmem:[#allocation4] sm:$0x3]
    %v347 = vld [vmem:[#allocation5] sm:$0x3]
    %v349 = vlaneseq
    %v350 = vshrl.u32 %v349, 7
    %v351 = vsub.s32 0, %v350
    %v352 = vrot.slane %v145, %v351
    %v355 = vsel %vm155, %v345, 0
    %357 = vmatprep.subr.mxu0 0.0
    %358 = vmatpush1.msra.mxu0 0.0
    %359 = vmatprep.subr.mxu0 0.0
    %360 = vmatpush1.msra.mxu0 0.0
    %361 = vmatprep.subr.mxu0 0.0
    %362 = vmatpush1.msra.mxu0 0.0
    %363 = vmatprep.subr.mxu0 0.0
    %364 = vmatpush1.msra.mxu0 0.0
    %365 = vmatprep.subr.mxu0 0.0
    %366 = vmatpush1.msra.mxu0 0.0
    %367 = vmatprep.subr.mxu0 0.0
    %368 = vmatpush1.msra.mxu0 0.0
    %369 = vmatprep.subr.mxu0 0.0
    %370 = vmatpush1.msra.mxu0 0.0
    %371 = vmatprep.subr.mxu0 0.0
    %372 = vmatpush1.msra.mxu0 0.0
    %373 = vmatprep.subr.mxu0 0.0
    %374 = vmatpush1.msra.mxu0 0.0
    %375 = vmatprep.subr.mxu0 0.0
    %376 = vmatpush1.msra.mxu0 0.0
    %377 = vmatprep.subr.mxu0 0.0
    %378 = vmatpush1.msra.mxu0 0.0
    %379 = vmatprep.subr.mxu0 0.0
    %380 = vmatpush1.msra.mxu0 0.0
    %381 = vmatprep.subr.mxu0 0.0
    %382 = vmatpush1.msra.mxu0 0.0
    %383 = vmatprep.subr.mxu0 0.0
    %384 = vmatpush1.msra.mxu0 0.0
    %385 = vmatprep.subr.mxu0 0.0
    %386 = vmatpush1.msra.mxu0 %v135
    %387 = vmatprep.subr.mxu0 0.0
    %388 = vmatpush1.msra.mxu0 %v134
    %389 = vmatprep.subr.mxu0 0.0
    %390 = vmatpush2.msra.mxu0 0.0
    %391 = vmatprep.subr.mxu0 0.0
    %392 = vmatpush2.msra.mxu0 0.0
    %393 = vmatprep.subr.mxu0 0.0
    %394 = vmatpush2.msra.mxu0 0.0
    %395 = vmatprep.subr.mxu0 0.0
    %396 = vmatpush2.msra.mxu0 0.0
    %397 = vmatprep.subr.mxu0 0.0
    %398 = vmatpush2.msra.mxu0 0.0
    %399 = vmatprep.subr.mxu0 0.0
    %400 = vmatpush2.msra.mxu0 0.0
    %401 = vmatprep.subr.mxu0 0.0
    %402 = vmatpush2.msra.mxu0 0.0
    %403 = vmatprep.subr.mxu0 0.0
    %404 = vmatpush2.msra.mxu0 0.0
    %405 = vmatprep.subr.mxu0 0.0
    %406 = vmatpush2.msra.mxu0 0.0
    %407 = vmatprep.subr.mxu0 0.0
    %408 = vmatpush2.msra.mxu0 0.0
    %409 = vmatprep.subr.mxu0 0.0
    %410 = vmatpush2.msra.mxu0 0.0
    %411 = vmatprep.subr.mxu0 0.0
    %412 = vmatpush2.msra.mxu0 0.0
    %413 = vmatprep.subr.mxu0 0.0
    %414 = vmatpush2.msra.mxu0 0.0
    %415 = vmatprep.subr.mxu0 0.0
    %416 = vmatpush2.msra.mxu0 0.0
    %417 = vmatprep.subr.mxu0 0.0
    %418 = vmatpush2.msra.mxu0 0.0
    %419 = vmatprep.subr.mxu0 0.0
    %420 = vmatpush2.msra.mxu0 0.0
    %421 = vmatprep.mubr.f32.mxu0 0.0
    %422 = vmatmul.mubr.f32.gmra.mxu0 %v355
    %v423 = vpop.f32.mrf.mxu0
    %v424 = vadd.f32 %v352, %v423
    %v425 = vpop.f32.mrf.mxu0
    %426 = vdwg.mxu0
    %v428 = vsel %vm229, %v346, 0
    %430 = vmatprep.subr.mxu0 0.0
    %431 = vmatpush1.msra.mxu0 0.0
    %432 = vmatprep.subr.mxu0 0.0
    %433 = vmatpush1.msra.mxu0 0.0
    %434 = vmatprep.subr.mxu0 0.0
    %435 = vmatpush1.msra.mxu0 0.0
    %436 = vmatprep.subr.mxu0 0.0
    %437 = vmatpush1.msra.mxu0 0.0
    %438 = vmatprep.subr.mxu0 0.0
    %439 = vmatpush1.msra.mxu0 0.0
    %440 = vmatprep.subr.mxu0 0.0
    %441 = vmatpush1.msra.mxu0 0.0
    %442 = vmatprep.subr.mxu0 0.0
    %443 = vmatpush1.msra.mxu0 0.0
    %444 = vmatprep.subr.mxu0 0.0
    %445 = vmatpush1.msra.mxu0 0.0
    %446 = vmatprep.subr.mxu0 0.0
    %447 = vmatpush1.msra.mxu0 0.0
    %448 = vmatprep.subr.mxu0 0.0
    %449 = vmatpush1.msra.mxu0 0.0
    %450 = vmatprep.subr.mxu0 0.0
    %451 = vmatpush1.msra.mxu0 0.0
    %452 = vmatprep.subr.mxu0 0.0
    %453 = vmatpush1.msra.mxu0 0.0
    %454 = vmatprep.subr.mxu0 0.0
    %455 = vmatpush1.msra.mxu0 %v143
    %456 = vmatprep.subr.mxu0 0.0
    %457 = vmatpush1.msra.mxu0 %v142
    %458 = vmatprep.subr.mxu0 0.0
    %459 = vmatpush1.msra.mxu0 %v141
    %460 = vmatprep.subr.mxu0 0.0
    %461 = vmatpush1.msra.mxu0 %v140
    %462 = vmatprep.subr.mxu0 0.0
    %463 = vmatpush2.msra.mxu0 0.0
    %464 = vmatprep.subr.mxu0 0.0
    %465 = vmatpush2.msra.mxu0 0.0
    %466 = vmatprep.subr.mxu0 0.0
    %467 = vmatpush2.msra.mxu0 0.0
    %468 = vmatprep.subr.mxu0 0.0
    %469 = vmatpush2.msra.mxu0 0.0
    %470 = vmatprep.subr.mxu0 0.0
    %471 = vmatpush2.msra.mxu0 0.0
    %472 = vmatprep.subr.mxu0 0.0
    %473 = vmatpush2.msra.mxu0 0.0
    %474 = vmatprep.subr.mxu0 0.0
    %475 = vmatpush2.msra.mxu0 0.0
    %476 = vmatprep.subr.mxu0 0.0
    %477 = vmatpush2.msra.mxu0 0.0
    %478 = vmatprep.subr.mxu0 0.0
    %479 = vmatpush2.msra.mxu0 0.0
    %480 = vmatprep.subr.mxu0 0.0
    %481 = vmatpush2.msra.mxu0 0.0
    %482 = vmatprep.subr.mxu0 0.0
    %483 = vmatpush2.msra.mxu0 0.0
    %484 = vmatprep.subr.mxu0 0.0
    %485 = vmatpush2.msra.mxu0 0.0
    %486 = vmatprep.subr.mxu0 0.0
    %487 = vmatpush2.msra.mxu0 0.0
    %488 = vmatprep.subr.mxu0 0.0
    %489 = vmatpush2.msra.mxu0 0.0
    %490 = vmatprep.subr.mxu0 0.0
    %491 = vmatpush2.msra.mxu0 0.0
    %492 = vmatprep.subr.mxu0 0.0
    %493 = vmatpush2.msra.mxu0 0.0
    %494 = vmatprep.mubr.f32.mxu0 0.0
    %495 = vmatmul.mubr.f32.gmra.mxu0 %v428
    %v496 = vpop.f32.mrf.mxu0
    %v497 = vadd.f32 0.0, %v496
    %v498 = vpop.f32.mrf.mxu0
    %499 = vdwg.mxu0
    %v500 = vadd.f32 %v424, %v497
    %v501 = vxor.u32 %v500, 2147483648
    %v502 = vmul.f32 %v501, 1.442695
    %v503 = vpow.pop %v502
    %v504 = vadd.f32 %v503, 1.0
    %v505 = vrcp.pop %v504
    %v506 = vmul.f32 1.0, %v505
    %v507 = vtanh.pop %v500
    %509 = vrot.lane.b32.xlu0 %v347, 32
    %v510 = vpop.permute.xlu0 %509
    %v512 = vmul.f32 %v506, %v510
    %514 = vrot.lane.b32.xlu0 %v507, 32
    %v515 = vpop.permute.xlu0 %514
    %v517 = vmul.f32 %v506, %v515
    %519 = vrot.lane.b32.xlu0 %v517, 32
    %v520 = vpop.permute.xlu0 %519
    %v522 = vadd.f32 %v512, %v520
    %v523 = vtanh.pop %v522
    %525 = vrot.lane.b32.xlu0 %v523, 32
    %v526 = vpop.permute.xlu0 %525
    %v528 = vmul.f32 %v506, %v526
    %530 = vrot.lane.b32.xlu0 %v528, 64
    %v531 = vpop.permute.xlu0 %530
    %533 = vst.msk [vmem:[#allocation4] sm:$0x3] %vm336, %v531
    %535 = vrot.lane.b32.xlu0 %v522, 96
    %v536 = vpop.permute.xlu0 %535
    %538 = vst.msk [vmem:[#allocation5] sm:$0x3] %vm336, %v536
    %s539 = scalar_lea.vmem [#allocation18], 14
    %540 = vst.msk [vmem:[%s539] sm:$0x3] %vm336, %v531
    %s541 = scalar_lea.vmem [#allocation6], 2
    %v542 = vld [vmem:[%s541] sm:$0x3]
    %v543 = vld [vmem:[#allocation2] sm:$0x3]
    %v544 = vld [vmem:[#allocation3] sm:$0x3]
    %v546 = vsel %vm155, %v542, 0
    %548 = vmatprep.subr.mxu0 0.0
    %549 = vmatpush1.msra.mxu0 0.0
    %550 = vmatprep.subr.mxu0 0.0
    %551 = vmatpush1.msra.mxu0 0.0
    %552 = vmatprep.subr.mxu0 0.0
    %553 = vmatpush1.msra.mxu0 0.0
    %554 = vmatprep.subr.mxu0 0.0
    %555 = vmatpush1.msra.mxu0 0.0
    %556 = vmatprep.subr.mxu0 0.0
    %557 = vmatpush1.msra.mxu0 0.0
    %558 = vmatprep.subr.mxu0 0.0
    %559 = vmatpush1.msra.mxu0 0.0
    %560 = vmatprep.subr.mxu0 0.0
    %561 = vmatpush1.msra.mxu0 0.0
    %562 = vmatprep.subr.mxu0 0.0
    %563 = vmatpush1.msra.mxu0 0.0
    %564 = vmatprep.subr.mxu0 0.0
    %565 = vmatpush1.msra.mxu0 0.0
    %566 = vmatprep.subr.mxu0 0.0
    %567 = vmatpush1.msra.mxu0 0.0
    %568 = vmatprep.subr.mxu0 0.0
    %569 = vmatpush1.msra.mxu0 0.0
    %570 = vmatprep.subr.mxu0 0.0
    %571 = vmatpush1.msra.mxu0 0.0
    %572 = vmatprep.subr.mxu0 0.0
    %573 = vmatpush1.msra.mxu0 0.0
    %574 = vmatprep.subr.mxu0 0.0
    %575 = vmatpush1.msra.mxu0 0.0
    %576 = vmatprep.subr.mxu0 0.0
    %577 = vmatpush1.msra.mxu0 %v133
    %578 = vmatprep.subr.mxu0 0.0
    %579 = vmatpush1.msra.mxu0 %v132
    %580 = vmatprep.subr.mxu0 0.0
    %581 = vmatpush2.msra.mxu0 0.0
    %582 = vmatprep.subr.mxu0 0.0
    %583 = vmatpush2.msra.mxu0 0.0
    %584 = vmatprep.subr.mxu0 0.0
    %585 = vmatpush2.msra.mxu0 0.0
    %586 = vmatprep.subr.mxu0 0.0
    %587 = vmatpush2.msra.mxu0 0.0
    %588 = vmatprep.subr.mxu0 0.0
    %589 = vmatpush2.msra.mxu0 0.0
    %590 = vmatprep.subr.mxu0 0.0
    %591 = vmatpush2.msra.mxu0 0.0
    %592 = vmatprep.subr.mxu0 0.0
    %593 = vmatpush2.msra.mxu0 0.0
    %594 = vmatprep.subr.mxu0 0.0
    %595 = vmatpush2.msra.mxu0 0.0
    %596 = vmatprep.subr.mxu0 0.0
    %597 = vmatpush2.msra.mxu0 0.0
    %598 = vmatprep.subr.mxu0 0.0
    %599 = vmatpush2.msra.mxu0 0.0
    %600 = vmatprep.subr.mxu0 0.0
    %601 = vmatpush2.msra.mxu0 0.0
    %602 = vmatprep.subr.mxu0 0.0
    %603 = vmatpush2.msra.mxu0 0.0
    %604 = vmatprep.subr.mxu0 0.0
    %605 = vmatpush2.msra.mxu0 0.0
    %606 = vmatprep.subr.mxu0 0.0
    %607 = vmatpush2.msra.mxu0 0.0
    %608 = vmatprep.subr.mxu0 0.0
    %609 = vmatpush2.msra.mxu0 0.0
    %610 = vmatprep.subr.mxu0 0.0
    %611 = vmatpush2.msra.mxu0 0.0
    %612 = vmatprep.mubr.f32.mxu0 0.0
    %613 = vmatmul.mubr.f32.gmra.mxu0 %v546
    %v614 = vpop.f32.mrf.mxu0
    %v615 = vadd.f32 %v153, %v614
    %v616 = vpop.f32.mrf.mxu0
    %617 = vdwg.mxu0
    %v619 = vsel %vm229, %v543, 0
    %621 = vmatprep.subr.mxu0 0.0
    %622 = vmatpush1.msra.mxu0 0.0
    %623 = vmatprep.subr.mxu0 0.0
    %624 = vmatpush1.msra.mxu0 0.0
    %625 = vmatprep.subr.mxu0 0.0
    %626 = vmatpush1.msra.mxu0 0.0
    %627 = vmatprep.subr.mxu0 0.0
    %628 = vmatpush1.msra.mxu0 0.0
    %629 = vmatprep.subr.mxu0 0.0
    %630 = vmatpush1.msra.mxu0 0.0
    %631 = vmatprep.subr.mxu0 0.0
    %632 = vmatpush1.msra.mxu0 0.0
    %633 = vmatprep.subr.mxu0 0.0
    %634 = vmatpush1.msra.mxu0 0.0
    %635 = vmatprep.subr.mxu0 0.0
    %636 = vmatpush1.msra.mxu0 0.0
    %637 = vmatprep.subr.mxu0 0.0
    %638 = vmatpush1.msra.mxu0 0.0
    %639 = vmatprep.subr.mxu0 0.0
    %640 = vmatpush1.msra.mxu0 0.0
    %641 = vmatprep.subr.mxu0 0.0
    %642 = vmatpush1.msra.mxu0 0.0
    %643 = vmatprep.subr.mxu0 0.0
    %644 = vmatpush1.msra.mxu0 0.0
    %645 = vmatprep.subr.mxu0 0.0
    %646 = vmatpush1.msra.mxu0 %v139
    %647 = vmatprep.subr.mxu0 0.0
    %648 = vmatpush1.msra.mxu0 %v138
    %649 = vmatprep.subr.mxu0 0.0
    %650 = vmatpush1.msra.mxu0 %v137
    %651 = vmatprep.subr.mxu0 0.0
    %652 = vmatpush1.msra.mxu0 %v136
    %653 = vmatprep.subr.mxu0 0.0
    %654 = vmatpush2.msra.mxu0 0.0
    %655 = vmatprep.subr.mxu0 0.0
    %656 = vmatpush2.msra.mxu0 0.0
    %657 = vmatprep.subr.mxu0 0.0
    %658 = vmatpush2.msra.mxu0 0.0
    %659 = vmatprep.subr.mxu0 0.0
    %660 = vmatpush2.msra.mxu0 0.0
    %661 = vmatprep.subr.mxu0 0.0
    %662 = vmatpush2.msra.mxu0 0.0
    %663 = vmatprep.subr.mxu0 0.0
    %664 = vmatpush2.msra.mxu0 0.0
    %665 = vmatprep.subr.mxu0 0.0
    %666 = vmatpush2.msra.mxu0 0.0
    %667 = vmatprep.subr.mxu0 0.0
    %668 = vmatpush2.msra.mxu0 0.0
    %669 = vmatprep.subr.mxu0 0.0
    %670 = vmatpush2.msra.mxu0 0.0
    %671 = vmatprep.subr.mxu0 0.0
    %672 = vmatpush2.msra.mxu0 0.0
    %673 = vmatprep.subr.mxu0 0.0
    %674 = vmatpush2.msra.mxu0 0.0
    %675 = vmatprep.subr.mxu0 0.0
    %676 = vmatpush2.msra.mxu0 0.0
    %677 = vmatprep.subr.mxu0 0.0
    %678 = vmatpush2.msra.mxu0 0.0
    %679 = vmatprep.subr.mxu0 0.0
    %680 = vmatpush2.msra.mxu0 0.0
    %681 = vmatprep.subr.mxu0 0.0
    %682 = vmatpush2.msra.mxu0 0.0
    %683 = vmatprep.subr.mxu0 0.0
    %684 = vmatpush2.msra.mxu0 0.0
    %685 = vmatprep.mubr.f32.mxu0 0.0
    %686 = vmatmul.mubr.f32.gmra.mxu0 %v619
    %v687 = vpop.f32.mrf.mxu0
    %v688 = vadd.f32 0.0, %v687
    %v689 = vpop.f32.mrf.mxu0
    %690 = vdwg.mxu0
    %v691 = vadd.f32 %v615, %v688
    %v692 = vxor.u32 %v691, 2147483648
    %v693 = vmul.f32 %v692, 1.442695
    %v694 = vpow.pop %v693
    %v695 = vadd.f32 %v694, 1.0
    %v696 = vrcp.pop %v695
    %v697 = vmul.f32 1.0, %v696
    %v698 = vtanh.pop %v691
    %700 = vrot.lane.b32.xlu0 %v544, 32
    %v701 = vpop.permute.xlu0 %700
    %v703 = vmul.f32 %v697, %v701
    %705 = vrot.lane.b32.xlu0 %v698, 32
    %v706 = vpop.permute.xlu0 %705
    %v708 = vmul.f32 %v697, %v706
    %710 = vrot.lane.b32.xlu0 %v708, 32
    %v711 = vpop.permute.xlu0 %710
    %v713 = vadd.f32 %v703, %v711
    %v714 = vtanh.pop %v713
    %716 = vrot.lane.b32.xlu0 %v714, 32
    %v717 = vpop.permute.xlu0 %716
    %v719 = vmul.f32 %v697, %v717
    %721 = vrot.lane.b32.xlu0 %v719, 64
    %v722 = vpop.permute.xlu0 %721
    %724 = vst.msk [vmem:[#allocation2] sm:$0x3] %vm336, %v722
    %726 = vrot.lane.b32.xlu0 %v713, 96
    %v727 = vpop.permute.xlu0 %726
    %729 = vst.msk [vmem:[#allocation3] sm:$0x3] %vm336, %v727
    %s730 = scalar_lea.vmem [#allocation17], 2
    %731 = vst.msk [vmem:[%s730] sm:$0x3] %vm336, %v722
    %s732 = scalar_lea.vmem [#allocation9], 12
    %v733 = vld [vmem:[%s732] sm:$0x3]
    %v734 = vld [vmem:[#allocation4] sm:$0x3]
    %v735 = vld [vmem:[#allocation5] sm:$0x3]
    %v737 = vsel %vm155, %v733, 0
    %739 = vmatprep.subr.mxu0 0.0
    %740 = vmatpush1.msra.mxu0 0.0
    %741 = vmatprep.subr.mxu0 0.0
    %742 = vmatpush1.msra.mxu0 0.0
    %743 = vmatprep.subr.mxu0 0.0
    %744 = vmatpush1.msra.mxu0 0.0
    %745 = vmatprep.subr.mxu0 0.0
    %746 = vmatpush1.msra.mxu0 0.0
    %747 = vmatprep.subr.mxu0 0.0
    %748 = vmatpush1.msra.mxu0 0.0
    %749 = vmatprep.subr.mxu0 0.0
    %750 = vmatpush1.msra.mxu0 0.0
    %751 = vmatprep.subr.mxu0 0.0
    %752 = vmatpush1.msra.mxu0 0.0
    %753 = vmatprep.subr.mxu0 0.0
    %754 = vmatpush1.msra.mxu0 0.0
    %755 = vmatprep.subr.mxu0 0.0
    %756 = vmatpush1.msra.mxu0 0.0
    %757 = vmatprep.subr.mxu0 0.0
    %758 = vmatpush1.msra.mxu0 0.0
    %759 = vmatprep.subr.mxu0 0.0
    %760 = vmatpush1.msra.mxu0 0.0
    %761 = vmatprep.subr.mxu0 0.0
    %762 = vmatpush1.msra.mxu0 0.0
    %763 = vmatprep.subr.mxu0 0.0
    %764 = vmatpush1.msra.mxu0 0.0
    %765 = vmatprep.subr.mxu0 0.0
    %766 = vmatpush1.msra.mxu0 0.0
    %767 = vmatprep.subr.mxu0 0.0
    %768 = vmatpush1.msra.mxu0 %v135
    %769 = vmatprep.subr.mxu0 0.0
    %770 = vmatpush1.msra.mxu0 %v134
    %771 = vmatprep.subr.mxu0 0.0
    %772 = vmatpush2.msra.mxu0 0.0
    %773 = vmatprep.subr.mxu0 0.0
    %774 = vmatpush2.msra.mxu0 0.0
    %775 = vmatprep.subr.mxu0 0.0
    %776 = vmatpush2.msra.mxu0 0.0
    %777 = vmatprep.subr.mxu0 0.0
    %778 = vmatpush2.msra.mxu0 0.0
    %779 = vmatprep.subr.mxu0 0.0
    %780 = vmatpush2.msra.mxu0 0.0
    %781 = vmatprep.subr.mxu0 0.0
    %782 = vmatpush2.msra.mxu0 0.0
    %783 = vmatprep.subr.mxu0 0.0
    %784 = vmatpush2.msra.mxu0 0.0
    %785 = vmatprep.subr.mxu0 0.0
    %786 = vmatpush2.msra.mxu0 0.0
    %787 = vmatprep.subr.mxu0 0.0
    %788 = vmatpush2.msra.mxu0 0.0
    %789 = vmatprep.subr.mxu0 0.0
    %790 = vmatpush2.msra.mxu0 0.0
    %791 = vmatprep.subr.mxu0 0.0
    %792 = vmatpush2.msra.mxu0 0.0
    %793 = vmatprep.subr.mxu0 0.0
    %794 = vmatpush2.msra.mxu0 0.0
    %795 = vmatprep.subr.mxu0 0.0
    %796 = vmatpush2.msra.mxu0 0.0
    %797 = vmatprep.subr.mxu0 0.0
    %798 = vmatpush2.msra.mxu0 0.0
    %799 = vmatprep.subr.mxu0 0.0
    %800 = vmatpush2.msra.mxu0 0.0
    %801 = vmatprep.subr.mxu0 0.0
    %802 = vmatpush2.msra.mxu0 0.0
    %803 = vmatprep.mubr.f32.mxu0 0.0
    %804 = vmatmul.mubr.f32.gmra.mxu0 %v737
    %v805 = vpop.f32.mrf.mxu0
    %v806 = vadd.f32 %v352, %v805
    %v807 = vpop.f32.mrf.mxu0
    %808 = vdwg.mxu0
    %v810 = vsel %vm229, %v734, 0
    %812 = vmatprep.subr.mxu0 0.0
    %813 = vmatpush1.msra.mxu0 0.0
    %814 = vmatprep.subr.mxu0 0.0
    %815 = vmatpush1.msra.mxu0 0.0
    %816 = vmatprep.subr.mxu0 0.0
    %817 = vmatpush1.msra.mxu0 0.0
    %818 = vmatprep.subr.mxu0 0.0
    %819 = vmatpush1.msra.mxu0 0.0
    %820 = vmatprep.subr.mxu0 0.0
    %821 = vmatpush1.msra.mxu0 0.0
    %822 = vmatprep.subr.mxu0 0.0
    %823 = vmatpush1.msra.mxu0 0.0
    %824 = vmatprep.subr.mxu0 0.0
    %825 = vmatpush1.msra.mxu0 0.0
    %826 = vmatprep.subr.mxu0 0.0
    %827 = vmatpush1.msra.mxu0 0.0
    %828 = vmatprep.subr.mxu0 0.0
    %829 = vmatpush1.msra.mxu0 0.0
    %830 = vmatprep.subr.mxu0 0.0
    %831 = vmatpush1.msra.mxu0 0.0
    %832 = vmatprep.subr.mxu0 0.0
    %833 = vmatpush1.msra.mxu0 0.0
    %834 = vmatprep.subr.mxu0 0.0
    %835 = vmatpush1.msra.mxu0 0.0
    %836 = vmatprep.subr.mxu0 0.0
    %837 = vmatpush1.msra.mxu0 %v143
    %838 = vmatprep.subr.mxu0 0.0
    %839 = vmatpush1.msra.mxu0 %v142
    %840 = vmatprep.subr.mxu0 0.0
    %841 = vmatpush1.msra.mxu0 %v141
    %842 = vmatprep.subr.mxu0 0.0
    %843 = vmatpush1.msra.mxu0 %v140
    %844 = vmatprep.subr.mxu0 0.0
    %845 = vmatpush2.msra.mxu0 0.0
    %846 = vmatprep.subr.mxu0 0.0
    %847 = vmatpush2.msra.mxu0 0.0
    %848 = vmatprep.subr.mxu0 0.0
    %849 = vmatpush2.msra.mxu0 0.0
    %850 = vmatprep.subr.mxu0 0.0
    %851 = vmatpush2.msra.mxu0 0.0
    %852 = vmatprep.subr.mxu0 0.0
    %853 = vmatpush2.msra.mxu0 0.0
    %854 = vmatprep.subr.mxu0 0.0
    %855 = vmatpush2.msra.mxu0 0.0
    %856 = vmatprep.subr.mxu0 0.0
    %857 = vmatpush2.msra.mxu0 0.0
    %858 = vmatprep.subr.mxu0 0.0
    %859 = vmatpush2.msra.mxu0 0.0
    %860 = vmatprep.subr.mxu0 0.0
    %861 = vmatpush2.msra.mxu0 0.0
    %862 = vmatprep.subr.mxu0 0.0
    %863 = vmatpush2.msra.mxu0 0.0
    %864 = vmatprep.subr.mxu0 0.0
    %865 = vmatpush2.msra.mxu0 0.0
    %866 = vmatprep.subr.mxu0 0.0
    %867 = vmatpush2.msra.mxu0 0.0
    %868 = vmatprep.subr.mxu0 0.0
    %869 = vmatpush2.msra.mxu0 0.0
    %870 = vmatprep.subr.mxu0 0.0
    %871 = vmatpush2.msra.mxu0 0.0
    %872 = vmatprep.subr.mxu0 0.0
    %873 = vmatpush2.msra.mxu0 0.0
    %874 = vmatprep.subr.mxu0 0.0
    %875 = vmatpush2.msra.mxu0 0.0
    %876 = vmatprep.mubr.f32.mxu0 0.0
    %877 = vmatmul.mubr.f32.gmra.mxu0 %v810
    %v878 = vpop.f32.mrf.mxu0
    %v879 = vadd.f32 0.0, %v878
    %v880 = vpop.f32.mrf.mxu0
    %881 = vdwg.mxu0
    %v882 = vadd.f32 %v806, %v879
    %v883 = vxor.u32 %v882, 2147483648
    %v884 = vmul.f32 %v883, 1.442695
    %v885 = vpow.pop %v884
    %v886 = vadd.f32 %v885, 1.0
    %v887 = vrcp.pop %v886
    %v888 = vmul.f32 1.0, %v887
    %v889 = vtanh.pop %v882
    %891 = vrot.lane.b32.xlu0 %v735, 32
    %v892 = vpop.permute.xlu0 %891
    %v894 = vmul.f32 %v888, %v892
    %896 = vrot.lane.b32.xlu0 %v889, 32
    %v897 = vpop.permute.xlu0 %896
    %v899 = vmul.f32 %v888, %v897
    %901 = vrot.lane.b32.xlu0 %v899, 32
    %v902 = vpop.permute.xlu0 %901
    %v904 = vadd.f32 %v894, %v902
    %v905 = vtanh.pop %v904
    %907 = vrot.lane.b32.xlu0 %v905, 32
    %v908 = vpop.permute.xlu0 %907
    %v910 = vmul.f32 %v888, %v908
    %912 = vrot.lane.b32.xlu0 %v910, 64
    %v913 = vpop.permute.xlu0 %912
    %915 = vst.msk [vmem:[#allocation4] sm:$0x3] %vm336, %v913
    %917 = vrot.lane.b32.xlu0 %v904, 96
    %v918 = vpop.permute.xlu0 %917
    %920 = vst.msk [vmem:[#allocation5] sm:$0x3] %vm336, %v918
    %s921 = scalar_lea.vmem [#allocation18], 12
    %922 = vst.msk [vmem:[%s921] sm:$0x3] %vm336, %v913
    %s923 = scalar_lea.vmem [#allocation6], 4
    %v924 = vld [vmem:[%s923] sm:$0x3]
    %v925 = vld [vmem:[#allocation2] sm:$0x3]
    %v926 = vld [vmem:[#allocation3] sm:$0x3]
    %v928 = vsel %vm155, %v924, 0
    %930 = vmatprep.subr.mxu0 0.0
    %931 = vmatpush1.msra.mxu0 0.0
    %932 = vmatprep.subr.mxu0 0.0
    %933 = vmatpush1.msra.mxu0 0.0
    %934 = vmatprep.subr.mxu0 0.0
    %935 = vmatpush1.msra.mxu0 0.0
    %936 = vmatprep.subr.mxu0 0.0
    %937 = vmatpush1.msra.mxu0 0.0
    %938 = vmatprep.subr.mxu0 0.0
    %939 = vmatpush1.msra.mxu0 0.0
    %940 = vmatprep.subr.mxu0 0.0
    %941 = vmatpush1.msra.mxu0 0.0
    %942 = vmatprep.subr.mxu0 0.0
    %943 = vmatpush1.msra.mxu0 0.0
    %944 = vmatprep.subr.mxu0 0.0
    %945 = vmatpush1.msra.mxu0 0.0
    %946 = vmatprep.subr.mxu0 0.0
    %947 = vmatpush1.msra.mxu0 0.0
    %948 = vmatprep.subr.mxu0 0.0
    %949 = vmatpush1.msra.mxu0 0.0
    %950 = vmatprep.subr.mxu0 0.0
    %951 = vmatpush1.msra.mxu0 0.0
    %952 = vmatprep.subr.mxu0 0.0
    %953 = vmatpush1.msra.mxu0 0.0
    %954 = vmatprep.subr.mxu0 0.0
    %955 = vmatpush1.msra.mxu0 0.0
    %956 = vmatprep.subr.mxu0 0.0
    %957 = vmatpush1.msra.mxu0 0.0
    %958 = vmatprep.subr.mxu0 0.0
    %959 = vmatpush1.msra.mxu0 %v133
    %960 = vmatprep.subr.mxu0 0.0
    %961 = vmatpush1.msra.mxu0 %v132
    %962 = vmatprep.subr.mxu0 0.0
    %963 = vmatpush2.msra.mxu0 0.0
    %964 = vmatprep.subr.mxu0 0.0
    %965 = vmatpush2.msra.mxu0 0.0
    %966 = vmatprep.subr.mxu0 0.0
    %967 = vmatpush2.msra.mxu0 0.0
    %968 = vmatprep.subr.mxu0 0.0
    %969 = vmatpush2.msra.mxu0 0.0
    %970 = vmatprep.subr.mxu0 0.0
    %971 = vmatpush2.msra.mxu0 0.0
    %972 = vmatprep.subr.mxu0 0.0
    %973 = vmatpush2.msra.mxu0 0.0
    %974 = vmatprep.subr.mxu0 0.0
    %975 = vmatpush2.msra.mxu0 0.0
    %976 = vmatprep.subr.mxu0 0.0
    %977 = vmatpush2.msra.mxu0 0.0
    %978 = vmatprep.subr.mxu0 0.0
    %979 = vmatpush2.msra.mxu0 0.0
    %980 = vmatprep.subr.mxu0 0.0
    %981 = vmatpush2.msra.mxu0 0.0
    %982 = vmatprep.subr.mxu0 0.0
    %983 = vmatpush2.msra.mxu0 0.0
    %984 = vmatprep.subr.mxu0 0.0
    %985 = vmatpush2.msra.mxu0 0.0
    %986 = vmatprep.subr.mxu0 0.0
    %987 = vmatpush2.msra.mxu0 0.0
    %988 = vmatprep.subr.mxu0 0.0
    %989 = vmatpush2.msra.mxu0 0.0
    %990 = vmatprep.subr.mxu0 0.0
    %991 = vmatpush2.msra.mxu0 0.0
    %992 = vmatprep.subr.mxu0 0.0
    %993 = vmatpush2.msra.mxu0 0.0
    %994 = vmatprep.mubr.f32.mxu0 0.0
    %995 = vmatmul.mubr.f32.gmra.mxu0 %v928
    %v996 = vpop.f32.mrf.mxu0
    %v997 = vadd.f32 %v153, %v996
    %v998 = vpop.f32.mrf.mxu0
    %999 = vdwg.mxu0
    %v1001 = vsel %vm229, %v925, 0
    %1003 = vmatprep.subr.mxu0 0.0
    %1004 = vmatpush1.msra.mxu0 0.0
    %1005 = vmatprep.subr.mxu0 0.0
    %1006 = vmatpush1.msra.mxu0 0.0
    %1007 = vmatprep.subr.mxu0 0.0
    %1008 = vmatpush1.msra.mxu0 0.0
    %1009 = vmatprep.subr.mxu0 0.0
    %1010 = vmatpush1.msra.mxu0 0.0
    %1011 = vmatprep.subr.mxu0 0.0
    %1012 = vmatpush1.msra.mxu0 0.0
    %1013 = vmatprep.subr.mxu0 0.0
    %1014 = vmatpush1.msra.mxu0 0.0
    %1015 = vmatprep.subr.mxu0 0.0
    %1016 = vmatpush1.msra.mxu0 0.0
    %1017 = vmatprep.subr.mxu0 0.0
    %1018 = vmatpush1.msra.mxu0 0.0
    %1019 = vmatprep.subr.mxu0 0.0
    %1020 = vmatpush1.msra.mxu0 0.0
    %1021 = vmatprep.subr.mxu0 0.0
    %1022 = vmatpush1.msra.mxu0 0.0
    %1023 = vmatprep.subr.mxu0 0.0
    %1024 = vmatpush1.msra.mxu0 0.0
    %1025 = vmatprep.subr.mxu0 0.0
    %1026 = vmatpush1.msra.mxu0 0.0
    %1027 = vmatprep.subr.mxu0 0.0
    %1028 = vmatpush1.msra.mxu0 %v139
    %1029 = vmatprep.subr.mxu0 0.0
    %1030 = vmatpush1.msra.mxu0 %v138
    %1031 = vmatprep.subr.mxu0 0.0
    %1032 = vmatpush1.msra.mxu0 %v137
    %1033 = vmatprep.subr.mxu0 0.0
    %1034 = vmatpush1.msra.mxu0 %v136
    %1035 = vmatprep.subr.mxu0 0.0
    %1036 = vmatpush2.msra.mxu0 0.0
    %1037 = vmatprep.subr.mxu0 0.0
    %1038 = vmatpush2.msra.mxu0 0.0
    %1039 = vmatprep.subr.mxu0 0.0
    %1040 = vmatpush2.msra.mxu0 0.0
    %1041 = vmatprep.subr.mxu0 0.0
    %1042 = vmatpush2.msra.mxu0 0.0
    %1043 = vmatprep.subr.mxu0 0.0
    %1044 = vmatpush2.msra.mxu0 0.0
    %1045 = vmatprep.subr.mxu0 0.0
    %1046 = vmatpush2.msra.mxu0 0.0
    %1047 = vmatprep.subr.mxu0 0.0
    %1048 = vmatpush2.msra.mxu0 0.0
    %1049 = vmatprep.subr.mxu0 0.0
    %1050 = vmatpush2.msra.mxu0 0.0
    %1051 = vmatprep.subr.mxu0 0.0
    %1052 = vmatpush2.msra.mxu0 0.0
    %1053 = vmatprep.subr.mxu0 0.0
    %1054 = vmatpush2.msra.mxu0 0.0
    %1055 = vmatprep.subr.mxu0 0.0
    %1056 = vmatpush2.msra.mxu0 0.0
    %1057 = vmatprep.subr.mxu0 0.0
    %1058 = vmatpush2.msra.mxu0 0.0
    %1059 = vmatprep.subr.mxu0 0.0
    %1060 = vmatpush2.msra.mxu0 0.0
    %1061 = vmatprep.subr.mxu0 0.0
    %1062 = vmatpush2.msra.mxu0 0.0
    %1063 = vmatprep.subr.mxu0 0.0
    %1064 = vmatpush2.msra.mxu0 0.0
    %1065 = vmatprep.subr.mxu0 0.0
    %1066 = vmatpush2.msra.mxu0 0.0
    %1067 = vmatprep.mubr.f32.mxu0 0.0
    %1068 = vmatmul.mubr.f32.gmra.mxu0 %v1001
    %v1069 = vpop.f32.mrf.mxu0
    %v1070 = vadd.f32 0.0, %v1069
    %v1071 = vpop.f32.mrf.mxu0
    %1072 = vdwg.mxu0
    %v1073 = vadd.f32 %v997, %v1070
    %v1074 = vxor.u32 %v1073, 2147483648
    %v1075 = vmul.f32 %v1074, 1.442695
    %v1076 = vpow.pop %v1075
    %v1077 = vadd.f32 %v1076, 1.0
    %v1078 = vrcp.pop %v1077
    %v1079 = vmul.f32 1.0, %v1078
    %v1080 = vtanh.pop %v1073
    %1082 = vrot.lane.b32.xlu0 %v926, 32
    %v1083 = vpop.permute.xlu0 %1082
    %v1085 = vmul.f32 %v1079, %v1083
    %1087 = vrot.lane.b32.xlu0 %v1080, 32
    %v1088 = vpop.permute.xlu0 %1087
    %v1090 = vmul.f32 %v1079, %v1088
    %1092 = vrot.lane.b32.xlu0 %v1090, 32
    %v1093 = vpop.permute.xlu0 %1092
    %v1095 = vadd.f32 %v1085, %v1093
    %v1096 = vtanh.pop %v1095
    %1098 = vrot.lane.b32.xlu0 %v1096, 32
    %v1099 = vpop.permute.xlu0 %1098
    %v1101 = vmul.f32 %v1079, %v1099
    %1103 = vrot.lane.b32.xlu0 %v1101, 64
    %v1104 = vpop.permute.xlu0 %1103
    %1106 = vst.msk [vmem:[#allocation2] sm:$0x3] %vm336, %v1104
    %1108 = vrot.lane.b32.xlu0 %v1095, 96
    %v1109 = vpop.permute.xlu0 %1108
    %1111 = vst.msk [vmem:[#allocation3] sm:$0x3] %vm336, %v1109
    %s1112 = scalar_lea.vmem [#allocation17], 4
    %1113 = vst.msk [vmem:[%s1112] sm:$0x3] %vm336, %v1104
    %s1114 = scalar_lea.vmem [#allocation9], 10
    %v1115 = vld [vmem:[%s1114] sm:$0x3]
    %v1116 = vld [vmem:[#allocation4] sm:$0x3]
    %v1117 = vld [vmem:[#allocation5] sm:$0x3]
    %v1119 = vsel %vm155, %v1115, 0
    %1121 = vmatprep.subr.mxu0 0.0
    %1122 = vmatpush1.msra.mxu0 0.0
    %1123 = vmatprep.subr.mxu0 0.0
    %1124 = vmatpush1.msra.mxu0 0.0
    %1125 = vmatprep.subr.mxu0 0.0
    %1126 = vmatpush1.msra.mxu0 0.0
    %1127 = vmatprep.subr.mxu0 0.0
    %1128 = vmatpush1.msra.mxu0 0.0
    %1129 = vmatprep.subr.mxu0 0.0
    %1130 = vmatpush1.msra.mxu0 0.0
    %1131 = vmatprep.subr.mxu0 0.0
    %1132 = vmatpush1.msra.mxu0 0.0
    %1133 = vmatprep.subr.mxu0 0.0
    %1134 = vmatpush1.msra.mxu0 0.0
    %1135 = vmatprep.subr.mxu0 0.0
    %1136 = vmatpush1.msra.mxu0 0.0
    %1137 = vmatprep.subr.mxu0 0.0
    %1138 = vmatpush1.msra.mxu0 0.0
    %1139 = vmatprep.subr.mxu0 0.0
    %1140 = vmatpush1.msra.mxu0 0.0
    %1141 = vmatprep.subr.mxu0 0.0
    %1142 = vmatpush1.msra.mxu0 0.0
    %1143 = vmatprep.subr.mxu0 0.0
    %1144 = vmatpush1.msra.mxu0 0.0
    %1145 = vmatprep.subr.mxu0 0.0
    %1146 = vmatpush1.msra.mxu0 0.0
    %1147 = vmatprep.subr.mxu0 0.0
    %1148 = vmatpush1.msra.mxu0 0.0
    %1149 = vmatprep.subr.mxu0 0.0
    %1150 = vmatpush1.msra.mxu0 %v135
    %1151 = vmatprep.subr.mxu0 0.0
    %1152 = vmatpush1.msra.mxu0 %v134
    %1153 = vmatprep.subr.mxu0 0.0
    %1154 = vmatpush2.msra.mxu0 0.0
    %1155 = vmatprep.subr.mxu0 0.0
    %1156 = vmatpush2.msra.mxu0 0.0
    %1157 = vmatprep.subr.mxu0 0.0
    %1158 = vmatpush2.msra.mxu0 0.0
    %1159 = vmatprep.subr.mxu0 0.0
    %1160 = vmatpush2.msra.mxu0 0.0
    %1161 = vmatprep.subr.mxu0 0.0
    %1162 = vmatpush2.msra.mxu0 0.0
    %1163 = vmatprep.subr.mxu0 0.0
    %1164 = vmatpush2.msra.mxu0 0.0
    %1165 = vmatprep.subr.mxu0 0.0
    %1166 = vmatpush2.msra.mxu0 0.0
    %1167 = vmatprep.subr.mxu0 0.0
    %1168 = vmatpush2.msra.mxu0 0.0
    %1169 = vmatprep.subr.mxu0 0.0
    %1170 = vmatpush2.msra.mxu0 0.0
    %1171 = vmatprep.subr.mxu0 0.0
    %1172 = vmatpush2.msra.mxu0 0.0
    %1173 = vmatprep.subr.mxu0 0.0
    %1174 = vmatpush2.msra.mxu0 0.0
    %1175 = vmatprep.subr.mxu0 0.0
    %1176 = vmatpush2.msra.mxu0 0.0
    %1177 = vmatprep.subr.mxu0 0.0
    %1178 = vmatpush2.msra.mxu0 0.0
    %1179 = vmatprep.subr.mxu0 0.0
    %1180 = vmatpush2.msra.mxu0 0.0
    %1181 = vmatprep.subr.mxu0 0.0
    %1182 = vmatpush2.msra.mxu0 0.0
    %1183 = vmatprep.subr.mxu0 0.0
    %1184 = vmatpush2.msra.mxu0 0.0
    %1185 = vmatprep.mubr.f32.mxu0 0.0
    %1186 = vmatmul.mubr.f32.gmra.mxu0 %v1119
    %v1187 = vpop.f32.mrf.mxu0
    %v1188 = vadd.f32 %v352, %v1187
    %v1189 = vpop.f32.mrf.mxu0
    %1190 = vdwg.mxu0
    %v1192 = vsel %vm229, %v1116, 0
    %1194 = vmatprep.subr.mxu0 0.0
    %1195 = vmatpush1.msra.mxu0 0.0
    %1196 = vmatprep.subr.mxu0 0.0
    %1197 = vmatpush1.msra.mxu0 0.0
    %1198 = vmatprep.subr.mxu0 0.0
    %1199 = vmatpush1.msra.mxu0 0.0
    %1200 = vmatprep.subr.mxu0 0.0
    %1201 = vmatpush1.msra.mxu0 0.0
    %1202 = vmatprep.subr.mxu0 0.0
    %1203 = vmatpush1.msra.mxu0 0.0
    %1204 = vmatprep.subr.mxu0 0.0
    %1205 = vmatpush1.msra.mxu0 0.0
    %1206 = vmatprep.subr.mxu0 0.0
    %1207 = vmatpush1.msra.mxu0 0.0
    %1208 = vmatprep.subr.mxu0 0.0
    %1209 = vmatpush1.msra.mxu0 0.0
    %1210 = vmatprep.subr.mxu0 0.0
    %1211 = vmatpush1.msra.mxu0 0.0
    %1212 = vmatprep.subr.mxu0 0.0
    %1213 = vmatpush1.msra.mxu0 0.0
    %1214 = vmatprep.subr.mxu0 0.0
    %1215 = vmatpush1.msra.mxu0 0.0
    %1216 = vmatprep.subr.mxu0 0.0
    %1217 = vmatpush1.msra.mxu0 0.0
    %1218 = vmatprep.subr.mxu0 0.0
    %1219 = vmatpush1.msra.mxu0 %v143
    %1220 = vmatprep.subr.mxu0 0.0
    %1221 = vmatpush1.msra.mxu0 %v142
    %1222 = vmatprep.subr.mxu0 0.0
    %1223 = vmatpush1.msra.mxu0 %v141
    %1224 = vmatprep.subr.mxu0 0.0
    %1225 = vmatpush1.msra.mxu0 %v140
    %1226 = vmatprep.subr.mxu0 0.0
    %1227 = vmatpush2.msra.mxu0 0.0
    %1228 = vmatprep.subr.mxu0 0.0
    %1229 = vmatpush2.msra.mxu0 0.0
    %1230 = vmatprep.subr.mxu0 0.0
    %1231 = vmatpush2.msra.mxu0 0.0
    %1232 = vmatprep.subr.mxu0 0.0
    %1233 = vmatpush2.msra.mxu0 0.0
    %1234 = vmatprep.subr.mxu0 0.0
    %1235 = vmatpush2.msra.mxu0 0.0
    %1236 = vmatprep.subr.mxu0 0.0
    %1237 = vmatpush2.msra.mxu0 0.0
    %1238 = vmatprep.subr.mxu0 0.0
    %1239 = vmatpush2.msra.mxu0 0.0
    %1240 = vmatprep.subr.mxu0 0.0
    %1241 = vmatpush2.msra.mxu0 0.0
    %1242 = vmatprep.subr.mxu0 0.0
    %1243 = vmatpush2.msra.mxu0 0.0
    %1244 = vmatprep.subr.mxu0 0.0
    %1245 = vmatpush2.msra.mxu0 0.0
    %1246 = vmatprep.subr.mxu0 0.0
    %1247 = vmatpush2.msra.mxu0 0.0
    %1248 = vmatprep.subr.mxu0 0.0
    %1249 = vmatpush2.msra.mxu0 0.0
    %1250 = vmatprep.subr.mxu0 0.0
    %1251 = vmatpush2.msra.mxu0 0.0
    %1252 = vmatprep.subr.mxu0 0.0
    %1253 = vmatpush2.msra.mxu0 0.0
    %1254 = vmatprep.subr.mxu0 0.0
    %1255 = vmatpush2.msra.mxu0 0.0
    %1256 = vmatprep.subr.mxu0 0.0
    %1257 = vmatpush2.msra.mxu0 0.0
    %1258 = vmatprep.mubr.f32.mxu0 0.0
    %1259 = vmatmul.mubr.f32.gmra.mxu0 %v1192
    %v1260 = vpop.f32.mrf.mxu0
    %v1261 = vadd.f32 0.0, %v1260
    %v1262 = vpop.f32.mrf.mxu0
    %1263 = vdwg.mxu0
    %v1264 = vadd.f32 %v1188, %v1261
    %v1265 = vxor.u32 %v1264, 2147483648
    %v1266 = vmul.f32 %v1265, 1.442695
    %v1267 = vpow.pop %v1266
    %v1268 = vadd.f32 %v1267, 1.0
    %v1269 = vrcp.pop %v1268
    %v1270 = vmul.f32 1.0, %v1269
    %v1271 = vtanh.pop %v1264
    %1273 = vrot.lane.b32.xlu0 %v1117, 32
    %v1274 = vpop.permute.xlu0 %1273
    %v1276 = vmul.f32 %v1270, %v1274
    %1278 = vrot.lane.b32.xlu0 %v1271, 32
    %v1279 = vpop.permute.xlu0 %1278
    %v1281 = vmul.f32 %v1270, %v1279
    %1283 = vrot.lane.b32.xlu0 %v1281, 32
    %v1284 = vpop.permute.xlu0 %1283
    %v1286 = vadd.f32 %v1276, %v1284
    %v1287 = vtanh.pop %v1286
    %1289 = vrot.lane.b32.xlu0 %v1287, 32
    %v1290 = vpop.permute.xlu0 %1289
    %v1292 = vmul.f32 %v1270, %v1290
    %1294 = vrot.lane.b32.xlu0 %v1292, 64
    %v1295 = vpop.permute.xlu0 %1294
    %1297 = vst.msk [vmem:[#allocation4] sm:$0x3] %vm336, %v1295
    %1299 = vrot.lane.b32.xlu0 %v1286, 96
    %v1300 = vpop.permute.xlu0 %1299
    %1302 = vst.msk [vmem:[#allocation5] sm:$0x3] %vm336, %v1300
    %s1303 = scalar_lea.vmem [#allocation18], 10
    %1304 = vst.msk [vmem:[%s1303] sm:$0x3] %vm336, %v1295
    %s1305 = scalar_lea.vmem [#allocation6], 6
    %v1306 = vld [vmem:[%s1305] sm:$0x3]
    %v1307 = vld [vmem:[#allocation2] sm:$0x3]
    %v1308 = vld [vmem:[#allocation3] sm:$0x3]
    %v1310 = vsel %vm155, %v1306, 0
    %1312 = vmatprep.subr.mxu0 0.0
    %1313 = vmatpush1.msra.mxu0 0.0
    %1314 = vmatprep.subr.mxu0 0.0
    %1315 = vmatpush1.msra.mxu0 0.0
    %1316 = vmatprep.subr.mxu0 0.0
    %1317 = vmatpush1.msra.mxu0 0.0
    %1318 = vmatprep.subr.mxu0 0.0
    %1319 = vmatpush1.msra.mxu0 0.0
    %1320 = vmatprep.subr.mxu0 0.0
    %1321 = vmatpush1.msra.mxu0 0.0
    %1322 = vmatprep.subr.mxu0 0.0
    %1323 = vmatpush1.msra.mxu0 0.0
    %1324 = vmatprep.subr.mxu0 0.0
    %1325 = vmatpush1.msra.mxu0 0.0
    %1326 = vmatprep.subr.mxu0 0.0
    %1327 = vmatpush1.msra.mxu0 0.0
    %1328 = vmatprep.subr.mxu0 0.0
    %1329 = vmatpush1.msra.mxu0 0.0
    %1330 = vmatprep.subr.mxu0 0.0
    %1331 = vmatpush1.msra.mxu0 0.0
    %1332 = vmatprep.subr.mxu0 0.0
    %1333 = vmatpush1.msra.mxu0 0.0
    %1334 = vmatprep.subr.mxu0 0.0
    %1335 = vmatpush1.msra.mxu0 0.0
    %1336 = vmatprep.subr.mxu0 0.0
    %1337 = vmatpush1.msra.mxu0 0.0
    %1338 = vmatprep.subr.mxu0 0.0
    %1339 = vmatpush1.msra.mxu0 0.0
    %1340 = vmatprep.subr.mxu0 0.0
    %1341 = vmatpush1.msra.mxu0 %v133
    %1342 = vmatprep.subr.mxu0 0.0
    %1343 = vmatpush1.msra.mxu0 %v132
    %1344 = vmatprep.subr.mxu0 0.0
    %1345 = vmatpush2.msra.mxu0 0.0
    %1346 = vmatprep.subr.mxu0 0.0
    %1347 = vmatpush2.msra.mxu0 0.0
    %1348 = vmatprep.subr.mxu0 0.0
    %1349 = vmatpush2.msra.mxu0 0.0
    %1350 = vmatprep.subr.mxu0 0.0
    %1351 = vmatpush2.msra.mxu0 0.0
    %1352 = vmatprep.subr.mxu0 0.0
    %1353 = vmatpush2.msra.mxu0 0.0
    %1354 = vmatprep.subr.mxu0 0.0
    %1355 = vmatpush2.msra.mxu0 0.0
    %1356 = vmatprep.subr.mxu0 0.0
    %1357 = vmatpush2.msra.mxu0 0.0
    %1358 = vmatprep.subr.mxu0 0.0
    %1359 = vmatpush2.msra.mxu0 0.0
    %1360 = vmatprep.subr.mxu0 0.0
    %1361 = vmatpush2.msra.mxu0 0.0
    %1362 = vmatprep.subr.mxu0 0.0
    %1363 = vmatpush2.msra.mxu0 0.0
    %1364 = vmatprep.subr.mxu0 0.0
    %1365 = vmatpush2.msra.mxu0 0.0
    %1366 = vmatprep.subr.mxu0 0.0
    %1367 = vmatpush2.msra.mxu0 0.0
    %1368 = vmatprep.subr.mxu0 0.0
    %1369 = vmatpush2.msra.mxu0 0.0
    %1370 = vmatprep.subr.mxu0 0.0
    %1371 = vmatpush2.msra.mxu0 0.0
    %1372 = vmatprep.subr.mxu0 0.0
    %1373 = vmatpush2.msra.mxu0 0.0
    %1374 = vmatprep.subr.mxu0 0.0
    %1375 = vmatpush2.msra.mxu0 0.0
    %1376 = vmatprep.mubr.f32.mxu0 0.0
    %1377 = vmatmul.mubr.f32.gmra.mxu0 %v1310
    %v1378 = vpop.f32.mrf.mxu0
    %v1379 = vadd.f32 %v153, %v1378
    %v1380 = vpop.f32.mrf.mxu0
    %1381 = vdwg.mxu0
    %v1383 = vsel %vm229, %v1307, 0
    %1385 = vmatprep.subr.mxu0 0.0
    %1386 = vmatpush1.msra.mxu0 0.0
    %1387 = vmatprep.subr.mxu0 0.0
    %1388 = vmatpush1.msra.mxu0 0.0
    %1389 = vmatprep.subr.mxu0 0.0
    %1390 = vmatpush1.msra.mxu0 0.0
    %1391 = vmatprep.subr.mxu0 0.0
    %1392 = vmatpush1.msra.mxu0 0.0
    %1393 = vmatprep.subr.mxu0 0.0
    %1394 = vmatpush1.msra.mxu0 0.0
    %1395 = vmatprep.subr.mxu0 0.0
    %1396 = vmatpush1.msra.mxu0 0.0
    %1397 = vmatprep.subr.mxu0 0.0
    %1398 = vmatpush1.msra.mxu0 0.0
    %1399 = vmatprep.subr.mxu0 0.0
    %1400 = vmatpush1.msra.mxu0 0.0
    %1401 = vmatprep.subr.mxu0 0.0
    %1402 = vmatpush1.msra.mxu0 0.0
    %1403 = vmatprep.subr.mxu0 0.0
    %1404 = vmatpush1.msra.mxu0 0.0
    %1405 = vmatprep.subr.mxu0 0.0
    %1406 = vmatpush1.msra.mxu0 0.0
    %1407 = vmatprep.subr.mxu0 0.0
    %1408 = vmatpush1.msra.mxu0 0.0
    %1409 = vmatprep.subr.mxu0 0.0
    %1410 = vmatpush1.msra.mxu0 %v139
    %1411 = vmatprep.subr.mxu0 0.0
    %1412 = vmatpush1.msra.mxu0 %v138
    %1413 = vmatprep.subr.mxu0 0.0
    %1414 = vmatpush1.msra.mxu0 %v137
    %1415 = vmatprep.subr.mxu0 0.0
    %1416 = vmatpush1.msra.mxu0 %v136
    %1417 = vmatprep.subr.mxu0 0.0
    %1418 = vmatpush2.msra.mxu0 0.0
    %1419 = vmatprep.subr.mxu0 0.0
    %1420 = vmatpush2.msra.mxu0 0.0
    %1421 = vmatprep.subr.mxu0 0.0
    %1422 = vmatpush2.msra.mxu0 0.0
    %1423 = vmatprep.subr.mxu0 0.0
    %1424 = vmatpush2.msra.mxu0 0.0
    %1425 = vmatprep.subr.mxu0 0.0
    %1426 = vmatpush2.msra.mxu0 0.0
    %1427 = vmatprep.subr.mxu0 0.0
    %1428 = vmatpush2.msra.mxu0 0.0
    %1429 = vmatprep.subr.mxu0 0.0
    %1430 = vmatpush2.msra.mxu0 0.0
    %1431 = vmatprep.subr.mxu0 0.0
    %1432 = vmatpush2.msra.mxu0 0.0
    %1433 = vmatprep.subr.mxu0 0.0
    %1434 = vmatpush2.msra.mxu0 0.0
    %1435 = vmatprep.subr.mxu0 0.0
    %1436 = vmatpush2.msra.mxu0 0.0
    %1437 = vmatprep.subr.mxu0 0.0
    %1438 = vmatpush2.msra.mxu0 0.0
    %1439 = vmatprep.subr.mxu0 0.0
    %1440 = vmatpush2.msra.mxu0 0.0
    %1441 = vmatprep.subr.mxu0 0.0
    %1442 = vmatpush2.msra.mxu0 0.0
    %1443 = vmatprep.subr.mxu0 0.0
    %1444 = vmatpush2.msra.mxu0 0.0
    %1445 = vmatprep.subr.mxu0 0.0
    %1446 = vmatpush2.msra.mxu0 0.0
    %1447 = vmatprep.subr.mxu0 0.0
    %1448 = vmatpush2.msra.mxu0 0.0
    %1449 = vmatprep.mubr.f32.mxu0 0.0
    %1450 = vmatmul.mubr.f32.gmra.mxu0 %v1383
    %v1451 = vpop.f32.mrf.mxu0
    %v1452 = vadd.f32 0.0, %v1451
    %v1453 = vpop.f32.mrf.mxu0
    %1454 = vdwg.mxu0
    %v1455 = vadd.f32 %v1379, %v1452
    %v1456 = vxor.u32 %v1455, 2147483648
    %v1457 = vmul.f32 %v1456, 1.442695
    %v1458 = vpow.pop %v1457
    %v1459 = vadd.f32 %v1458, 1.0
    %v1460 = vrcp.pop %v1459
    %v1461 = vmul.f32 1.0, %v1460
    %v1462 = vtanh.pop %v1455
    %1464 = vrot.lane.b32.xlu0 %v1308, 32
    %v1465 = vpop.permute.xlu0 %1464
    %v1467 = vmul.f32 %v1461, %v1465
    %1469 = vrot.lane.b32.xlu0 %v1462, 32
    %v1470 = vpop.permute.xlu0 %1469
    %v1472 = vmul.f32 %v1461, %v1470
    %1474 = vrot.lane.b32.xlu0 %v1472, 32
    %v1475 = vpop.permute.xlu0 %1474
    %v1477 = vadd.f32 %v1467, %v1475
    %v1478 = vtanh.pop %v1477
    %1480 = vrot.lane.b32.xlu0 %v1478, 32
    %v1481 = vpop.permute.xlu0 %1480
    %v1483 = vmul.f32 %v1461, %v1481
    %1485 = vrot.lane.b32.xlu0 %v1483, 64
    %v1486 = vpop.permute.xlu0 %1485
    %1488 = vst.msk [vmem:[#allocation2] sm:$0x3] %vm336, %v1486
    %1490 = vrot.lane.b32.xlu0 %v1477, 96
    %v1491 = vpop.permute.xlu0 %1490
    %1493 = vst.msk [vmem:[#allocation3] sm:$0x3] %vm336, %v1491
    %s1494 = scalar_lea.vmem [#allocation17], 6
    %1495 = vst.msk [vmem:[%s1494] sm:$0x3] %vm336, %v1486
    %s1496 = scalar_lea.vmem [#allocation9], 8
    %v1497 = vld [vmem:[%s1496] sm:$0x3]
    %v1498 = vld [vmem:[#allocation4] sm:$0x3]
    %v1499 = vld [vmem:[#allocation5] sm:$0x3]
    %v1501 = vsel %vm155, %v1497, 0
    %1503 = vmatprep.subr.mxu0 0.0
    %1504 = vmatpush1.msra.mxu0 0.0
    %1505 = vmatprep.subr.mxu0 0.0
    %1506 = vmatpush1.msra.mxu0 0.0
    %1507 = vmatprep.subr.mxu0 0.0
    %1508 = vmatpush1.msra.mxu0 0.0
    %1509 = vmatprep.subr.mxu0 0.0
    %1510 = vmatpush1.msra.mxu0 0.0
    %1511 = vmatprep.subr.mxu0 0.0
    %1512 = vmatpush1.msra.mxu0 0.0
    %1513 = vmatprep.subr.mxu0 0.0
    %1514 = vmatpush1.msra.mxu0 0.0
    %1515 = vmatprep.subr.mxu0 0.0
    %1516 = vmatpush1.msra.mxu0 0.0
    %1517 = vmatprep.subr.mxu0 0.0
    %1518 = vmatpush1.msra.mxu0 0.0
    %1519 = vmatprep.subr.mxu0 0.0
    %1520 = vmatpush1.msra.mxu0 0.0
    %1521 = vmatprep.subr.mxu0 0.0
    %1522 = vmatpush1.msra.mxu0 0.0
    %1523 = vmatprep.subr.mxu0 0.0
    %1524 = vmatpush1.msra.mxu0 0.0
    %1525 = vmatprep.subr.mxu0 0.0
    %1526 = vmatpush1.msra.mxu0 0.0
    %1527 = vmatprep.subr.mxu0 0.0
    %1528 = vmatpush1.msra.mxu0 0.0
    %1529 = vmatprep.subr.mxu0 0.0
    %1530 = vmatpush1.msra.mxu0 0.0
    %1531 = vmatprep.subr.mxu0 0.0
    %1532 = vmatpush1.msra.mxu0 %v135
    %1533 = vmatprep.subr.mxu0 0.0
    %1534 = vmatpush1.msra.mxu0 %v134
    %1535 = vmatprep.subr.mxu0 0.0
    %1536 = vmatpush2.msra.mxu0 0.0
    %1537 = vmatprep.subr.mxu0 0.0
    %1538 = vmatpush2.msra.mxu0 0.0
    %1539 = vmatprep.subr.mxu0 0.0
    %1540 = vmatpush2.msra.mxu0 0.0
    %1541 = vmatprep.subr.mxu0 0.0
    %1542 = vmatpush2.msra.mxu0 0.0
    %1543 = vmatprep.subr.mxu0 0.0
    %1544 = vmatpush2.msra.mxu0 0.0
    %1545 = vmatprep.subr.mxu0 0.0
    %1546 = vmatpush2.msra.mxu0 0.0
    %1547 = vmatprep.subr.mxu0 0.0
    %1548 = vmatpush2.msra.mxu0 0.0
    %1549 = vmatprep.subr.mxu0 0.0
    %1550 = vmatpush2.msra.mxu0 0.0
    %1551 = vmatprep.subr.mxu0 0.0
    %1552 = vmatpush2.msra.mxu0 0.0
    %1553 = vmatprep.subr.mxu0 0.0
    %1554 = vmatpush2.msra.mxu0 0.0
    %1555 = vmatprep.subr.mxu0 0.0
    %1556 = vmatpush2.msra.mxu0 0.0
    %1557 = vmatprep.subr.mxu0 0.0
    %1558 = vmatpush2.msra.mxu0 0.0
    %1559 = vmatprep.subr.mxu0 0.0
    %1560 = vmatpush2.msra.mxu0 0.0
    %1561 = vmatprep.subr.mxu0 0.0
    %1562 = vmatpush2.msra.mxu0 0.0
    %1563 = vmatprep.subr.mxu0 0.0
    %1564 = vmatpush2.msra.mxu0 0.0
    %1565 = vmatprep.subr.mxu0 0.0
    %1566 = vmatpush2.msra.mxu0 0.0
    %1567 = vmatprep.mubr.f32.mxu0 0.0
    %1568 = vmatmul.mubr.f32.gmra.mxu0 %v1501
    %v1569 = vpop.f32.mrf.mxu0
    %v1570 = vadd.f32 %v352, %v1569
    %v1571 = vpop.f32.mrf.mxu0
    %1572 = vdwg.mxu0
    %v1574 = vsel %vm229, %v1498, 0
    %1576 = vmatprep.subr.mxu0 0.0
    %1577 = vmatpush1.msra.mxu0 0.0
    %1578 = vmatprep.subr.mxu0 0.0
    %1579 = vmatpush1.msra.mxu0 0.0
    %1580 = vmatprep.subr.mxu0 0.0
    %1581 = vmatpush1.msra.mxu0 0.0
    %1582 = vmatprep.subr.mxu0 0.0
    %1583 = vmatpush1.msra.mxu0 0.0
    %1584 = vmatprep.subr.mxu0 0.0
    %1585 = vmatpush1.msra.mxu0 0.0
    %1586 = vmatprep.subr.mxu0 0.0
    %1587 = vmatpush1.msra.mxu0 0.0
    %1588 = vmatprep.subr.mxu0 0.0
    %1589 = vmatpush1.msra.mxu0 0.0
    %1590 = vmatprep.subr.mxu0 0.0
    %1591 = vmatpush1.msra.mxu0 0.0
    %1592 = vmatprep.subr.mxu0 0.0
    %1593 = vmatpush1.msra.mxu0 0.0
    %1594 = vmatprep.subr.mxu0 0.0
    %1595 = vmatpush1.msra.mxu0 0.0
    %1596 = vmatprep.subr.mxu0 0.0
    %1597 = vmatpush1.msra.mxu0 0.0
    %1598 = vmatprep.subr.mxu0 0.0
    %1599 = vmatpush1.msra.mxu0 0.0
    %1600 = vmatprep.subr.mxu0 0.0
    %1601 = vmatpush1.msra.mxu0 %v143
    %1602 = vmatprep.subr.mxu0 0.0
    %1603 = vmatpush1.msra.mxu0 %v142
    %1604 = vmatprep.subr.mxu0 0.0
    %1605 = vmatpush1.msra.mxu0 %v141
    %1606 = vmatprep.subr.mxu0 0.0
    %1607 = vmatpush1.msra.mxu0 %v140
    %1608 = vmatprep.subr.mxu0 0.0
    %1609 = vmatpush2.msra.mxu0 0.0
    %1610 = vmatprep.subr.mxu0 0.0
    %1611 = vmatpush2.msra.mxu0 0.0
    %1612 = vmatprep.subr.mxu0 0.0
    %1613 = vmatpush2.msra.mxu0 0.0
    %1614 = vmatprep.subr.mxu0 0.0
    %1615 = vmatpush2.msra.mxu0 0.0
    %1616 = vmatprep.subr.mxu0 0.0
    %1617 = vmatpush2.msra.mxu0 0.0
    %1618 = vmatprep.subr.mxu0 0.0
    %1619 = vmatpush2.msra.mxu0 0.0
    %1620 = vmatprep.subr.mxu0 0.0
    %1621 = vmatpush2.msra.mxu0 0.0
    %1622 = vmatprep.subr.mxu0 0.0
    %1623 = vmatpush2.msra.mxu0 0.0
    %1624 = vmatprep.subr.mxu0 0.0
    %1625 = vmatpush2.msra.mxu0 0.0
    %1626 = vmatprep.subr.mxu0 0.0
    %1627 = vmatpush2.msra.mxu0 0.0
    %1628 = vmatprep.subr.mxu0 0.0
    %1629 = vmatpush2.msra.mxu0 0.0
    %1630 = vmatprep.subr.mxu0 0.0
    %1631 = vmatpush2.msra.mxu0 0.0
    %1632 = vmatprep.subr.mxu0 0.0
    %1633 = vmatpush2.msra.mxu0 0.0
    %1634 = vmatprep.subr.mxu0 0.0
    %1635 = vmatpush2.msra.mxu0 0.0
    %1636 = vmatprep.subr.mxu0 0.0
    %1637 = vmatpush2.msra.mxu0 0.0
    %1638 = vmatprep.subr.mxu0 0.0
    %1639 = vmatpush2.msra.mxu0 0.0
    %1640 = vmatprep.mubr.f32.mxu0 0.0
    %1641 = vmatmul.mubr.f32.gmra.mxu0 %v1574
    %v1642 = vpop.f32.mrf.mxu0
    %v1643 = vadd.f32 0.0, %v1642
    %v1644 = vpop.f32.mrf.mxu0
    %1645 = vdwg.mxu0
    %v1646 = vadd.f32 %v1570, %v1643
    %v1647 = vxor.u32 %v1646, 2147483648
    %v1648 = vmul.f32 %v1647, 1.442695
    %v1649 = vpow.pop %v1648
    %v1650 = vadd.f32 %v1649, 1.0
    %v1651 = vrcp.pop %v1650
    %v1652 = vmul.f32 1.0, %v1651
    %v1653 = vtanh.pop %v1646
    %1655 = vrot.lane.b32.xlu0 %v1499, 32
    %v1656 = vpop.permute.xlu0 %1655
    %v1658 = vmul.f32 %v1652, %v1656
    %1660 = vrot.lane.b32.xlu0 %v1653, 32
    %v1661 = vpop.permute.xlu0 %1660
    %v1663 = vmul.f32 %v1652, %v1661
    %1665 = vrot.lane.b32.xlu0 %v1663, 32
    %v1666 = vpop.permute.xlu0 %1665
    %v1668 = vadd.f32 %v1658, %v1666
    %v1669 = vtanh.pop %v1668
    %1671 = vrot.lane.b32.xlu0 %v1669, 32
    %v1672 = vpop.permute.xlu0 %1671
    %v1674 = vmul.f32 %v1652, %v1672
    %1676 = vrot.lane.b32.xlu0 %v1674, 64
    %v1677 = vpop.permute.xlu0 %1676
    %1679 = vst.msk [vmem:[#allocation4] sm:$0x3] %vm336, %v1677
    %1681 = vrot.lane.b32.xlu0 %v1668, 96
    %v1682 = vpop.permute.xlu0 %1681
    %1684 = vst.msk [vmem:[#allocation5] sm:$0x3] %vm336, %v1682
    %s1685 = scalar_lea.vmem [#allocation18], 8
    %1686 = vst.msk [vmem:[%s1685] sm:$0x3] %vm336, %v1677
    %s1687 = scalar_lea.vmem [#allocation6], 8
    %v1688 = vld [vmem:[%s1687] sm:$0x3]
    %v1689 = vld [vmem:[#allocation2] sm:$0x3]
    %v1690 = vld [vmem:[#allocation3] sm:$0x3]
    %v1692 = vsel %vm155, %v1688, 0
    %1694 = vmatprep.subr.mxu0 0.0
    %1695 = vmatpush1.msra.mxu0 0.0
    %1696 = vmatprep.subr.mxu0 0.0
    %1697 = vmatpush1.msra.mxu0 0.0
    %1698 = vmatprep.subr.mxu0 0.0
    %1699 = vmatpush1.msra.mxu0 0.0
    %1700 = vmatprep.subr.mxu0 0.0
    %1701 = vmatpush1.msra.mxu0 0.0
    %1702 = vmatprep.subr.mxu0 0.0
    %1703 = vmatpush1.msra.mxu0 0.0
    %1704 = vmatprep.subr.mxu0 0.0
    %1705 = vmatpush1.msra.mxu0 0.0
    %1706 = vmatprep.subr.mxu0 0.0
    %1707 = vmatpush1.msra.mxu0 0.0
    %1708 = vmatprep.subr.mxu0 0.0
    %1709 = vmatpush1.msra.mxu0 0.0
    %1710 = vmatprep.subr.mxu0 0.0
    %1711 = vmatpush1.msra.mxu0 0.0
    %1712 = vmatprep.subr.mxu0 0.0
    %1713 = vmatpush1.msra.mxu0 0.0
    %1714 = vmatprep.subr.mxu0 0.0
    %1715 = vmatpush1.msra.mxu0 0.0
    %1716 = vmatprep.subr.mxu0 0.0
    %1717 = vmatpush1.msra.mxu0 0.0
    %1718 = vmatprep.subr.mxu0 0.0
    %1719 = vmatpush1.msra.mxu0 0.0
    %1720 = vmatprep.subr.mxu0 0.0
    %1721 = vmatpush1.msra.mxu0 0.0
    %1722 = vmatprep.subr.mxu0 0.0
    %1723 = vmatpush1.msra.mxu0 %v133
    %1724 = vmatprep.subr.mxu0 0.0
    %1725 = vmatpush1.msra.mxu0 %v132
    %1726 = vmatprep.subr.mxu0 0.0
    %1727 = vmatpush2.msra.mxu0 0.0
    %1728 = vmatprep.subr.mxu0 0.0
    %1729 = vmatpush2.msra.mxu0 0.0
    %1730 = vmatprep.subr.mxu0 0.0
    %1731 = vmatpush2.msra.mxu0 0.0
    %1732 = vmatprep.subr.mxu0 0.0
    %1733 = vmatpush2.msra.mxu0 0.0
    %1734 = vmatprep.subr.mxu0 0.0
    %1735 = vmatpush2.msra.mxu0 0.0
    %1736 = vmatprep.subr.mxu0 0.0
    %1737 = vmatpush2.msra.mxu0 0.0
    %1738 = vmatprep.subr.mxu0 0.0
    %1739 = vmatpush2.msra.mxu0 0.0
    %1740 = vmatprep.subr.mxu0 0.0
    %1741 = vmatpush2.msra.mxu0 0.0
    %1742 = vmatprep.subr.mxu0 0.0
    %1743 = vmatpush2.msra.mxu0 0.0
    %1744 = vmatprep.subr.mxu0 0.0
    %1745 = vmatpush2.msra.mxu0 0.0
    %1746 = vmatprep.subr.mxu0 0.0
    %1747 = vmatpush2.msra.mxu0 0.0
    %1748 = vmatprep.subr.mxu0 0.0
    %1749 = vmatpush2.msra.mxu0 0.0
    %1750 = vmatprep.subr.mxu0 0.0
    %1751 = vmatpush2.msra.mxu0 0.0
    %1752 = vmatprep.subr.mxu0 0.0
    %1753 = vmatpush2.msra.mxu0 0.0
    %1754 = vmatprep.subr.mxu0 0.0
    %1755 = vmatpush2.msra.mxu0 0.0
    %1756 = vmatprep.subr.mxu0 0.0
    %1757 = vmatpush2.msra.mxu0 0.0
    %1758 = vmatprep.mubr.f32.mxu0 0.0
    %1759 = vmatmul.mubr.f32.gmra.mxu0 %v1692
    %v1760 = vpop.f32.mrf.mxu0
    %v1761 = vadd.f32 %v153, %v1760
    %v1762 = vpop.f32.mrf.mxu0
    %1763 = vdwg.mxu0
    %v1765 = vsel %vm229, %v1689, 0
    %1767 = vmatprep.subr.mxu0 0.0
    %1768 = vmatpush1.msra.mxu0 0.0
    %1769 = vmatprep.subr.mxu0 0.0
    %1770 = vmatpush1.msra.mxu0 0.0
    %1771 = vmatprep.subr.mxu0 0.0
    %1772 = vmatpush1.msra.mxu0 0.0
    %1773 = vmatprep.subr.mxu0 0.0
    %1774 = vmatpush1.msra.mxu0 0.0
    %1775 = vmatprep.subr.mxu0 0.0
    %1776 = vmatpush1.msra.mxu0 0.0
    %1777 = vmatprep.subr.mxu0 0.0
    %1778 = vmatpush1.msra.mxu0 0.0
    %1779 = vmatprep.subr.mxu0 0.0
    %1780 = vmatpush1.msra.mxu0 0.0
    %1781 = vmatprep.subr.mxu0 0.0
    %1782 = vmatpush1.msra.mxu0 0.0
    %1783 = vmatprep.subr.mxu0 0.0
    %1784 = vmatpush1.msra.mxu0 0.0
    %1785 = vmatprep.subr.mxu0 0.0
    %1786 = vmatpush1.msra.mxu0 0.0
    %1787 = vmatprep.subr.mxu0 0.0
    %1788 = vmatpush1.msra.mxu0 0.0
    %1789 = vmatprep.subr.mxu0 0.0
    %1790 = vmatpush1.msra.mxu0 0.0
    %1791 = vmatprep.subr.mxu0 0.0
    %1792 = vmatpush1.msra.mxu0 %v139
    %1793 = vmatprep.subr.mxu0 0.0
    %1794 = vmatpush1.msra.mxu0 %v138
    %1795 = vmatprep.subr.mxu0 0.0
    %1796 = vmatpush1.msra.mxu0 %v137
    %1797 = vmatprep.subr.mxu0 0.0
    %1798 = vmatpush1.msra.mxu0 %v136
    %1799 = vmatprep.subr.mxu0 0.0
    %1800 = vmatpush2.msra.mxu0 0.0
    %1801 = vmatprep.subr.mxu0 0.0
    %1802 = vmatpush2.msra.mxu0 0.0
    %1803 = vmatprep.subr.mxu0 0.0
    %1804 = vmatpush2.msra.mxu0 0.0
    %1805 = vmatprep.subr.mxu0 0.0
    %1806 = vmatpush2.msra.mxu0 0.0
    %1807 = vmatprep.subr.mxu0 0.0
    %1808 = vmatpush2.msra.mxu0 0.0
    %1809 = vmatprep.subr.mxu0 0.0
    %1810 = vmatpush2.msra.mxu0 0.0
    %1811 = vmatprep.subr.mxu0 0.0
    %1812 = vmatpush2.msra.mxu0 0.0
    %1813 = vmatprep.subr.mxu0 0.0
    %1814 = vmatpush2.msra.mxu0 0.0
    %1815 = vmatprep.subr.mxu0 0.0
    %1816 = vmatpush2.msra.mxu0 0.0
    %1817 = vmatprep.subr.mxu0 0.0
    %1818 = vmatpush2.msra.mxu0 0.0
    %1819 = vmatprep.subr.mxu0 0.0
    %1820 = vmatpush2.msra.mxu0 0.0
    %1821 = vmatprep.subr.mxu0 0.0
    %1822 = vmatpush2.msra.mxu0 0.0
    %1823 = vmatprep.subr.mxu0 0.0
    %1824 = vmatpush2.msra.mxu0 0.0
    %1825 = vmatprep.subr.mxu0 0.0
    %1826 = vmatpush2.msra.mxu0 0.0
    %1827 = vmatprep.subr.mxu0 0.0
    %1828 = vmatpush2.msra.mxu0 0.0
    %1829 = vmatprep.subr.mxu0 0.0
    %1830 = vmatpush2.msra.mxu0 0.0
    %1831 = vmatprep.mubr.f32.mxu0 0.0
    %1832 = vmatmul.mubr.f32.gmra.mxu0 %v1765
    %v1833 = vpop.f32.mrf.mxu0
    %v1834 = vadd.f32 0.0, %v1833
    %v1835 = vpop.f32.mrf.mxu0
    %1836 = vdwg.mxu0
    %v1837 = vadd.f32 %v1761, %v1834
    %v1838 = vxor.u32 %v1837, 2147483648
    %v1839 = vmul.f32 %v1838, 1.442695
    %v1840 = vpow.pop %v1839
    %v1841 = vadd.f32 %v1840, 1.0
    %v1842 = vrcp.pop %v1841
    %v1843 = vmul.f32 1.0, %v1842
    %v1844 = vtanh.pop %v1837
    %1846 = vrot.lane.b32.xlu0 %v1690, 32
    %v1847 = vpop.permute.xlu0 %1846
    %v1849 = vmul.f32 %v1843, %v1847
    %1851 = vrot.lane.b32.xlu0 %v1844, 32
    %v1852 = vpop.permute.xlu0 %1851
    %v1854 = vmul.f32 %v1843, %v1852
    %1856 = vrot.lane.b32.xlu0 %v1854, 32
    %v1857 = vpop.permute.xlu0 %1856
    %v1859 = vadd.f32 %v1849, %v1857
    %v1860 = vtanh.pop %v1859
    %1862 = vrot.lane.b32.xlu0 %v1860, 32
    %v1863 = vpop.permute.xlu0 %1862
    %v1865 = vmul.f32 %v1843, %v1863
    %1867 = vrot.lane.b32.xlu0 %v1865, 64
    %v1868 = vpop.permute.xlu0 %1867
    %1870 = vst.msk [vmem:[#allocation2] sm:$0x3] %vm336, %v1868
    %1872 = vrot.lane.b32.xlu0 %v1859, 96
    %v1873 = vpop.permute.xlu0 %1872
    %1875 = vst.msk [vmem:[#allocation3] sm:$0x3] %vm336, %v1873
    %s1876 = scalar_lea.vmem [#allocation17], 8
    %1877 = vst.msk [vmem:[%s1876] sm:$0x3] %vm336, %v1868
    %s1878 = scalar_lea.vmem [#allocation9], 6
    %v1879 = vld [vmem:[%s1878] sm:$0x3]
    %v1880 = vld [vmem:[#allocation4] sm:$0x3]
    %v1881 = vld [vmem:[#allocation5] sm:$0x3]
    %v1883 = vsel %vm155, %v1879, 0
    %1885 = vmatprep.subr.mxu0 0.0
    %1886 = vmatpush1.msra.mxu0 0.0
    %1887 = vmatprep.subr.mxu0 0.0
    %1888 = vmatpush1.msra.mxu0 0.0
    %1889 = vmatprep.subr.mxu0 0.0
    %1890 = vmatpush1.msra.mxu0 0.0
    %1891 = vmatprep.subr.mxu0 0.0
    %1892 = vmatpush1.msra.mxu0 0.0
    %1893 = vmatprep.subr.mxu0 0.0
    %1894 = vmatpush1.msra.mxu0 0.0
    %1895 = vmatprep.subr.mxu0 0.0
    %1896 = vmatpush1.msra.mxu0 0.0
    %1897 = vmatprep.subr.mxu0 0.0
    %1898 = vmatpush1.msra.mxu0 0.0
    %1899 = vmatprep.subr.mxu0 0.0
    %1900 = vmatpush1.msra.mxu0 0.0
    %1901 = vmatprep.subr.mxu0 0.0
    %1902 = vmatpush1.msra.mxu0 0.0
    %1903 = vmatprep.subr.mxu0 0.0
    %1904 = vmatpush1.msra.mxu0 0.0
    %1905 = vmatprep.subr.mxu0 0.0
    %1906 = vmatpush1.msra.mxu0 0.0
    %1907 = vmatprep.subr.mxu0 0.0
    %1908 = vmatpush1.msra.mxu0 0.0
    %1909 = vmatprep.subr.mxu0 0.0
    %1910 = vmatpush1.msra.mxu0 0.0
    %1911 = vmatprep.subr.mxu0 0.0
    %1912 = vmatpush1.msra.mxu0 0.0
    %1913 = vmatprep.subr.mxu0 0.0
    %1914 = vmatpush1.msra.mxu0 %v135
    %1915 = vmatprep.subr.mxu0 0.0
    %1916 = vmatpush1.msra.mxu0 %v134
    %1917 = vmatprep.subr.mxu0 0.0
    %1918 = vmatpush2.msra.mxu0 0.0
    %1919 = vmatprep.subr.mxu0 0.0
    %1920 = vmatpush2.msra.mxu0 0.0
    %1921 = vmatprep.subr.mxu0 0.0
    %1922 = vmatpush2.msra.mxu0 0.0
    %1923 = vmatprep.subr.mxu0 0.0
    %1924 = vmatpush2.msra.mxu0 0.0
    %1925 = vmatprep.subr.mxu0 0.0
    %1926 = vmatpush2.msra.mxu0 0.0
    %1927 = vmatprep.subr.mxu0 0.0
    %1928 = vmatpush2.msra.mxu0 0.0
    %1929 = vmatprep.subr.mxu0 0.0
    %1930 = vmatpush2.msra.mxu0 0.0
    %1931 = vmatprep.subr.mxu0 0.0
    %1932 = vmatpush2.msra.mxu0 0.0
    %1933 = vmatprep.subr.mxu0 0.0
    %1934 = vmatpush2.msra.mxu0 0.0
    %1935 = vmatprep.subr.mxu0 0.0
    %1936 = vmatpush2.msra.mxu0 0.0
    %1937 = vmatprep.subr.mxu0 0.0
    %1938 = vmatpush2.msra.mxu0 0.0
    %1939 = vmatprep.subr.mxu0 0.0
    %1940 = vmatpush2.msra.mxu0 0.0
    %1941 = vmatprep.subr.mxu0 0.0
    %1942 = vmatpush2.msra.mxu0 0.0
    %1943 = vmatprep.subr.mxu0 0.0
    %1944 = vmatpush2.msra.mxu0 0.0
    %1945 = vmatprep.subr.mxu0 0.0
    %1946 = vmatpush2.msra.mxu0 0.0
    %1947 = vmatprep.subr.mxu0 0.0
    %1948 = vmatpush2.msra.mxu0 0.0
    %1949 = vmatprep.mubr.f32.mxu0 0.0
    %1950 = vmatmul.mubr.f32.gmra.mxu0 %v1883
    %v1951 = vpop.f32.mrf.mxu0
    %v1952 = vadd.f32 %v352, %v1951
    %v1953 = vpop.f32.mrf.mxu0
    %1954 = vdwg.mxu0
    %v1956 = vsel %vm229, %v1880, 0
    %1958 = vmatprep.subr.mxu0 0.0
    %1959 = vmatpush1.msra.mxu0 0.0
    %1960 = vmatprep.subr.mxu0 0.0
    %1961 = vmatpush1.msra.mxu0 0.0
    %1962 = vmatprep.subr.mxu0 0.0
    %1963 = vmatpush1.msra.mxu0 0.0
    %1964 = vmatprep.subr.mxu0 0.0
    %1965 = vmatpush1.msra.mxu0 0.0
    %1966 = vmatprep.subr.mxu0 0.0
    %1967 = vmatpush1.msra.mxu0 0.0
    %1968 = vmatprep.subr.mxu0 0.0
    %1969 = vmatpush1.msra.mxu0 0.0
    %1970 = vmatprep.subr.mxu0 0.0
    %1971 = vmatpush1.msra.mxu0 0.0
    %1972 = vmatprep.subr.mxu0 0.0
    %1973 = vmatpush1.msra.mxu0 0.0
    %1974 = vmatprep.subr.mxu0 0.0
    %1975 = vmatpush1.msra.mxu0 0.0
    %1976 = vmatprep.subr.mxu0 0.0
    %1977 = vmatpush1.msra.mxu0 0.0
    %1978 = vmatprep.subr.mxu0 0.0
    %1979 = vmatpush1.msra.mxu0 0.0
    %1980 = vmatprep.subr.mxu0 0.0
    %1981 = vmatpush1.msra.mxu0 0.0
    %1982 = vmatprep.subr.mxu0 0.0
    %1983 = vmatpush1.msra.mxu0 %v143
    %1984 = vmatprep.subr.mxu0 0.0
    %1985 = vmatpush1.msra.mxu0 %v142
    %1986 = vmatprep.subr.mxu0 0.0
    %1987 = vmatpush1.msra.mxu0 %v141
    %1988 = vmatprep.subr.mxu0 0.0
    %1989 = vmatpush1.msra.mxu0 %v140
    %1990 = vmatprep.subr.mxu0 0.0
    %1991 = vmatpush2.msra.mxu0 0.0
    %1992 = vmatprep.subr.mxu0 0.0
    %1993 = vmatpush2.msra.mxu0 0.0
    %1994 = vmatprep.subr.mxu0 0.0
    %1995 = vmatpush2.msra.mxu0 0.0
    %1996 = vmatprep.subr.mxu0 0.0
    %1997 = vmatpush2.msra.mxu0 0.0
    %1998 = vmatprep.subr.mxu0 0.0
    %1999 = vmatpush2.msra.mxu0 0.0
    %2000 = vmatprep.subr.mxu0 0.0
    %2001 = vmatpush2.msra.mxu0 0.0
    %2002 = vmatprep.subr.mxu0 0.0
    %2003 = vmatpush2.msra.mxu0 0.0
    %2004 = vmatprep.subr.mxu0 0.0
    %2005 = vmatpush2.msra.mxu0 0.0
    %2006 = vmatprep.subr.mxu0 0.0
    %2007 = vmatpush2.msra.mxu0 0.0
    %2008 = vmatprep.subr.mxu0 0.0
    %2009 = vmatpush2.msra.mxu0 0.0
    %2010 = vmatprep.subr.mxu0 0.0
    %2011 = vmatpush2.msra.mxu0 0.0
    %2012 = vmatprep.subr.mxu0 0.0
    %2013 = vmatpush2.msra.mxu0 0.0
    %2014 = vmatprep.subr.mxu0 0.0
    %2015 = vmatpush2.msra.mxu0 0.0
    %2016 = vmatprep.subr.mxu0 0.0
    %2017 = vmatpush2.msra.mxu0 0.0
    %2018 = vmatprep.subr.mxu0 0.0
    %2019 = vmatpush2.msra.mxu0 0.0
    %2020 = vmatprep.subr.mxu0 0.0
    %2021 = vmatpush2.msra.mxu0 0.0
    %2022 = vmatprep.mubr.f32.mxu0 0.0
    %2023 = vmatmul.mubr.f32.gmra.mxu0 %v1956
    %v2024 = vpop.f32.mrf.mxu0
    %v2025 = vadd.f32 0.0, %v2024
    %v2026 = vpop.f32.mrf.mxu0
    %2027 = vdwg.mxu0
    %v2028 = vadd.f32 %v1952, %v2025
    %v2029 = vxor.u32 %v2028, 2147483648
    %v2030 = vmul.f32 %v2029, 1.442695
    %v2031 = vpow.pop %v2030
    %v2032 = vadd.f32 %v2031, 1.0
    %v2033 = vrcp.pop %v2032
    %v2034 = vmul.f32 1.0, %v2033
    %v2035 = vtanh.pop %v2028
    %2037 = vrot.lane.b32.xlu0 %v1881, 32
    %v2038 = vpop.permute.xlu0 %2037
    %v2040 = vmul.f32 %v2034, %v2038
    %2042 = vrot.lane.b32.xlu0 %v2035, 32
    %v2043 = vpop.permute.xlu0 %2042
    %v2045 = vmul.f32 %v2034, %v2043
    %2047 = vrot.lane.b32.xlu0 %v2045, 32
    %v2048 = vpop.permute.xlu0 %2047
    %v2050 = vadd.f32 %v2040, %v2048
    %v2051 = vtanh.pop %v2050
    %2053 = vrot.lane.b32.xlu0 %v2051, 32
    %v2054 = vpop.permute.xlu0 %2053
    %v2056 = vmul.f32 %v2034, %v2054
    %2058 = vrot.lane.b32.xlu0 %v2056, 64
    %v2059 = vpop.permute.xlu0 %2058
    %2061 = vst.msk [vmem:[#allocation4] sm:$0x3] %vm336, %v2059
    %2063 = vrot.lane.b32.xlu0 %v2050, 96
    %v2064 = vpop.permute.xlu0 %2063
    %2066 = vst.msk [vmem:[#allocation5] sm:$0x3] %vm336, %v2064
    %s2067 = scalar_lea.vmem [#allocation18], 6
    %2068 = vst.msk [vmem:[%s2067] sm:$0x3] %vm336, %v2059
    %s2069 = scalar_lea.vmem [#allocation6], 10
    %v2070 = vld [vmem:[%s2069] sm:$0x3]
    %v2071 = vld [vmem:[#allocation2] sm:$0x3]
    %v2072 = vld [vmem:[#allocation3] sm:$0x3]
    %v2074 = vsel %vm155, %v2070, 0
    %2076 = vmatprep.subr.mxu0 0.0
    %2077 = vmatpush1.msra.mxu0 0.0
    %2078 = vmatprep.subr.mxu0 0.0
    %2079 = vmatpush1.msra.mxu0 0.0
    %2080 = vmatprep.subr.mxu0 0.0
    %2081 = vmatpush1.msra.mxu0 0.0
    %2082 = vmatprep.subr.mxu0 0.0
    %2083 = vmatpush1.msra.mxu0 0.0
    %2084 = vmatprep.subr.mxu0 0.0
    %2085 = vmatpush1.msra.mxu0 0.0
    %2086 = vmatprep.subr.mxu0 0.0
    %2087 = vmatpush1.msra.mxu0 0.0
    %2088 = vmatprep.subr.mxu0 0.0
    %2089 = vmatpush1.msra.mxu0 0.0
    %2090 = vmatprep.subr.mxu0 0.0
    %2091 = vmatpush1.msra.mxu0 0.0
    %2092 = vmatprep.subr.mxu0 0.0
    %2093 = vmatpush1.msra.mxu0 0.0
    %2094 = vmatprep.subr.mxu0 0.0
    %2095 = vmatpush1.msra.mxu0 0.0
    %2096 = vmatprep.subr.mxu0 0.0
    %2097 = vmatpush1.msra.mxu0 0.0
    %2098 = vmatprep.subr.mxu0 0.0
    %2099 = vmatpush1.msra.mxu0 0.0
    %2100 = vmatprep.subr.mxu0 0.0
    %2101 = vmatpush1.msra.mxu0 0.0
    %2102 = vmatprep.subr.mxu0 0.0
    %2103 = vmatpush1.msra.mxu0 0.0
    %2104 = vmatprep.subr.mxu0 0.0
    %2105 = vmatpush1.msra.mxu0 %v133
    %2106 = vmatprep.subr.mxu0 0.0
    %2107 = vmatpush1.msra.mxu0 %v132
    %2108 = vmatprep.subr.mxu0 0.0
    %2109 = vmatpush2.msra.mxu0 0.0
    %2110 = vmatprep.subr.mxu0 0.0
    %2111 = vmatpush2.msra.mxu0 0.0
    %2112 = vmatprep.subr.mxu0 0.0
    %2113 = vmatpush2.msra.mxu0 0.0
    %2114 = vmatprep.subr.mxu0 0.0
    %2115 = vmatpush2.msra.mxu0 0.0
    %2116 = vmatprep.subr.mxu0 0.0
    %2117 = vmatpush2.msra.mxu0 0.0
    %2118 = vmatprep.subr.mxu0 0.0
    %2119 = vmatpush2.msra.mxu0 0.0
    %2120 = vmatprep.subr.mxu0 0.0
    %2121 = vmatpush2.msra.mxu0 0.0
    %2122 = vmatprep.subr.mxu0 0.0
    %2123 = vmatpush2.msra.mxu0 0.0
    %2124 = vmatprep.subr.mxu0 0.0
    %2125 = vmatpush2.msra.mxu0 0.0
    %2126 = vmatprep.subr.mxu0 0.0
    %2127 = vmatpush2.msra.mxu0 0.0
    %2128 = vmatprep.subr.mxu0 0.0
    %2129 = vmatpush2.msra.mxu0 0.0
    %2130 = vmatprep.subr.mxu0 0.0
    %2131 = vmatpush2.msra.mxu0 0.0
    %2132 = vmatprep.subr.mxu0 0.0
    %2133 = vmatpush2.msra.mxu0 0.0
    %2134 = vmatprep.subr.mxu0 0.0
    %2135 = vmatpush2.msra.mxu0 0.0
    %2136 = vmatprep.subr.mxu0 0.0
    %2137 = vmatpush2.msra.mxu0 0.0
    %2138 = vmatprep.subr.mxu0 0.0
    %2139 = vmatpush2.msra.mxu0 0.0
    %2140 = vmatprep.mubr.f32.mxu0 0.0
    %2141 = vmatmul.mubr.f32.gmra.mxu0 %v2074
    %v2142 = vpop.f32.mrf.mxu0
    %v2143 = vadd.f32 %v153, %v2142
    %v2144 = vpop.f32.mrf.mxu0
    %2145 = vdwg.mxu0
    %v2147 = vsel %vm229, %v2071, 0
    %2149 = vmatprep.subr.mxu0 0.0
    %2150 = vmatpush1.msra.mxu0 0.0
    %2151 = vmatprep.subr.mxu0 0.0
    %2152 = vmatpush1.msra.mxu0 0.0
    %2153 = vmatprep.subr.mxu0 0.0
    %2154 = vmatpush1.msra.mxu0 0.0
    %2155 = vmatprep.subr.mxu0 0.0
    %2156 = vmatpush1.msra.mxu0 0.0
    %2157 = vmatprep.subr.mxu0 0.0
    %2158 = vmatpush1.msra.mxu0 0.0
    %2159 = vmatprep.subr.mxu0 0.0
    %2160 = vmatpush1.msra.mxu0 0.0
    %2161 = vmatprep.subr.mxu0 0.0
    %2162 = vmatpush1.msra.mxu0 0.0
    %2163 = vmatprep.subr.mxu0 0.0
    %2164 = vmatpush1.msra.mxu0 0.0
    %2165 = vmatprep.subr.mxu0 0.0
    %2166 = vmatpush1.msra.mxu0 0.0
    %2167 = vmatprep.subr.mxu0 0.0
    %2168 = vmatpush1.msra.mxu0 0.0
    %2169 = vmatprep.subr.mxu0 0.0
    %2170 = vmatpush1.msra.mxu0 0.0
    %2171 = vmatprep.subr.mxu0 0.0
    %2172 = vmatpush1.msra.mxu0 0.0
    %2173 = vmatprep.subr.mxu0 0.0
    %2174 = vmatpush1.msra.mxu0 %v139
    %2175 = vmatprep.subr.mxu0 0.0
    %2176 = vmatpush1.msra.mxu0 %v138
    %2177 = vmatprep.subr.mxu0 0.0
    %2178 = vmatpush1.msra.mxu0 %v137
    %2179 = vmatprep.subr.mxu0 0.0
    %2180 = vmatpush1.msra.mxu0 %v136
    %2181 = vmatprep.subr.mxu0 0.0
    %2182 = vmatpush2.msra.mxu0 0.0
    %2183 = vmatprep.subr.mxu0 0.0
    %2184 = vmatpush2.msra.mxu0 0.0
    %2185 = vmatprep.subr.mxu0 0.0
    %2186 = vmatpush2.msra.mxu0 0.0
    %2187 = vmatprep.subr.mxu0 0.0
    %2188 = vmatpush2.msra.mxu0 0.0
    %2189 = vmatprep.subr.mxu0 0.0
    %2190 = vmatpush2.msra.mxu0 0.0
    %2191 = vmatprep.subr.mxu0 0.0
    %2192 = vmatpush2.msra.mxu0 0.0
    %2193 = vmatprep.subr.mxu0 0.0
    %2194 = vmatpush2.msra.mxu0 0.0
    %2195 = vmatprep.subr.mxu0 0.0
    %2196 = vmatpush2.msra.mxu0 0.0
    %2197 = vmatprep.subr.mxu0 0.0
    %2198 = vmatpush2.msra.mxu0 0.0
    %2199 = vmatprep.subr.mxu0 0.0
    %2200 = vmatpush2.msra.mxu0 0.0
    %2201 = vmatprep.subr.mxu0 0.0
    %2202 = vmatpush2.msra.mxu0 0.0
    %2203 = vmatprep.subr.mxu0 0.0
    %2204 = vmatpush2.msra.mxu0 0.0
    %2205 = vmatprep.subr.mxu0 0.0
    %2206 = vmatpush2.msra.mxu0 0.0
    %2207 = vmatprep.subr.mxu0 0.0
    %2208 = vmatpush2.msra.mxu0 0.0
    %2209 = vmatprep.subr.mxu0 0.0
    %2210 = vmatpush2.msra.mxu0 0.0
    %2211 = vmatprep.subr.mxu0 0.0
    %2212 = vmatpush2.msra.mxu0 0.0
    %2213 = vmatprep.mubr.f32.mxu0 0.0
    %2214 = vmatmul.mubr.f32.gmra.mxu0 %v2147
    %v2215 = vpop.f32.mrf.mxu0
    %v2216 = vadd.f32 0.0, %v2215
    %v2217 = vpop.f32.mrf.mxu0
    %2218 = vdwg.mxu0
    %v2219 = vadd.f32 %v2143, %v2216
    %v2220 = vxor.u32 %v2219, 2147483648
    %v2221 = vmul.f32 %v2220, 1.442695
    %v2222 = vpow.pop %v2221
    %v2223 = vadd.f32 %v2222, 1.0
    %v2224 = vrcp.pop %v2223
    %v2225 = vmul.f32 1.0, %v2224
    %v2226 = vtanh.pop %v2219
    %2228 = vrot.lane.b32.xlu0 %v2072, 32
    %v2229 = vpop.permute.xlu0 %2228
    %v2231 = vmul.f32 %v2225, %v2229
    %2233 = vrot.lane.b32.xlu0 %v2226, 32
    %v2234 = vpop.permute.xlu0 %2233
    %v2236 = vmul.f32 %v2225, %v2234
    %2238 = vrot.lane.b32.xlu0 %v2236, 32
    %v2239 = vpop.permute.xlu0 %2238
    %v2241 = vadd.f32 %v2231, %v2239
    %v2242 = vtanh.pop %v2241
    %2244 = vrot.lane.b32.xlu0 %v2242, 32
    %v2245 = vpop.permute.xlu0 %2244
    %v2247 = vmul.f32 %v2225, %v2245
    %2249 = vrot.lane.b32.xlu0 %v2247, 64
    %v2250 = vpop.permute.xlu0 %2249
    %2252 = vst.msk [vmem:[#allocation2] sm:$0x3] %vm336, %v2250
    %2254 = vrot.lane.b32.xlu0 %v2241, 96
    %v2255 = vpop.permute.xlu0 %2254
    %2257 = vst.msk [vmem:[#allocation3] sm:$0x3] %vm336, %v2255
    %s2258 = scalar_lea.vmem [#allocation17], 10
    %2259 = vst.msk [vmem:[%s2258] sm:$0x3] %vm336, %v2250
    %s2260 = scalar_lea.vmem [#allocation9], 4
    %v2261 = vld [vmem:[%s2260] sm:$0x3]
    %v2262 = vld [vmem:[#allocation4] sm:$0x3]
    %v2263 = vld [vmem:[#allocation5] sm:$0x3]
    %v2265 = vsel %vm155, %v2261, 0
    %2267 = vmatprep.subr.mxu0 0.0
    %2268 = vmatpush1.msra.mxu0 0.0
    %2269 = vmatprep.subr.mxu0 0.0
    %2270 = vmatpush1.msra.mxu0 0.0
    %2271 = vmatprep.subr.mxu0 0.0
    %2272 = vmatpush1.msra.mxu0 0.0
    %2273 = vmatprep.subr.mxu0 0.0
    %2274 = vmatpush1.msra.mxu0 0.0
    %2275 = vmatprep.subr.mxu0 0.0
    %2276 = vmatpush1.msra.mxu0 0.0
    %2277 = vmatprep.subr.mxu0 0.0
    %2278 = vmatpush1.msra.mxu0 0.0
    %2279 = vmatprep.subr.mxu0 0.0
    %2280 = vmatpush1.msra.mxu0 0.0
    %2281 = vmatprep.subr.mxu0 0.0
    %2282 = vmatpush1.msra.mxu0 0.0
    %2283 = vmatprep.subr.mxu0 0.0
    %2284 = vmatpush1.msra.mxu0 0.0
    %2285 = vmatprep.subr.mxu0 0.0
    %2286 = vmatpush1.msra.mxu0 0.0
    %2287 = vmatprep.subr.mxu0 0.0
    %2288 = vmatpush1.msra.mxu0 0.0
    %2289 = vmatprep.subr.mxu0 0.0
    %2290 = vmatpush1.msra.mxu0 0.0
    %2291 = vmatprep.subr.mxu0 0.0
    %2292 = vmatpush1.msra.mxu0 0.0
    %2293 = vmatprep.subr.mxu0 0.0
    %2294 = vmatpush1.msra.mxu0 0.0
    %2295 = vmatprep.subr.mxu0 0.0
    %2296 = vmatpush1.msra.mxu0 %v135
    %2297 = vmatprep.subr.mxu0 0.0
    %2298 = vmatpush1.msra.mxu0 %v134
    %2299 = vmatprep.subr.mxu0 0.0
    %2300 = vmatpush2.msra.mxu0 0.0
    %2301 = vmatprep.subr.mxu0 0.0
    %2302 = vmatpush2.msra.mxu0 0.0
    %2303 = vmatprep.subr.mxu0 0.0
    %2304 = vmatpush2.msra.mxu0 0.0
    %2305 = vmatprep.subr.mxu0 0.0
    %2306 = vmatpush2.msra.mxu0 0.0
    %2307 = vmatprep.subr.mxu0 0.0
    %2308 = vmatpush2.msra.mxu0 0.0
    %2309 = vmatprep.subr.mxu0 0.0
    %2310 = vmatpush2.msra.mxu0 0.0
    %2311 = vmatprep.subr.mxu0 0.0
    %2312 = vmatpush2.msra.mxu0 0.0
    %2313 = vmatprep.subr.mxu0 0.0
    %2314 = vmatpush2.msra.mxu0 0.0
    %2315 = vmatprep.subr.mxu0 0.0
    %2316 = vmatpush2.msra.mxu0 0.0
    %2317 = vmatprep.subr.mxu0 0.0
    %2318 = vmatpush2.msra.mxu0 0.0
    %2319 = vmatprep.subr.mxu0 0.0
    %2320 = vmatpush2.msra.mxu0 0.0
    %2321 = vmatprep.subr.mxu0 0.0
    %2322 = vmatpush2.msra.mxu0 0.0
    %2323 = vmatprep.subr.mxu0 0.0
    %2324 = vmatpush2.msra.mxu0 0.0
    %2325 = vmatprep.subr.mxu0 0.0
    %2326 = vmatpush2.msra.mxu0 0.0
    %2327 = vmatprep.subr.mxu0 0.0
    %2328 = vmatpush2.msra.mxu0 0.0
    %2329 = vmatprep.subr.mxu0 0.0
    %2330 = vmatpush2.msra.mxu0 0.0
    %2331 = vmatprep.mubr.f32.mxu0 0.0
    %2332 = vmatmul.mubr.f32.gmra.mxu0 %v2265
    %v2333 = vpop.f32.mrf.mxu0
    %v2334 = vadd.f32 %v352, %v2333
    %v2335 = vpop.f32.mrf.mxu0
    %2336 = vdwg.mxu0
    %v2338 = vsel %vm229, %v2262, 0
    %2340 = vmatprep.subr.mxu0 0.0
    %2341 = vmatpush1.msra.mxu0 0.0
    %2342 = vmatprep.subr.mxu0 0.0
    %2343 = vmatpush1.msra.mxu0 0.0
    %2344 = vmatprep.subr.mxu0 0.0
    %2345 = vmatpush1.msra.mxu0 0.0
    %2346 = vmatprep.subr.mxu0 0.0
    %2347 = vmatpush1.msra.mxu0 0.0
    %2348 = vmatprep.subr.mxu0 0.0
    %2349 = vmatpush1.msra.mxu0 0.0
    %2350 = vmatprep.subr.mxu0 0.0
    %2351 = vmatpush1.msra.mxu0 0.0
    %2352 = vmatprep.subr.mxu0 0.0
    %2353 = vmatpush1.msra.mxu0 0.0
    %2354 = vmatprep.subr.mxu0 0.0
    %2355 = vmatpush1.msra.mxu0 0.0
    %2356 = vmatprep.subr.mxu0 0.0
    %2357 = vmatpush1.msra.mxu0 0.0
    %2358 = vmatprep.subr.mxu0 0.0
    %2359 = vmatpush1.msra.mxu0 0.0
    %2360 = vmatprep.subr.mxu0 0.0
    %2361 = vmatpush1.msra.mxu0 0.0
    %2362 = vmatprep.subr.mxu0 0.0
    %2363 = vmatpush1.msra.mxu0 0.0
    %2364 = vmatprep.subr.mxu0 0.0
    %2365 = vmatpush1.msra.mxu0 %v143
    %2366 = vmatprep.subr.mxu0 0.0
    %2367 = vmatpush1.msra.mxu0 %v142
    %2368 = vmatprep.subr.mxu0 0.0
    %2369 = vmatpush1.msra.mxu0 %v141
    %2370 = vmatprep.subr.mxu0 0.0
    %2371 = vmatpush1.msra.mxu0 %v140
    %2372 = vmatprep.subr.mxu0 0.0
    %2373 = vmatpush2.msra.mxu0 0.0
    %2374 = vmatprep.subr.mxu0 0.0
    %2375 = vmatpush2.msra.mxu0 0.0
    %2376 = vmatprep.subr.mxu0 0.0
    %2377 = vmatpush2.msra.mxu0 0.0
    %2378 = vmatprep.subr.mxu0 0.0
    %2379 = vmatpush2.msra.mxu0 0.0
    %2380 = vmatprep.subr.mxu0 0.0
    %2381 = vmatpush2.msra.mxu0 0.0
    %2382 = vmatprep.subr.mxu0 0.0
    %2383 = vmatpush2.msra.mxu0 0.0
    %2384 = vmatprep.subr.mxu0 0.0
    %2385 = vmatpush2.msra.mxu0 0.0
    %2386 = vmatprep.subr.mxu0 0.0
    %2387 = vmatpush2.msra.mxu0 0.0
    %2388 = vmatprep.subr.mxu0 0.0
    %2389 = vmatpush2.msra.mxu0 0.0
    %2390 = vmatprep.subr.mxu0 0.0
    %2391 = vmatpush2.msra.mxu0 0.0
    %2392 = vmatprep.subr.mxu0 0.0
    %2393 = vmatpush2.msra.mxu0 0.0
    %2394 = vmatprep.subr.mxu0 0.0
    %2395 = vmatpush2.msra.mxu0 0.0
    %2396 = vmatprep.subr.mxu0 0.0
    %2397 = vmatpush2.msra.mxu0 0.0
    %2398 = vmatprep.subr.mxu0 0.0
    %2399 = vmatpush2.msra.mxu0 0.0
    %2400 = vmatprep.subr.mxu0 0.0
    %2401 = vmatpush2.msra.mxu0 0.0
    %2402 = vmatprep.subr.mxu0 0.0
    %2403 = vmatpush2.msra.mxu0 0.0
    %2404 = vmatprep.mubr.f32.mxu0 0.0
    %2405 = vmatmul.mubr.f32.gmra.mxu0 %v2338
    %v2406 = vpop.f32.mrf.mxu0
    %v2407 = vadd.f32 0.0, %v2406
    %v2408 = vpop.f32.mrf.mxu0
    %2409 = vdwg.mxu0
    %v2410 = vadd.f32 %v2334, %v2407
    %v2411 = vxor.u32 %v2410, 2147483648
    %v2412 = vmul.f32 %v2411, 1.442695
    %v2413 = vpow.pop %v2412
    %v2414 = vadd.f32 %v2413, 1.0
    %v2415 = vrcp.pop %v2414
    %v2416 = vmul.f32 1.0, %v2415
    %v2417 = vtanh.pop %v2410
    %2419 = vrot.lane.b32.xlu0 %v2263, 32
    %v2420 = vpop.permute.xlu0 %2419
    %v2422 = vmul.f32 %v2416, %v2420
    %2424 = vrot.lane.b32.xlu0 %v2417, 32
    %v2425 = vpop.permute.xlu0 %2424
    %v2427 = vmul.f32 %v2416, %v2425
    %2429 = vrot.lane.b32.xlu0 %v2427, 32
    %v2430 = vpop.permute.xlu0 %2429
    %v2432 = vadd.f32 %v2422, %v2430
    %v2433 = vtanh.pop %v2432
    %2435 = vrot.lane.b32.xlu0 %v2433, 32
    %v2436 = vpop.permute.xlu0 %2435
    %v2438 = vmul.f32 %v2416, %v2436
    %2440 = vrot.lane.b32.xlu0 %v2438, 64
    %v2441 = vpop.permute.xlu0 %2440
    %2443 = vst.msk [vmem:[#allocation4] sm:$0x3] %vm336, %v2441
    %2445 = vrot.lane.b32.xlu0 %v2432, 96
    %v2446 = vpop.permute.xlu0 %2445
    %2448 = vst.msk [vmem:[#allocation5] sm:$0x3] %vm336, %v2446
    %s2449 = scalar_lea.vmem [#allocation18], 4
    %2450 = vst.msk [vmem:[%s2449] sm:$0x3] %vm336, %v2441
    %s2451 = scalar_lea.vmem [#allocation6], 12
    %v2452 = vld [vmem:[%s2451] sm:$0x3]
    %v2453 = vld [vmem:[#allocation2] sm:$0x3]
    %v2454 = vld [vmem:[#allocation3] sm:$0x3]
    %v2456 = vsel %vm155, %v2452, 0
    %2458 = vmatprep.subr.mxu0 0.0
    %2459 = vmatpush1.msra.mxu0 0.0
    %2460 = vmatprep.subr.mxu0 0.0
    %2461 = vmatpush1.msra.mxu0 0.0
    %2462 = vmatprep.subr.mxu0 0.0
    %2463 = vmatpush1.msra.mxu0 0.0
    %2464 = vmatprep.subr.mxu0 0.0
    %2465 = vmatpush1.msra.mxu0 0.0
    %2466 = vmatprep.subr.mxu0 0.0
    %2467 = vmatpush1.msra.mxu0 0.0
    %2468 = vmatprep.subr.mxu0 0.0
    %2469 = vmatpush1.msra.mxu0 0.0
    %2470 = vmatprep.subr.mxu0 0.0
    %2471 = vmatpush1.msra.mxu0 0.0
    %2472 = vmatprep.subr.mxu0 0.0
    %2473 = vmatpush1.msra.mxu0 0.0
    %2474 = vmatprep.subr.mxu0 0.0
    %2475 = vmatpush1.msra.mxu0 0.0
    %2476 = vmatprep.subr.mxu0 0.0
    %2477 = vmatpush1.msra.mxu0 0.0
    %2478 = vmatprep.subr.mxu0 0.0
    %2479 = vmatpush1.msra.mxu0 0.0
    %2480 = vmatprep.subr.mxu0 0.0
    %2481 = vmatpush1.msra.mxu0 0.0
    %2482 = vmatprep.subr.mxu0 0.0
    %2483 = vmatpush1.msra.mxu0 0.0
    %2484 = vmatprep.subr.mxu0 0.0
    %2485 = vmatpush1.msra.mxu0 0.0
    %2486 = vmatprep.subr.mxu0 0.0
    %2487 = vmatpush1.msra.mxu0 %v133
    %2488 = vmatprep.subr.mxu0 0.0
    %2489 = vmatpush1.msra.mxu0 %v132
    %2490 = vmatprep.subr.mxu0 0.0
    %2491 = vmatpush2.msra.mxu0 0.0
    %2492 = vmatprep.subr.mxu0 0.0
    %2493 = vmatpush2.msra.mxu0 0.0
    %2494 = vmatprep.subr.mxu0 0.0
    %2495 = vmatpush2.msra.mxu0 0.0
    %2496 = vmatprep.subr.mxu0 0.0
    %2497 = vmatpush2.msra.mxu0 0.0
    %2498 = vmatprep.subr.mxu0 0.0
    %2499 = vmatpush2.msra.mxu0 0.0
    %2500 = vmatprep.subr.mxu0 0.0
    %2501 = vmatpush2.msra.mxu0 0.0
    %2502 = vmatprep.subr.mxu0 0.0
    %2503 = vmatpush2.msra.mxu0 0.0
    %2504 = vmatprep.subr.mxu0 0.0
    %2505 = vmatpush2.msra.mxu0 0.0
    %2506 = vmatprep.subr.mxu0 0.0
    %2507 = vmatpush2.msra.mxu0 0.0
    %2508 = vmatprep.subr.mxu0 0.0
    %2509 = vmatpush2.msra.mxu0 0.0
    %2510 = vmatprep.subr.mxu0 0.0
    %2511 = vmatpush2.msra.mxu0 0.0
    %2512 = vmatprep.subr.mxu0 0.0
    %2513 = vmatpush2.msra.mxu0 0.0
    %2514 = vmatprep.subr.mxu0 0.0
    %2515 = vmatpush2.msra.mxu0 0.0
    %2516 = vmatprep.subr.mxu0 0.0
    %2517 = vmatpush2.msra.mxu0 0.0
    %2518 = vmatprep.subr.mxu0 0.0
    %2519 = vmatpush2.msra.mxu0 0.0
    %2520 = vmatprep.subr.mxu0 0.0
    %2521 = vmatpush2.msra.mxu0 0.0
    %2522 = vmatprep.mubr.f32.mxu0 0.0
    %2523 = vmatmul.mubr.f32.gmra.mxu0 %v2456
    %v2524 = vpop.f32.mrf.mxu0
    %v2525 = vadd.f32 %v153, %v2524
    %v2526 = vpop.f32.mrf.mxu0
    %2527 = vdwg.mxu0
    %v2529 = vsel %vm229, %v2453, 0
    %2531 = vmatprep.subr.mxu0 0.0
    %2532 = vmatpush1.msra.mxu0 0.0
    %2533 = vmatprep.subr.mxu0 0.0
    %2534 = vmatpush1.msra.mxu0 0.0
    %2535 = vmatprep.subr.mxu0 0.0
    %2536 = vmatpush1.msra.mxu0 0.0
    %2537 = vmatprep.subr.mxu0 0.0
    %2538 = vmatpush1.msra.mxu0 0.0
    %2539 = vmatprep.subr.mxu0 0.0
    %2540 = vmatpush1.msra.mxu0 0.0
    %2541 = vmatprep.subr.mxu0 0.0
    %2542 = vmatpush1.msra.mxu0 0.0
    %2543 = vmatprep.subr.mxu0 0.0
    %2544 = vmatpush1.msra.mxu0 0.0
    %2545 = vmatprep.subr.mxu0 0.0
    %2546 = vmatpush1.msra.mxu0 0.0
    %2547 = vmatprep.subr.mxu0 0.0
    %2548 = vmatpush1.msra.mxu0 0.0
    %2549 = vmatprep.subr.mxu0 0.0
    %2550 = vmatpush1.msra.mxu0 0.0
    %2551 = vmatprep.subr.mxu0 0.0
    %2552 = vmatpush1.msra.mxu0 0.0
    %2553 = vmatprep.subr.mxu0 0.0
    %2554 = vmatpush1.msra.mxu0 0.0
    %2555 = vmatprep.subr.mxu0 0.0
    %2556 = vmatpush1.msra.mxu0 %v139
    %2557 = vmatprep.subr.mxu0 0.0
    %2558 = vmatpush1.msra.mxu0 %v138
    %2559 = vmatprep.subr.mxu0 0.0
    %2560 = vmatpush1.msra.mxu0 %v137
    %2561 = vmatprep.subr.mxu0 0.0
    %2562 = vmatpush1.msra.mxu0 %v136
    %2563 = vmatprep.subr.mxu0 0.0
    %2564 = vmatpush2.msra.mxu0 0.0
    %2565 = vmatprep.subr.mxu0 0.0
    %2566 = vmatpush2.msra.mxu0 0.0
    %2567 = vmatprep.subr.mxu0 0.0
    %2568 = vmatpush2.msra.mxu0 0.0
    %2569 = vmatprep.subr.mxu0 0.0
    %2570 = vmatpush2.msra.mxu0 0.0
    %2571 = vmatprep.subr.mxu0 0.0
    %2572 = vmatpush2.msra.mxu0 0.0
    %2573 = vmatprep.subr.mxu0 0.0
    %2574 = vmatpush2.msra.mxu0 0.0
    %2575 = vmatprep.subr.mxu0 0.0
    %2576 = vmatpush2.msra.mxu0 0.0
    %2577 = vmatprep.subr.mxu0 0.0
    %2578 = vmatpush2.msra.mxu0 0.0
    %2579 = vmatprep.subr.mxu0 0.0
    %2580 = vmatpush2.msra.mxu0 0.0
    %2581 = vmatprep.subr.mxu0 0.0
    %2582 = vmatpush2.msra.mxu0 0.0
    %2583 = vmatprep.subr.mxu0 0.0
    %2584 = vmatpush2.msra.mxu0 0.0
    %2585 = vmatprep.subr.mxu0 0.0
    %2586 = vmatpush2.msra.mxu0 0.0
    %2587 = vmatprep.subr.mxu0 0.0
    %2588 = vmatpush2.msra.mxu0 0.0
    %2589 = vmatprep.subr.mxu0 0.0
    %2590 = vmatpush2.msra.mxu0 0.0
    %2591 = vmatprep.subr.mxu0 0.0
    %2592 = vmatpush2.msra.mxu0 0.0
    %2593 = vmatprep.subr.mxu0 0.0
    %2594 = vmatpush2.msra.mxu0 0.0
    %2595 = vmatprep.mubr.f32.mxu0 0.0
    %2596 = vmatmul.mubr.f32.gmra.mxu0 %v2529
    %v2597 = vpop.f32.mrf.mxu0
    %v2598 = vadd.f32 0.0, %v2597
    %v2599 = vpop.f32.mrf.mxu0
    %2600 = vdwg.mxu0
    %v2601 = vadd.f32 %v2525, %v2598
    %v2602 = vxor.u32 %v2601, 2147483648
    %v2603 = vmul.f32 %v2602, 1.442695
    %v2604 = vpow.pop %v2603
    %v2605 = vadd.f32 %v2604, 1.0
    %v2606 = vrcp.pop %v2605
    %v2607 = vmul.f32 1.0, %v2606
    %v2608 = vtanh.pop %v2601
    %2610 = vrot.lane.b32.xlu0 %v2454, 32
    %v2611 = vpop.permute.xlu0 %2610
    %v2613 = vmul.f32 %v2607, %v2611
    %2615 = vrot.lane.b32.xlu0 %v2608, 32
    %v2616 = vpop.permute.xlu0 %2615
    %v2618 = vmul.f32 %v2607, %v2616
    %2620 = vrot.lane.b32.xlu0 %v2618, 32
    %v2621 = vpop.permute.xlu0 %2620
    %v2623 = vadd.f32 %v2613, %v2621
    %v2624 = vtanh.pop %v2623
    %2626 = vrot.lane.b32.xlu0 %v2624, 32
    %v2627 = vpop.permute.xlu0 %2626
    %v2629 = vmul.f32 %v2607, %v2627
    %2631 = vrot.lane.b32.xlu0 %v2629, 64
    %v2632 = vpop.permute.xlu0 %2631
    %2634 = vst.msk [vmem:[#allocation2] sm:$0x3] %vm336, %v2632
    %2636 = vrot.lane.b32.xlu0 %v2623, 96
    %v2637 = vpop.permute.xlu0 %2636
    %2639 = vst.msk [vmem:[#allocation3] sm:$0x3] %vm336, %v2637
    %s2640 = scalar_lea.vmem [#allocation17], 12
    %2641 = vst.msk [vmem:[%s2640] sm:$0x3] %vm336, %v2632
    %s2642 = scalar_lea.vmem [#allocation9], 2
    %v2643 = vld [vmem:[%s2642] sm:$0x3]
    %v2644 = vld [vmem:[#allocation4] sm:$0x3]
    %v2645 = vld [vmem:[#allocation5] sm:$0x3]
    %v2647 = vsel %vm155, %v2643, 0
    %2649 = vmatprep.subr.mxu0 0.0
    %2650 = vmatpush1.msra.mxu0 0.0
    %2651 = vmatprep.subr.mxu0 0.0
    %2652 = vmatpush1.msra.mxu0 0.0
    %2653 = vmatprep.subr.mxu0 0.0
    %2654 = vmatpush1.msra.mxu0 0.0
    %2655 = vmatprep.subr.mxu0 0.0
    %2656 = vmatpush1.msra.mxu0 0.0
    %2657 = vmatprep.subr.mxu0 0.0
    %2658 = vmatpush1.msra.mxu0 0.0
    %2659 = vmatprep.subr.mxu0 0.0
    %2660 = vmatpush1.msra.mxu0 0.0
    %2661 = vmatprep.subr.mxu0 0.0
    %2662 = vmatpush1.msra.mxu0 0.0
    %2663 = vmatprep.subr.mxu0 0.0
    %2664 = vmatpush1.msra.mxu0 0.0
    %2665 = vmatprep.subr.mxu0 0.0
    %2666 = vmatpush1.msra.mxu0 0.0
    %2667 = vmatprep.subr.mxu0 0.0
    %2668 = vmatpush1.msra.mxu0 0.0
    %2669 = vmatprep.subr.mxu0 0.0
    %2670 = vmatpush1.msra.mxu0 0.0
    %2671 = vmatprep.subr.mxu0 0.0
    %2672 = vmatpush1.msra.mxu0 0.0
    %2673 = vmatprep.subr.mxu0 0.0
    %2674 = vmatpush1.msra.mxu0 0.0
    %2675 = vmatprep.subr.mxu0 0.0
    %2676 = vmatpush1.msra.mxu0 0.0
    %2677 = vmatprep.subr.mxu0 0.0
    %2678 = vmatpush1.msra.mxu0 %v135
    %2679 = vmatprep.subr.mxu0 0.0
    %2680 = vmatpush1.msra.mxu0 %v134
    %2681 = vmatprep.subr.mxu0 0.0
    %2682 = vmatpush2.msra.mxu0 0.0
    %2683 = vmatprep.subr.mxu0 0.0
    %2684 = vmatpush2.msra.mxu0 0.0
    %2685 = vmatprep.subr.mxu0 0.0
    %2686 = vmatpush2.msra.mxu0 0.0
    %2687 = vmatprep.subr.mxu0 0.0
    %2688 = vmatpush2.msra.mxu0 0.0
    %2689 = vmatprep.subr.mxu0 0.0
    %2690 = vmatpush2.msra.mxu0 0.0
    %2691 = vmatprep.subr.mxu0 0.0
    %2692 = vmatpush2.msra.mxu0 0.0
    %2693 = vmatprep.subr.mxu0 0.0
    %2694 = vmatpush2.msra.mxu0 0.0
    %2695 = vmatprep.subr.mxu0 0.0
    %2696 = vmatpush2.msra.mxu0 0.0
    %2697 = vmatprep.subr.mxu0 0.0
    %2698 = vmatpush2.msra.mxu0 0.0
    %2699 = vmatprep.subr.mxu0 0.0
    %2700 = vmatpush2.msra.mxu0 0.0
    %2701 = vmatprep.subr.mxu0 0.0
    %2702 = vmatpush2.msra.mxu0 0.0
    %2703 = vmatprep.subr.mxu0 0.0
    %2704 = vmatpush2.msra.mxu0 0.0
    %2705 = vmatprep.subr.mxu0 0.0
    %2706 = vmatpush2.msra.mxu0 0.0
    %2707 = vmatprep.subr.mxu0 0.0
    %2708 = vmatpush2.msra.mxu0 0.0
    %2709 = vmatprep.subr.mxu0 0.0
    %2710 = vmatpush2.msra.mxu0 0.0
    %2711 = vmatprep.subr.mxu0 0.0
    %2712 = vmatpush2.msra.mxu0 0.0
    %2713 = vmatprep.mubr.f32.mxu0 0.0
    %2714 = vmatmul.mubr.f32.gmra.mxu0 %v2647
    %v2715 = vpop.f32.mrf.mxu0
    %v2716 = vadd.f32 %v352, %v2715
    %v2717 = vpop.f32.mrf.mxu0
    %2718 = vdwg.mxu0
    %v2720 = vsel %vm229, %v2644, 0
    %2722 = vmatprep.subr.mxu0 0.0
    %2723 = vmatpush1.msra.mxu0 0.0
    %2724 = vmatprep.subr.mxu0 0.0
    %2725 = vmatpush1.msra.mxu0 0.0
    %2726 = vmatprep.subr.mxu0 0.0
    %2727 = vmatpush1.msra.mxu0 0.0
    %2728 = vmatprep.subr.mxu0 0.0
    %2729 = vmatpush1.msra.mxu0 0.0
    %2730 = vmatprep.subr.mxu0 0.0
    %2731 = vmatpush1.msra.mxu0 0.0
    %2732 = vmatprep.subr.mxu0 0.0
    %2733 = vmatpush1.msra.mxu0 0.0
    %2734 = vmatprep.subr.mxu0 0.0
    %2735 = vmatpush1.msra.mxu0 0.0
    %2736 = vmatprep.subr.mxu0 0.0
    %2737 = vmatpush1.msra.mxu0 0.0
    %2738 = vmatprep.subr.mxu0 0.0
    %2739 = vmatpush1.msra.mxu0 0.0
    %2740 = vmatprep.subr.mxu0 0.0
    %2741 = vmatpush1.msra.mxu0 0.0
    %2742 = vmatprep.subr.mxu0 0.0
    %2743 = vmatpush1.msra.mxu0 0.0
    %2744 = vmatprep.subr.mxu0 0.0
    %2745 = vmatpush1.msra.mxu0 0.0
    %2746 = vmatprep.subr.mxu0 0.0
    %2747 = vmatpush1.msra.mxu0 %v143
    %2748 = vmatprep.subr.mxu0 0.0
    %2749 = vmatpush1.msra.mxu0 %v142
    %2750 = vmatprep.subr.mxu0 0.0
    %2751 = vmatpush1.msra.mxu0 %v141
    %2752 = vmatprep.subr.mxu0 0.0
    %2753 = vmatpush1.msra.mxu0 %v140
    %2754 = vmatprep.subr.mxu0 0.0
    %2755 = vmatpush2.msra.mxu0 0.0
    %2756 = vmatprep.subr.mxu0 0.0
    %2757 = vmatpush2.msra.mxu0 0.0
    %2758 = vmatprep.subr.mxu0 0.0
    %2759 = vmatpush2.msra.mxu0 0.0
    %2760 = vmatprep.subr.mxu0 0.0
    %2761 = vmatpush2.msra.mxu0 0.0
    %2762 = vmatprep.subr.mxu0 0.0
    %2763 = vmatpush2.msra.mxu0 0.0
    %2764 = vmatprep.subr.mxu0 0.0
    %2765 = vmatpush2.msra.mxu0 0.0
    %2766 = vmatprep.subr.mxu0 0.0
    %2767 = vmatpush2.msra.mxu0 0.0
    %2768 = vmatprep.subr.mxu0 0.0
    %2769 = vmatpush2.msra.mxu0 0.0
    %2770 = vmatprep.subr.mxu0 0.0
    %2771 = vmatpush2.msra.mxu0 0.0
    %2772 = vmatprep.subr.mxu0 0.0
    %2773 = vmatpush2.msra.mxu0 0.0
    %2774 = vmatprep.subr.mxu0 0.0
    %2775 = vmatpush2.msra.mxu0 0.0
    %2776 = vmatprep.subr.mxu0 0.0
    %2777 = vmatpush2.msra.mxu0 0.0
    %2778 = vmatprep.subr.mxu0 0.0
    %2779 = vmatpush2.msra.mxu0 0.0
    %2780 = vmatprep.subr.mxu0 0.0
    %2781 = vmatpush2.msra.mxu0 0.0
    %2782 = vmatprep.subr.mxu0 0.0
    %2783 = vmatpush2.msra.mxu0 0.0
    %2784 = vmatprep.subr.mxu0 0.0
    %2785 = vmatpush2.msra.mxu0 0.0
    %2786 = vmatprep.mubr.f32.mxu0 0.0
    %2787 = vmatmul.mubr.f32.gmra.mxu0 %v2720
    %v2788 = vpop.f32.mrf.mxu0
    %v2789 = vadd.f32 0.0, %v2788
    %v2790 = vpop.f32.mrf.mxu0
    %2791 = vdwg.mxu0
    %v2792 = vadd.f32 %v2716, %v2789
    %v2793 = vxor.u32 %v2792, 2147483648
    %v2794 = vmul.f32 %v2793, 1.442695
    %v2795 = vpow.pop %v2794
    %v2796 = vadd.f32 %v2795, 1.0
    %v2797 = vrcp.pop %v2796
    %v2798 = vmul.f32 1.0, %v2797
    %v2799 = vtanh.pop %v2792
    %2801 = vrot.lane.b32.xlu0 %v2645, 32
    %v2802 = vpop.permute.xlu0 %2801
    %v2804 = vmul.f32 %v2798, %v2802
    %2806 = vrot.lane.b32.xlu0 %v2799, 32
    %v2807 = vpop.permute.xlu0 %2806
    %v2809 = vmul.f32 %v2798, %v2807
    %2811 = vrot.lane.b32.xlu0 %v2809, 32
    %v2812 = vpop.permute.xlu0 %2811
    %v2814 = vadd.f32 %v2804, %v2812
    %v2815 = vtanh.pop %v2814
    %2817 = vrot.lane.b32.xlu0 %v2815, 32
    %v2818 = vpop.permute.xlu0 %2817
    %v2820 = vmul.f32 %v2798, %v2818
    %2822 = vrot.lane.b32.xlu0 %v2820, 64
    %v2823 = vpop.permute.xlu0 %2822
    %2825 = vst.msk [vmem:[#allocation4] sm:$0x3] %vm336, %v2823
    %2827 = vrot.lane.b32.xlu0 %v2814, 96
    %v2828 = vpop.permute.xlu0 %2827
    %2830 = vst.msk [vmem:[#allocation5] sm:$0x3] %vm336, %v2828
    %s2831 = scalar_lea.vmem [#allocation18], 2
    %2832 = vst.msk [vmem:[%s2831] sm:$0x3] %vm336, %v2823
    %s2833 = scalar_lea.vmem [#allocation6], 14
    %v2834 = vld [vmem:[%s2833] sm:$0x3]
    %v2835 = vld [vmem:[#allocation2] sm:$0x3]
    %v2836 = vld [vmem:[#allocation3] sm:$0x3]
    %v2838 = vsel %vm155, %v2834, 0
    %2840 = vmatprep.subr.mxu0 0.0
    %2841 = vmatpush1.msra.mxu0 0.0
    %2842 = vmatprep.subr.mxu0 0.0
    %2843 = vmatpush1.msra.mxu0 0.0
    %2844 = vmatprep.subr.mxu0 0.0
    %2845 = vmatpush1.msra.mxu0 0.0
    %2846 = vmatprep.subr.mxu0 0.0
    %2847 = vmatpush1.msra.mxu0 0.0
    %2848 = vmatprep.subr.mxu0 0.0
    %2849 = vmatpush1.msra.mxu0 0.0
    %2850 = vmatprep.subr.mxu0 0.0
    %2851 = vmatpush1.msra.mxu0 0.0
    %2852 = vmatprep.subr.mxu0 0.0
    %2853 = vmatpush1.msra.mxu0 0.0
    %2854 = vmatprep.subr.mxu0 0.0
    %2855 = vmatpush1.msra.mxu0 0.0
    %2856 = vmatprep.subr.mxu0 0.0
    %2857 = vmatpush1.msra.mxu0 0.0
    %2858 = vmatprep.subr.mxu0 0.0
    %2859 = vmatpush1.msra.mxu0 0.0
    %2860 = vmatprep.subr.mxu0 0.0
    %2861 = vmatpush1.msra.mxu0 0.0
    %2862 = vmatprep.subr.mxu0 0.0
    %2863 = vmatpush1.msra.mxu0 0.0
    %2864 = vmatprep.subr.mxu0 0.0
    %2865 = vmatpush1.msra.mxu0 0.0
    %2866 = vmatprep.subr.mxu0 0.0
    %2867 = vmatpush1.msra.mxu0 0.0
    %2868 = vmatprep.subr.mxu0 0.0
    %2869 = vmatpush1.msra.mxu0 %v133
    %2870 = vmatprep.subr.mxu0 0.0
    %2871 = vmatpush1.msra.mxu0 %v132
    %2872 = vmatprep.subr.mxu0 0.0
    %2873 = vmatpush2.msra.mxu0 0.0
    %2874 = vmatprep.subr.mxu0 0.0
    %2875 = vmatpush2.msra.mxu0 0.0
    %2876 = vmatprep.subr.mxu0 0.0
    %2877 = vmatpush2.msra.mxu0 0.0
    %2878 = vmatprep.subr.mxu0 0.0
    %2879 = vmatpush2.msra.mxu0 0.0
    %2880 = vmatprep.subr.mxu0 0.0
    %2881 = vmatpush2.msra.mxu0 0.0
    %2882 = vmatprep.subr.mxu0 0.0
    %2883 = vmatpush2.msra.mxu0 0.0
    %2884 = vmatprep.subr.mxu0 0.0
    %2885 = vmatpush2.msra.mxu0 0.0
    %2886 = vmatprep.subr.mxu0 0.0
    %2887 = vmatpush2.msra.mxu0 0.0
    %2888 = vmatprep.subr.mxu0 0.0
    %2889 = vmatpush2.msra.mxu0 0.0
    %2890 = vmatprep.subr.mxu0 0.0
    %2891 = vmatpush2.msra.mxu0 0.0
    %2892 = vmatprep.subr.mxu0 0.0
    %2893 = vmatpush2.msra.mxu0 0.0
    %2894 = vmatprep.subr.mxu0 0.0
    %2895 = vmatpush2.msra.mxu0 0.0
    %2896 = vmatprep.subr.mxu0 0.0
    %2897 = vmatpush2.msra.mxu0 0.0
    %2898 = vmatprep.subr.mxu0 0.0
    %2899 = vmatpush2.msra.mxu0 0.0
    %2900 = vmatprep.subr.mxu0 0.0
    %2901 = vmatpush2.msra.mxu0 0.0
    %2902 = vmatprep.subr.mxu0 0.0
    %2903 = vmatpush2.msra.mxu0 0.0
    %2904 = vmatprep.mubr.f32.mxu0 0.0
    %2905 = vmatmul.mubr.f32.gmra.mxu0 %v2838
    %v2906 = vpop.f32.mrf.mxu0
    %v2907 = vadd.f32 %v153, %v2906
    %v2908 = vpop.f32.mrf.mxu0
    %2909 = vdwg.mxu0
    %v2911 = vsel %vm229, %v2835, 0
    %2913 = vmatprep.subr.mxu0 0.0
    %2914 = vmatpush1.msra.mxu0 0.0
    %2915 = vmatprep.subr.mxu0 0.0
    %2916 = vmatpush1.msra.mxu0 0.0
    %2917 = vmatprep.subr.mxu0 0.0
    %2918 = vmatpush1.msra.mxu0 0.0
    %2919 = vmatprep.subr.mxu0 0.0
    %2920 = vmatpush1.msra.mxu0 0.0
    %2921 = vmatprep.subr.mxu0 0.0
    %2922 = vmatpush1.msra.mxu0 0.0
    %2923 = vmatprep.subr.mxu0 0.0
    %2924 = vmatpush1.msra.mxu0 0.0
    %2925 = vmatprep.subr.mxu0 0.0
    %2926 = vmatpush1.msra.mxu0 0.0
    %2927 = vmatprep.subr.mxu0 0.0
    %2928 = vmatpush1.msra.mxu0 0.0
    %2929 = vmatprep.subr.mxu0 0.0
    %2930 = vmatpush1.msra.mxu0 0.0
    %2931 = vmatprep.subr.mxu0 0.0
    %2932 = vmatpush1.msra.mxu0 0.0
    %2933 = vmatprep.subr.mxu0 0.0
    %2934 = vmatpush1.msra.mxu0 0.0
    %2935 = vmatprep.subr.mxu0 0.0
    %2936 = vmatpush1.msra.mxu0 0.0
    %2937 = vmatprep.subr.mxu0 0.0
    %2938 = vmatpush1.msra.mxu0 %v139
    %2939 = vmatprep.subr.mxu0 0.0
    %2940 = vmatpush1.msra.mxu0 %v138
    %2941 = vmatprep.subr.mxu0 0.0
    %2942 = vmatpush1.msra.mxu0 %v137
    %2943 = vmatprep.subr.mxu0 0.0
    %2944 = vmatpush1.msra.mxu0 %v136
    %2945 = vmatprep.subr.mxu0 0.0
    %2946 = vmatpush2.msra.mxu0 0.0
    %2947 = vmatprep.subr.mxu0 0.0
    %2948 = vmatpush2.msra.mxu0 0.0
    %2949 = vmatprep.subr.mxu0 0.0
    %2950 = vmatpush2.msra.mxu0 0.0
    %2951 = vmatprep.subr.mxu0 0.0
    %2952 = vmatpush2.msra.mxu0 0.0
    %2953 = vmatprep.subr.mxu0 0.0
    %2954 = vmatpush2.msra.mxu0 0.0
    %2955 = vmatprep.subr.mxu0 0.0
    %2956 = vmatpush2.msra.mxu0 0.0
    %2957 = vmatprep.subr.mxu0 0.0
    %2958 = vmatpush2.msra.mxu0 0.0
    %2959 = vmatprep.subr.mxu0 0.0
    %2960 = vmatpush2.msra.mxu0 0.0
    %2961 = vmatprep.subr.mxu0 0.0
    %2962 = vmatpush2.msra.mxu0 0.0
    %2963 = vmatprep.subr.mxu0 0.0
    %2964 = vmatpush2.msra.mxu0 0.0
    %2965 = vmatprep.subr.mxu0 0.0
    %2966 = vmatpush2.msra.mxu0 0.0
    %2967 = vmatprep.subr.mxu0 0.0
    %2968 = vmatpush2.msra.mxu0 0.0
    %2969 = vmatprep.subr.mxu0 0.0
    %2970 = vmatpush2.msra.mxu0 0.0
    %2971 = vmatprep.subr.mxu0 0.0
    %2972 = vmatpush2.msra.mxu0 0.0
    %2973 = vmatprep.subr.mxu0 0.0
    %2974 = vmatpush2.msra.mxu0 0.0
    %2975 = vmatprep.subr.mxu0 0.0
    %2976 = vmatpush2.msra.mxu0 0.0
    %2977 = vmatprep.mubr.f32.mxu0 0.0
    %2978 = vmatmul.mubr.f32.gmra.mxu0 %v2911
    %v2979 = vpop.f32.mrf.mxu0
    %v2980 = vadd.f32 0.0, %v2979
    %v2981 = vpop.f32.mrf.mxu0
    %2982 = vdwg.mxu0
    %v2983 = vadd.f32 %v2907, %v2980
    %v2984 = vxor.u32 %v2983, 2147483648
    %v2985 = vmul.f32 %v2984, 1.442695
    %v2986 = vpow.pop %v2985
    %v2987 = vadd.f32 %v2986, 1.0
    %v2988 = vrcp.pop %v2987
    %v2989 = vmul.f32 1.0, %v2988
    %v2990 = vtanh.pop %v2983
    %2992 = vrot.lane.b32.xlu0 %v2836, 32
    %v2993 = vpop.permute.xlu0 %2992
    %v2995 = vmul.f32 %v2989, %v2993
    %2997 = vrot.lane.b32.xlu0 %v2990, 32
    %v2998 = vpop.permute.xlu0 %2997
    %v3000 = vmul.f32 %v2989, %v2998
    %3002 = vrot.lane.b32.xlu0 %v3000, 32
    %v3003 = vpop.permute.xlu0 %3002
    %v3005 = vadd.f32 %v2995, %v3003
    %v3006 = vtanh.pop %v3005
    %3008 = vrot.lane.b32.xlu0 %v3006, 32
    %v3009 = vpop.permute.xlu0 %3008
    %v3011 = vmul.f32 %v2989, %v3009
    %3013 = vrot.lane.b32.xlu0 %v3011, 64
    %v3014 = vpop.permute.xlu0 %3013
    %3016 = vst.msk [vmem:[#allocation2] sm:$0x3] %vm336, %v3014
    %3018 = vrot.lane.b32.xlu0 %v3005, 96
    %v3019 = vpop.permute.xlu0 %3018
    %3021 = vst.msk [vmem:[#allocation3] sm:$0x3] %vm336, %v3019
    %s3022 = scalar_lea.vmem [#allocation17], 14
    %3023 = vst.msk [vmem:[%s3022] sm:$0x3] %vm336, %v3014
    %v3024 = vld [vmem:[#allocation9] sm:$0x3]
    %v3025 = vld [vmem:[#allocation4] sm:$0x3]
    %v3026 = vld [vmem:[#allocation5] sm:$0x3]
    %v3028 = vsel %vm155, %v3024, 0
    %3030 = vmatprep.subr.mxu0 0.0
    %3031 = vmatpush1.msra.mxu0 0.0
    %3032 = vmatprep.subr.mxu0 0.0
    %3033 = vmatpush1.msra.mxu0 0.0
    %3034 = vmatprep.subr.mxu0 0.0
    %3035 = vmatpush1.msra.mxu0 0.0
    %3036 = vmatprep.subr.mxu0 0.0
    %3037 = vmatpush1.msra.mxu0 0.0
    %3038 = vmatprep.subr.mxu0 0.0
    %3039 = vmatpush1.msra.mxu0 0.0
    %3040 = vmatprep.subr.mxu0 0.0
    %3041 = vmatpush1.msra.mxu0 0.0
    %3042 = vmatprep.subr.mxu0 0.0
    %3043 = vmatpush1.msra.mxu0 0.0
    %3044 = vmatprep.subr.mxu0 0.0
    %3045 = vmatpush1.msra.mxu0 0.0
    %3046 = vmatprep.subr.mxu0 0.0
    %3047 = vmatpush1.msra.mxu0 0.0
    %3048 = vmatprep.subr.mxu0 0.0
    %3049 = vmatpush1.msra.mxu0 0.0
    %3050 = vmatprep.subr.mxu0 0.0
    %3051 = vmatpush1.msra.mxu0 0.0
    %3052 = vmatprep.subr.mxu0 0.0
    %3053 = vmatpush1.msra.mxu0 0.0
    %3054 = vmatprep.subr.mxu0 0.0
    %3055 = vmatpush1.msra.mxu0 0.0
    %3056 = vmatprep.subr.mxu0 0.0
    %3057 = vmatpush1.msra.mxu0 0.0
    %3058 = vmatprep.subr.mxu0 0.0
    %3059 = vmatpush1.msra.mxu0 %v135
    %3060 = vmatprep.subr.mxu0 0.0
    %3061 = vmatpush1.msra.mxu0 %v134
    %3062 = vmatprep.subr.mxu0 0.0
    %3063 = vmatpush2.msra.mxu0 0.0
    %3064 = vmatprep.subr.mxu0 0.0
    %3065 = vmatpush2.msra.mxu0 0.0
    %3066 = vmatprep.subr.mxu0 0.0
    %3067 = vmatpush2.msra.mxu0 0.0
    %3068 = vmatprep.subr.mxu0 0.0
    %3069 = vmatpush2.msra.mxu0 0.0
    %3070 = vmatprep.subr.mxu0 0.0
    %3071 = vmatpush2.msra.mxu0 0.0
    %3072 = vmatprep.subr.mxu0 0.0
    %3073 = vmatpush2.msra.mxu0 0.0
    %3074 = vmatprep.subr.mxu0 0.0
    %3075 = vmatpush2.msra.mxu0 0.0
    %3076 = vmatprep.subr.mxu0 0.0
    %3077 = vmatpush2.msra.mxu0 0.0
    %3078 = vmatprep.subr.mxu0 0.0
    %3079 = vmatpush2.msra.mxu0 0.0
    %3080 = vmatprep.subr.mxu0 0.0
    %3081 = vmatpush2.msra.mxu0 0.0
    %3082 = vmatprep.subr.mxu0 0.0
    %3083 = vmatpush2.msra.mxu0 0.0
    %3084 = vmatprep.subr.mxu0 0.0
    %3085 = vmatpush2.msra.mxu0 0.0
    %3086 = vmatprep.subr.mxu0 0.0
    %3087 = vmatpush2.msra.mxu0 0.0
    %3088 = vmatprep.subr.mxu0 0.0
    %3089 = vmatpush2.msra.mxu0 0.0
    %3090 = vmatprep.subr.mxu0 0.0
    %3091 = vmatpush2.msra.mxu0 0.0
    %3092 = vmatprep.subr.mxu0 0.0
    %3093 = vmatpush2.msra.mxu0 0.0
    %3094 = vmatprep.mubr.f32.mxu0 0.0
    %3095 = vmatmul.mubr.f32.gmra.mxu0 %v3028
    %v3096 = vpop.f32.mrf.mxu0
    %v3097 = vadd.f32 %v352, %v3096
    %v3098 = vpop.f32.mrf.mxu0
    %3099 = vdwg.mxu0
    %v3101 = vsel %vm229, %v3025, 0
    %3103 = vmatprep.subr.mxu0 0.0
    %3104 = vmatpush1.msra.mxu0 0.0
    %3105 = vmatprep.subr.mxu0 0.0
    %3106 = vmatpush1.msra.mxu0 0.0
    %3107 = vmatprep.subr.mxu0 0.0
    %3108 = vmatpush1.msra.mxu0 0.0
    %3109 = vmatprep.subr.mxu0 0.0
    %3110 = vmatpush1.msra.mxu0 0.0
    %3111 = vmatprep.subr.mxu0 0.0
    %3112 = vmatpush1.msra.mxu0 0.0
    %3113 = vmatprep.subr.mxu0 0.0
    %3114 = vmatpush1.msra.mxu0 0.0
    %3115 = vmatprep.subr.mxu0 0.0
    %3116 = vmatpush1.msra.mxu0 0.0
    %3117 = vmatprep.subr.mxu0 0.0
    %3118 = vmatpush1.msra.mxu0 0.0
    %3119 = vmatprep.subr.mxu0 0.0
    %3120 = vmatpush1.msra.mxu0 0.0
    %3121 = vmatprep.subr.mxu0 0.0
    %3122 = vmatpush1.msra.mxu0 0.0
    %3123 = vmatprep.subr.mxu0 0.0
    %3124 = vmatpush1.msra.mxu0 0.0
    %3125 = vmatprep.subr.mxu0 0.0
    %3126 = vmatpush1.msra.mxu0 0.0
    %3127 = vmatprep.subr.mxu0 0.0
    %3128 = vmatpush1.msra.mxu0 %v143
    %3129 = vmatprep.subr.mxu0 0.0
    %3130 = vmatpush1.msra.mxu0 %v142
    %3131 = vmatprep.subr.mxu0 0.0
    %3132 = vmatpush1.msra.mxu0 %v141
    %3133 = vmatprep.subr.mxu0 0.0
    %3134 = vmatpush1.msra.mxu0 %v140
    %3135 = vmatprep.subr.mxu0 0.0
    %3136 = vmatpush2.msra.mxu0 0.0
    %3137 = vmatprep.subr.mxu0 0.0
    %3138 = vmatpush2.msra.mxu0 0.0
    %3139 = vmatprep.subr.mxu0 0.0
    %3140 = vmatpush2.msra.mxu0 0.0
    %3141 = vmatprep.subr.mxu0 0.0
    %3142 = vmatpush2.msra.mxu0 0.0
    %3143 = vmatprep.subr.mxu0 0.0
    %3144 = vmatpush2.msra.mxu0 0.0
    %3145 = vmatprep.subr.mxu0 0.0
    %3146 = vmatpush2.msra.mxu0 0.0
    %3147 = vmatprep.subr.mxu0 0.0
    %3148 = vmatpush2.msra.mxu0 0.0
    %3149 = vmatprep.subr.mxu0 0.0
    %3150 = vmatpush2.msra.mxu0 0.0
    %3151 = vmatprep.subr.mxu0 0.0
    %3152 = vmatpush2.msra.mxu0 0.0
    %3153 = vmatprep.subr.mxu0 0.0
    %3154 = vmatpush2.msra.mxu0 0.0
    %3155 = vmatprep.subr.mxu0 0.0
    %3156 = vmatpush2.msra.mxu0 0.0
    %3157 = vmatprep.subr.mxu0 0.0
    %3158 = vmatpush2.msra.mxu0 0.0
    %3159 = vmatprep.subr.mxu0 0.0
    %3160 = vmatpush2.msra.mxu0 0.0
    %3161 = vmatprep.subr.mxu0 0.0
    %3162 = vmatpush2.msra.mxu0 0.0
    %3163 = vmatprep.subr.mxu0 0.0
    %3164 = vmatpush2.msra.mxu0 0.0
    %3165 = vmatprep.subr.mxu0 0.0
    %3166 = vmatpush2.msra.mxu0 0.0
    %3167 = vmatprep.mubr.f32.mxu0 0.0
    %3168 = vmatmul.mubr.f32.gmra.mxu0 %v3101
    %v3169 = vpop.f32.mrf.mxu0
    %v3170 = vadd.f32 0.0, %v3169
    %v3171 = vpop.f32.mrf.mxu0
    %3172 = vdwg.mxu0
    %v3173 = vadd.f32 %v3097, %v3170
    %v3174 = vxor.u32 %v3173, 2147483648
    %v3175 = vmul.f32 %v3174, 1.442695
    %v3176 = vpow.pop %v3175
    %v3177 = vadd.f32 %v3176, 1.0
    %v3178 = vrcp.pop %v3177
    %v3179 = vmul.f32 1.0, %v3178
    %v3180 = vtanh.pop %v3173
    %3182 = vrot.lane.b32.xlu0 %v3026, 32
    %v3183 = vpop.permute.xlu0 %3182
    %v3185 = vmul.f32 %v3179, %v3183
    %3187 = vrot.lane.b32.xlu0 %v3180, 32
    %v3188 = vpop.permute.xlu0 %3187
    %v3190 = vmul.f32 %v3179, %v3188
    %3192 = vrot.lane.b32.xlu0 %v3190, 32
    %v3193 = vpop.permute.xlu0 %3192
    %v3195 = vadd.f32 %v3185, %v3193
    %v3196 = vtanh.pop %v3195
    %3198 = vrot.lane.b32.xlu0 %v3196, 32
    %v3199 = vpop.permute.xlu0 %3198
    %v3201 = vmul.f32 %v3179, %v3199
    %3203 = vrot.lane.b32.xlu0 %v3201, 64
    %v3204 = vpop.permute.xlu0 %3203
    %3206 = vst.msk [vmem:[#allocation4] sm:$0x3] %vm336, %v3204
    %3208 = vrot.lane.b32.xlu0 %v3195, 96
    %v3209 = vpop.permute.xlu0 %3208
    %3211 = vst.msk [vmem:[#allocation5] sm:$0x3] %vm336, %v3209
    %3212 = vst.msk [vmem:[#allocation18] sm:$0x3] %vm336, %v3204
    // Predicated region
    $region62: #{tpu_custom_call.1} parent=1 // pred_check
      _
    $region63: #{tpu_custom_call.1} parent=1 // pred_check_branch
      %3214 = sbr.rel (0) target = $region65
    $region64: #{tpu_custom_call.1} parent=1 // pred_region
      %s3216 = ssub.s32 256, 256
      %3217 = vsyncadd [#allocation8], %s3216
      %s3218 = sshll.u32 [#allocation17], 4
      %s3219 = int_to_ptr.vmem [resolvable:$true] %s3218
      %3224 = dma.vmem_to_hbm [thread:$0]  %s3219, 256, %s8, [#allocation8], 32, 32, 2
    $region65: #{tpu_custom_call.1} parent=1 // pred_fallthru
      _
    // Predicated region
    $region66: #{tpu_custom_call.1} parent=1 // pred_check
      _
    $region67: #{tpu_custom_call.1} parent=1 // pred_check_branch
      %3226 = sbr.rel (0) target = $region69
    $region68: #{tpu_custom_call.1} parent=1 // pred_region
      %s3227 = ssub.s32 0, 0
      %s3228 = smul.u32 8, %s3227
      %s3230 = ssub.s32 256, 256
      %3231 = vsyncadd [#allocation19], %s3230
      %s3232 = smul.addr %s3228, 32
      %s3233 = scalar_lea.hbm %s9, %s3232
      %s3234 = sshll.u32 [#allocation18], 4
      %s3235 = int_to_ptr.vmem [resolvable:$true] %s3234
      %3240 = dma.vmem_to_hbm [thread:$0]  %s3235, 256, %s3233, [#allocation19], 32, 32, 2
    $region69: #{tpu_custom_call.1} parent=1 // pred_fallthru
      _
    // Predicated region
    $region70: #{tpu_custom_call.1} parent=1 // pred_check
      _
    $region71: #{tpu_custom_call.1} parent=1 // pred_check_branch
      %3242 = sbr.rel (0) target = $region73
    $region72: #{tpu_custom_call.1} parent=1 // pred_region
      %3243 = dma.done [#allocation8], 256
    $region73: #{tpu_custom_call.1} parent=1 // pred_fallthru
      _
    // Predicated region
    $region74: #{tpu_custom_call.1} parent=1 // pred_check
      _
    $region75: #{tpu_custom_call.1} parent=1 // pred_check_branch
      %3245 = sbr.rel (0) target = $region77
    $region76: #{tpu_custom_call.1} parent=1 // pred_region
      %3246 = dma.done [#allocation19], 256
    $region77: #{tpu_custom_call.1} parent=1 // pred_fallthru
      _
    %3247 = vsyncpa [#allocation7], 1
    %3248 = vsyncpa [#allocation10], 1
    %3249 = vsyncpa [#allocation13], 1
    %3250 = vsyncpa [#allocation16], 1
    %3251 = vsyncpa [#allocation8], 1
    %3252 = vsyncpa [#allocation19], 1

</llo_original>
